<compile_context>
chip_gen: v7x
topology: tpu7x:2x2x1
jax: 0.10.0
libtpu: 0.0.40
codegen_flags: <defaults>
</compile_context>

<pallas_src>
import functools

import jax
import jax.numpy as jnp
from jax.experimental import pallas as pl
from jax.experimental.pallas import tpu as pltpu

LANE = 128
_COMPILER_PARAMS = pltpu.CompilerParams(
    dimension_semantics=("parallel",),
    vmem_limit_bytes=32 * 1024 * 1024,   # explicit budget; safe on v5e/v6e/v7x
)


def _ceil_to(x, m):
    return ((x + m - 1) // m) * m


# ----------------------------------------------------------------------------
# Pallas kernels
# ----------------------------------------------------------------------------
def _matmul_bias_relu_kernel(x_ref, w_ref, b_ref, o_ref, *, relu):
    # bf16 operands on the MXU, f32 accumulate, f32 bias+ReLU epilogue.
    acc = jnp.dot(x_ref[...], w_ref[...], preferred_element_type=jnp.float32)
    y = acc + b_ref[...]
    if relu:
        y = jnp.maximum(y, 0.0)
    o_ref[...] = y.astype(o_ref.dtype)


def matmul_bias_relu(x, w, bias, *, relu=True, out_dtype=jnp.bfloat16):
    """y = relu?(x @ w + bias). x:(M,Kp) bf16, w:(Kp,Np) bf16, bias:(Np,) f32.

    Single grid step: at these shapes (M<=512, Kp<=384, Np=128) the whole layer fits
    easily in VMEM, so extra grid steps would only add per-step pipeline overhead.
    """
    M, K = x.shape
    Kw, N = w.shape
    assert K == Kw and bias.shape == (N,)
    bias2 = bias.reshape(1, N).astype(jnp.float32)
    return pl.pallas_call(
        functools.partial(_matmul_bias_relu_kernel, relu=relu),
        out_shape=jax.ShapeDtypeStruct((M, N), out_dtype),
        grid=(1,),
        in_specs=[
            pl.BlockSpec((M, K), lambda i: (0, 0)),   # full im2col matrix (tiny)
            pl.BlockSpec((K, N), lambda i: (0, 0)),   # BN-folded, 128-padded weight
            pl.BlockSpec((1, N), lambda i: (0, 0)),   # folded-BN bias
        ],
        out_specs=pl.BlockSpec((M, N), lambda i: (0, 0)),
        compiler_params=_COMPILER_PARAMS,
    )(x, w, bias2)


def _gap_fc_kernel(x_ref, w_ref, b_ref, o_ref, *, inv_hw):
    # Fused global-average-pool + fc head: (N, H*W, C) -> (N, out).
    feats = jnp.sum(x_ref[...].astype(jnp.float32), axis=1) * inv_hw      # (N, C) f32
    logits = jnp.dot(feats, w_ref[...], preferred_element_type=jnp.float32)
    o_ref[...] = logits + b_ref[...]


def gap_fc(x_nhwc, fc_w, fc_b):
    N, H, W, C = x_nhwc.shape
    Cout = fc_w.shape[1]
    x3 = x_nhwc.reshape(N, H * W, C)
    return pl.pallas_call(
        functools.partial(_gap_fc_kernel, inv_hw=1.0 / (H * W)),
        out_shape=jax.ShapeDtypeStruct((N, Cout), jnp.float32),
        grid=(1,),
        in_specs=[
            pl.BlockSpec((N, H * W, C), lambda i: (0, 0, 0)),
            pl.BlockSpec((C, Cout), lambda i: (0, 0)),
            pl.BlockSpec((1, Cout), lambda i: (0, 0)),
        ],
        out_specs=pl.BlockSpec((N, Cout), lambda i: (0, 0)),
        compiler_params=_COMPILER_PARAMS,
    )(x3, fc_w.astype(jnp.float32), fc_b.reshape(1, Cout).astype(jnp.float32))


# ----------------------------------------------------------------------------
# Glue: im2col, BN folding, weight fusion
# ----------------------------------------------------------------------------
def im2col(x, kh, kw, stride, pad, k_pad):
    """NHWC im2col; the K (= kh*kw*C) axis is zero-padded up to k_pad inside the same
    concat (no extra pad pass), matching the zero-padded weight rows."""
    N, H, W, C = x.shape
    xp = jnp.pad(x, ((0, 0), (pad, pad), (pad, pad), (0, 0)))
    Ho = (H + 2 * pad - kh) // stride + 1
    Wo = (W + 2 * pad - kw) // stride + 1
    cols = [xp[:, i:i + stride * Ho:stride, j:j + stride * Wo:stride, :]
            for i in range(kh) for j in range(kw)]
    k_real = kh * kw * C
    if k_pad > k_real:
        cols.append(jnp.zeros((N, Ho, Wo, k_pad - k_real), x.dtype))
    cols = jnp.concatenate(cols, axis=-1)
    return cols.reshape(N * Ho * Wo, k_pad), (N, Ho, Wo)


def fold_bn_weight(w, gamma, beta, mean, var, eps=1e-3):
    """Fold inference BatchNorm into the conv weight matrix + bias.
    w: PyTorch layout (Cout, Cin, kh, kw) -> (kh*kw*Cin, Cout) with BN scale folded in."""
    cout, cin, kh, kw = w.shape
    scale = gamma * jax.lax.rsqrt(var + eps)
    w_mat = jnp.transpose(w, (2, 3, 1, 0)).reshape(kh * kw * cin, cout) * scale[None, :]
    bias = beta - mean * scale
    return w_mat, bias, (kh, kw)


def pad_weight(w_mat, bias):
    """Zero-pad K to a multiple of 128 (unmasked activation loads) and Cout to a
    multiple of 128 (lane-dense, unmasked output stores). bf16 weights for the MXU."""
    K, N = w_mat.shape
    Kp, Np = _ceil_to(K, LANE), _ceil_to(N, LANE)
    w_p = jnp.pad(w_mat, ((0, Kp - K), (0, Np - N))).astype(jnp.bfloat16)
    b_p = jnp.pad(bias, (0, Np - N)).astype(jnp.float32)
    return w_p, b_p


def conv_bn_relu(x_nhwc, p, *, stride, pad):
    """timm BasicConv2d: Conv(no bias) + BatchNorm(eps=1e-3) + ReLU (inference)."""
    w_mat, bias, (kh, kw) = fold_bn_weight(p["w"], p["gamma"], p["beta"],
                                           p["mean"], p["var"])
    cout = p["w"].shape[0]
    w_p, b_p = pad_weight(w_mat, bias)
    cols, (N, Ho, Wo) = im2col(x_nhwc, kh, kw, stride, pad, k_pad=w_p.shape[0])
    y = matmul_bias_relu(cols, w_p, b_p, relu=True)            # (M, 128*) bf16
    return y.reshape(N, Ho, Wo, -1)[..., :cout]


def build_stage1_fused(params):
    """Fuse the three 1x1 branch convs and the (avgpool 3x3 'same' -> 1x1) branch that all
    read the same input into ONE 3x3 conv:
      * a 1x1 conv == a 3x3 conv whose weights are nonzero only on the center tap;
      * avg_pool(3,1,1, count_include_pad) then 1x1 conv == a 3x3 conv with w_1x1/9 on
        every tap (zero padding contributes zero either way).
    Per-branch BN folds per-output-channel as usual."""
    b1, b2, b3, b4 = params["b1x1"], params["b5x5_1"], params["b3x3_1"], params["bpool"]
    cin = b1["w"].shape[1]
    couts = [p["w"].shape[0] for p in (b1, b2, b3, b4)]
    wf = jnp.zeros((sum(couts), cin, 3, 3), jnp.float32)
    off = 0
    for p in (b1, b2, b3):
        c = p["w"].shape[0]
        wf = wf.at[off:off + c, :, 1, 1].set(p["w"][:, :, 0, 0])
        off += c
    c = b4["w"].shape[0]
    wf = wf.at[off:off + c].set(
        jnp.broadcast_to(b4["w"][:, :, 0:1, 0:1] / 9.0, (c, cin, 3, 3)))
    fused = {
        "w": wf,
        "gamma": jnp.concatenate([p["gamma"] for p in (b1, b2, b3, b4)]),
        "beta": jnp.concatenate([p["beta"] for p in (b1, b2, b3, b4)]),
        "mean": jnp.concatenate([p["mean"] for p in (b1, b2, b3, b4)]),
        "var": jnp.concatenate([p["var"] for p in (b1, b2, b3, b4)]),
    }
    return fused, couts


# ----------------------------------------------------------------------------
# Parameter init (deterministic, synthetic — no checkpoint load)
# ----------------------------------------------------------------------------
def _conv_bn_params(key, cin, cout, kh, kw):
    k1, k2, k3, k4, k5 = jax.random.split(key, 5)
    return {
        "w": jax.random.normal(k1, (cout, cin, kh, kw), jnp.float32)
             * (1.0 / (cin * kh * kw) ** 0.5),
        "gamma": 1.0 + 0.1 * jax.random.normal(k2, (cout,), jnp.float32),
        "beta": 0.1 * jax.random.normal(k3, (cout,), jnp.float32),
        "mean": 0.1 * jax.random.normal(k4, (cout,), jnp.float32),
        "var": jnp.abs(jax.random.normal(k5, (cout,), jnp.float32)) + 1.0,
    }


def init_params(key, output_size):
    keys = jax.random.split(key, 11)
    p = {}
    # frozen backbone (representative, scaled-down inception_v3)
    p["stem1"] = _conv_bn_params(keys[0], 3, 16, 3, 3)       # Conv2d_1a-like, stride 2
    p["stem2"] = _conv_bn_params(keys[1], 16, 32, 3, 3)
    p["b1x1"] = _conv_bn_params(keys[2], 32, 16, 1, 1)       # Mixed_5b-style block
    p["b5x5_1"] = _conv_bn_params(keys[3], 32, 12, 1, 1)
    p["b5x5_2"] = _conv_bn_params(keys[4], 12, 16, 5, 5)
    p["b3x3_1"] = _conv_bn_params(keys[5], 32, 16, 1, 1)
    p["b3x3_2"] = _conv_bn_params(keys[6], 16, 24, 3, 3)
    p["b3x3_3"] = _conv_bn_params(keys[7], 24, 24, 3, 3)
    p["bpool"] = _conv_bn_params(keys[8], 32, 8, 1, 1)
    # trainable replaced fc head: nn.Linear(n_features, output_size)
    n_features = 16 + 16 + 24 + 8
    p["fc_w"] = jax.random.normal(keys[9], (n_features, output_size), jnp.float32) \
                * (1.0 / n_features ** 0.5)
    p["fc_b"] = 0.01 * jax.random.normal(keys[10], (output_size,), jnp.float32)
    return p


# ----------------------------------------------------------------------------
# Forward pass
# ----------------------------------------------------------------------------
def modified_inception_forward(params, x_nchw):
    # NCHW (PyTorch) -> NHWC; bf16 activations for the MXU and halved HBM traffic.
    x = jnp.transpose(x_nchw, (0, 2, 3, 1)).astype(jnp.bfloat16)
    x = conv_bn_relu(x, params["stem1"], stride=2, pad=0)        # (N,15,15,16)
    x = conv_bn_relu(x, params["stem2"], stride=1, pad=1)        # (N,15,15,32)

    # One fused conv for branch1 (1x1), branch2 head (1x1), branch3 head (1x1) and the
    # pool branch (avgpool+1x1 == 3x3 conv with w/9): one pallas_call, one read of x,
    # one lane-dense 128-wide output instead of four narrow masked-store outputs.
    fused, (c1, c2, c3, c4) = build_stage1_fused(params)
    s1 = conv_bn_relu(x, fused, stride=1, pad=1)                 # (N,15,15,52)
    b1 = s1[..., :c1]
    b2 = conv_bn_relu(s1[..., c1:c1 + c2], params["b5x5_2"], stride=1, pad=2)
    b3 = conv_bn_relu(s1[..., c1 + c2:c1 + c2 + c3], params["b3x3_2"], stride=1, pad=1)
    b3 = conv_bn_relu(b3, params["b3x3_3"], stride=1, pad=1)
    b4 = s1[..., c1 + c2 + c3:]
    x = jnp.concatenate([b1, b2, b3, b4], axis=-1)               # (N,15,15,64)

    # Fused global-average-pool + trainable fc head (f32), single kernel.
    return gap_fc(x, params["fc_w"], params["fc_b"])             # (N, output_size)


if __name__ == "__main__":
    key = jax.random.PRNGKey(0)
    kx, kp = jax.random.split(key)
    # Small shapes consistent with the module's NCHW image input.
    x = jax.random.normal(kx, (2, 3, 32, 32), jnp.float32)
    params = init_params(kp, output_size=8)

    out = jax.jit(modified_inception_forward)(params, x)
    out = jax.block_until_ready(out)
    assert out.shape == (2, 8) and out.dtype == jnp.float32
    print("KERNEL_OK")
</pallas_src>

<mosaic_0001>
module attributes {stable_mosaic.version = 11 : i64} {
  func.func @_matmul_bias_relu_kernel(%arg0: i32, %arg1: memref<450x128xbf16, #tpu.memory_space<vmem>>, %arg2: memref<128x128xbf16, #tpu.memory_space<vmem>>, %arg3: memref<1x128xf32, #tpu.memory_space<vmem>>, %arg4: memref<450x128xbf16, #tpu.memory_space<vmem>>) attributes {dimension_semantics = [#tpu.dimension_semantics<parallel>], iteration_bounds = array<i64: 1>, scalar_prefetch = 0 : i64, scratch_operands = 0 : i64, tpu.core_type = #tpu.core_type<tc>, window_params = [{pipeline_mode = #tpu.pipeline_mode<synchronous>, transform_indices = @transform_0, window_bounds = array<i64: 450, 128>}, {pipeline_mode = #tpu.pipeline_mode<synchronous>, transform_indices = @transform_1, window_bounds = array<i64: 128, 128>}, {pipeline_mode = #tpu.pipeline_mode<synchronous>, transform_indices = @transform_2, window_bounds = array<i64: 1, 128>}, {pipeline_mode = #tpu.pipeline_mode<synchronous>, transform_indices = @transform_3, window_bounds = array<i64: 450, 128>}]} {
    %c0 = arith.constant 0 : index
    %c0_0 = arith.constant 0 : index
    %0 = vector.load %arg1[%c0, %c0_0] : memref<450x128xbf16, #tpu.memory_space<vmem>>, vector<450x128xbf16>
    %c0_1 = arith.constant 0 : index
    %c0_2 = arith.constant 0 : index
    %1 = vector.load %arg2[%c0_1, %c0_2] : memref<128x128xbf16, #tpu.memory_space<vmem>>, vector<128x128xbf16>
    %cst = arith.constant dense<0.000000e+00> : vector<450x128xf32>
    %2 = tpu.matmul %0, %1, %cst {dimension_numbers = #tpu.dot_dimension_numbers<[1], [0], [0], [1], [0, 0, 1, 1], [], []>} : vector<450x128xbf16>, vector<128x128xbf16>, vector<450x128xf32> -> vector<450x128xf32>
    %c0_3 = arith.constant 0 : index
    %c0_4 = arith.constant 0 : index
    %3 = vector.load %arg3[%c0_3, %c0_4] : memref<1x128xf32, #tpu.memory_space<vmem>>, vector<1x128xf32>
    %4 = vector.broadcast %3 : vector<1x128xf32> to vector<450x128xf32>
    %5 = arith.addf %2, %4 : vector<450x128xf32>
    %cst_5 = arith.constant 0.000000e+00 : f32
    %6 = vector.broadcast %cst_5 : f32 to vector<450x128xf32>
    %7 = arith.maximumf %5, %6 : vector<450x128xf32>
    %8 = arith.truncf %7 : vector<450x128xf32> to vector<450x128xbf16>
    %c0_6 = arith.constant 0 : index
    %c0_7 = arith.constant 0 : index
    %9 = vector.load %arg4[%c0_6, %c0_7] : memref<450x128xbf16, #tpu.memory_space<vmem>>, vector<450x128xbf16>
    tpu.vector_store %arg4[%c0_6, %c0_7], %8 {strides = array<i32>} : memref<450x128xbf16, #tpu.memory_space<vmem>>, vector<450x128xbf16>,
    return
  }
  func.func @transform_0(%arg0: i32) -> (i32, i32) {
    %c0_i32 = arith.constant 0 : i32
    %c0_i32_0 = arith.constant 0 : i32
    %c0_i32_1 = arith.constant 0 : i32
    return %c0_i32, %c0_i32_0 : i32, i32
  }
  func.func @transform_1(%arg0: i32) -> (i32, i32) {
    %c0_i32 = arith.constant 0 : i32
    %c0_i32_0 = arith.constant 0 : i32
    %c0_i32_1 = arith.constant 0 : i32
    return %c0_i32, %c0_i32_0 : i32, i32
  }
  func.func @transform_2(%arg0: i32) -> (i32, i32) {
    %c0_i32 = arith.constant 0 : i32
    %c0_i32_0 = arith.constant 0 : i32
    %c0_i32_1 = arith.constant 0 : i32
    return %c0_i32, %c0_i32_0 : i32, i32
  }
  func.func @transform_3(%arg0: i32) -> (i32, i32) {
    %c0_i32 = arith.constant 0 : i32
    %c0_i32_0 = arith.constant 0 : i32
    %c0_i32_1 = arith.constant 0 : i32
    return %c0_i32, %c0_i32_0 : i32, i32
  }
}

module attributes {stable_mosaic.version = 11 : i64} {
  func.func @_matmul_bias_relu_kernel(%arg0: i32, %arg1: memref<450x256xbf16, #tpu.memory_space<vmem>>, %arg2: memref<256x128xbf16, #tpu.memory_space<vmem>>, %arg3: memref<1x128xf32, #tpu.memory_space<vmem>>, %arg4: memref<450x128xbf16, #tpu.memory_space<vmem>>) attributes {dimension_semantics = [#tpu.dimension_semantics<parallel>], iteration_bounds = array<i64: 1>, scalar_prefetch = 0 : i64, scratch_operands = 0 : i64, tpu.core_type = #tpu.core_type<tc>, window_params = [{pipeline_mode = #tpu.pipeline_mode<synchronous>, transform_indices = @transform_0, window_bounds = array<i64: 450, 256>}, {pipeline_mode = #tpu.pipeline_mode<synchronous>, transform_indices = @transform_1, window_bounds = array<i64: 256, 128>}, {pipeline_mode = #tpu.pipeline_mode<synchronous>, transform_indices = @transform_2, window_bounds = array<i64: 1, 128>}, {pipeline_mode = #tpu.pipeline_mode<synchronous>, transform_indices = @transform_3, window_bounds = array<i64: 450, 128>}]} {
    %c0 = arith.constant 0 : index
    %c0_0 = arith.constant 0 : index
    %0 = vector.load %arg1[%c0, %c0_0] : memref<450x256xbf16, #tpu.memory_space<vmem>>, vector<450x256xbf16>
    %c0_1 = arith.constant 0 : index
    %c0_2 = arith.constant 0 : index
    %1 = vector.load %arg2[%c0_1, %c0_2] : memref<256x128xbf16, #tpu.memory_space<vmem>>, vector<256x128xbf16>
    %cst = arith.constant dense<0.000000e+00> : vector<450x128xf32>
    %2 = tpu.matmul %0, %1, %cst {dimension_numbers = #tpu.dot_dimension_numbers<[1], [0], [0], [1], [0, 0, 1, 1], [], []>} : vector<450x256xbf16>, vector<256x128xbf16>, vector<450x128xf32> -> vector<450x128xf32>
    %c0_3 = arith.constant 0 : index
    %c0_4 = arith.constant 0 : index
    %3 = vector.load %arg3[%c0_3, %c0_4] : memref<1x128xf32, #tpu.memory_space<vmem>>, vector<1x128xf32>
    %4 = vector.broadcast %3 : vector<1x128xf32> to vector<450x128xf32>
    %5 = arith.addf %2, %4 : vector<450x128xf32>
    %cst_5 = arith.constant 0.000000e+00 : f32
    %6 = vector.broadcast %cst_5 : f32 to vector<450x128xf32>
    %7 = arith.maximumf %5, %6 : vector<450x128xf32>
    %8 = arith.truncf %7 : vector<450x128xf32> to vector<450x128xbf16>
    %c0_6 = arith.constant 0 : index
    %c0_7 = arith.constant 0 : index
    %9 = vector.load %arg4[%c0_6, %c0_7] : memref<450x128xbf16, #tpu.memory_space<vmem>>, vector<450x128xbf16>
    tpu.vector_store %arg4[%c0_6, %c0_7], %8 {strides = array<i32>} : memref<450x128xbf16, #tpu.memory_space<vmem>>, vector<450x128xbf16>,
    return
  }
  func.func @transform_0(%arg0: i32) -> (i32, i32) {
    %c0_i32 = arith.constant 0 : i32
    %c0_i32_0 = arith.constant 0 : i32
    %c0_i32_1 = arith.constant 0 : i32
    return %c0_i32, %c0_i32_0 : i32, i32
  }
  func.func @transform_1(%arg0: i32) -> (i32, i32) {
    %c0_i32 = arith.constant 0 : i32
    %c0_i32_0 = arith.constant 0 : i32
    %c0_i32_1 = arith.constant 0 : i32
    return %c0_i32, %c0_i32_0 : i32, i32
  }
  func.func @transform_2(%arg0: i32) -> (i32, i32) {
    %c0_i32 = arith.constant 0 : i32
    %c0_i32_0 = arith.constant 0 : i32
    %c0_i32_1 = arith.constant 0 : i32
    return %c0_i32, %c0_i32_0 : i32, i32
  }
  func.func @transform_3(%arg0: i32) -> (i32, i32) {
    %c0_i32 = arith.constant 0 : i32
    %c0_i32_0 = arith.constant 0 : i32
    %c0_i32_1 = arith.constant 0 : i32
    return %c0_i32, %c0_i32_0 : i32, i32
  }
}

module attributes {stable_mosaic.version = 11 : i64} {
  func.func @_matmul_bias_relu_kernel(%arg0: i32, %arg1: memref<450x384xbf16, #tpu.memory_space<vmem>>, %arg2: memref<384x128xbf16, #tpu.memory_space<vmem>>, %arg3: memref<1x128xf32, #tpu.memory_space<vmem>>, %arg4: memref<450x128xbf16, #tpu.memory_space<vmem>>) attributes {dimension_semantics = [#tpu.dimension_semantics<parallel>], iteration_bounds = array<i64: 1>, scalar_prefetch = 0 : i64, scratch_operands = 0 : i64, tpu.core_type = #tpu.core_type<tc>, window_params = [{pipeline_mode = #tpu.pipeline_mode<synchronous>, transform_indices = @transform_0, window_bounds = array<i64: 450, 384>}, {pipeline_mode = #tpu.pipeline_mode<synchronous>, transform_indices = @transform_1, window_bounds = array<i64: 384, 128>}, {pipeline_mode = #tpu.pipeline_mode<synchronous>, transform_indices = @transform_2, window_bounds = array<i64: 1, 128>}, {pipeline_mode = #tpu.pipeline_mode<synchronous>, transform_indices = @transform_3, window_bounds = array<i64: 450, 128>}]} {
    %c0 = arith.constant 0 : index
    %c0_0 = arith.constant 0 : index
    %0 = vector.load %arg1[%c0, %c0_0] : memref<450x384xbf16, #tpu.memory_space<vmem>>, vector<450x384xbf16>
    %c0_1 = arith.constant 0 : index
    %c0_2 = arith.constant 0 : index
    %1 = vector.load %arg2[%c0_1, %c0_2] : memref<384x128xbf16, #tpu.memory_space<vmem>>, vector<384x128xbf16>
    %cst = arith.constant dense<0.000000e+00> : vector<450x128xf32>
    %2 = tpu.matmul %0, %1, %cst {dimension_numbers = #tpu.dot_dimension_numbers<[1], [0], [0], [1], [0, 0, 1, 1], [], []>} : vector<450x384xbf16>, vector<384x128xbf16>, vector<450x128xf32> -> vector<450x128xf32>
    %c0_3 = arith.constant 0 : index
    %c0_4 = arith.constant 0 : index
    %3 = vector.load %arg3[%c0_3, %c0_4] : memref<1x128xf32, #tpu.memory_space<vmem>>, vector<1x128xf32>
    %4 = vector.broadcast %3 : vector<1x128xf32> to vector<450x128xf32>
    %5 = arith.addf %2, %4 : vector<450x128xf32>
    %cst_5 = arith.constant 0.000000e+00 : f32
    %6 = vector.broadcast %cst_5 : f32 to vector<450x128xf32>
    %7 = arith.maximumf %5, %6 : vector<450x128xf32>
    %8 = arith.truncf %7 : vector<450x128xf32> to vector<450x128xbf16>
    %c0_6 = arith.constant 0 : index
    %c0_7 = arith.constant 0 : index
    %9 = vector.load %arg4[%c0_6, %c0_7] : memref<450x128xbf16, #tpu.memory_space<vmem>>, vector<450x128xbf16>
    tpu.vector_store %arg4[%c0_6, %c0_7], %8 {strides = array<i32>} : memref<450x128xbf16, #tpu.memory_space<vmem>>, vector<450x128xbf16>,
    return
  }
  func.func @transform_0(%arg0: i32) -> (i32, i32) {
    %c0_i32 = arith.constant 0 : i32
    %c0_i32_0 = arith.constant 0 : i32
    %c0_i32_1 = arith.constant 0 : i32
    return %c0_i32, %c0_i32_0 : i32, i32
  }
  func.func @transform_1(%arg0: i32) -> (i32, i32) {
    %c0_i32 = arith.constant 0 : i32
    %c0_i32_0 = arith.constant 0 : i32
    %c0_i32_1 = arith.constant 0 : i32
    return %c0_i32, %c0_i32_0 : i32, i32
  }
  func.func @transform_2(%arg0: i32) -> (i32, i32) {
    %c0_i32 = arith.constant 0 : i32
    %c0_i32_0 = arith.constant 0 : i32
    %c0_i32_1 = arith.constant 0 : i32
    return %c0_i32, %c0_i32_0 : i32, i32
  }
  func.func @transform_3(%arg0: i32) -> (i32, i32) {
    %c0_i32 = arith.constant 0 : i32
    %c0_i32_0 = arith.constant 0 : i32
    %c0_i32_1 = arith.constant 0 : i32
    return %c0_i32, %c0_i32_0 : i32, i32
  }
}

module attributes {stable_mosaic.version = 11 : i64} {
  func.func @_gap_fc_kernel(%arg0: i32, %arg1: memref<2x225x64xbf16, #tpu.memory_space<vmem>>, %arg2: memref<64x8xf32, #tpu.memory_space<vmem>>, %arg3: memref<1x8xf32, #tpu.memory_space<vmem>>, %arg4: memref<2x8xf32, #tpu.memory_space<vmem>>) attributes {dimension_semantics = [#tpu.dimension_semantics<parallel>], iteration_bounds = array<i64: 1>, scalar_prefetch = 0 : i64, scratch_operands = 0 : i64, tpu.core_type = #tpu.core_type<tc>, window_params = [{pipeline_mode = #tpu.pipeline_mode<synchronous>, transform_indices = @transform_0, window_bounds = array<i64: 2, 225, 64>}, {pipeline_mode = #tpu.pipeline_mode<synchronous>, transform_indices = @transform_1, window_bounds = array<i64: 64, 8>}, {pipeline_mode = #tpu.pipeline_mode<synchronous>, transform_indices = @transform_2, window_bounds = array<i64: 1, 8>}, {pipeline_mode = #tpu.pipeline_mode<synchronous>, transform_indices = @transform_3, window_bounds = array<i64: 2, 8>}]} {
    %c0 = arith.constant 0 : index
    %c0_0 = arith.constant 0 : index
    %c0_1 = arith.constant 0 : index
    %0 = vector.load %arg1[%c0, %c0_0, %c0_1] : memref<2x225x64xbf16, #tpu.memory_space<vmem>>, vector<2x225x64xbf16>
    %1 = arith.extf %0 : vector<2x225x64xbf16> to vector<2x225x64xf32>
    %cst = arith.constant dense<0.000000e+00> : vector<2x64xf32>
    %2 = vector.multi_reduction <add>, %1, %cst [1] : vector<2x225x64xf32> to vector<2x64xf32>
    %cst_2 = arith.constant 0.00444444455 : f32
    %3 = vector.broadcast %cst_2 : f32 to vector<2x64xf32>
    %4 = arith.mulf %2, %3 : vector<2x64xf32>
    %c0_3 = arith.constant 0 : index
    %c0_4 = arith.constant 0 : index
    %5 = vector.load %arg2[%c0_3, %c0_4] : memref<64x8xf32, #tpu.memory_space<vmem>>, vector<64x8xf32>
    %cst_5 = arith.constant dense<0.000000e+00> : vector<2x8xf32>
    %6 = tpu.matmul %4, %5, %cst_5 {dimension_numbers = #tpu.dot_dimension_numbers<[1], [0], [0], [1], [0, 0, 1, 1], [], []>} : vector<2x64xf32>, vector<64x8xf32>, vector<2x8xf32> -> vector<2x8xf32>
    %c0_6 = arith.constant 0 : index
    %c0_7 = arith.constant 0 : index
    %7 = vector.load %arg3[%c0_6, %c0_7] : memref<1x8xf32, #tpu.memory_space<vmem>>, vector<1x8xf32>
    %8 = vector.broadcast %7 : vector<1x8xf32> to vector<2x8xf32>
    %9 = arith.addf %6, %8 : vector<2x8xf32>
    %c0_8 = arith.constant 0 : index
    %c0_9 = arith.constant 0 : index
    %10 = vector.load %arg4[%c0_8, %c0_9] : memref<2x8xf32, #tpu.memory_space<vmem>>, vector<2x8xf32>
    tpu.vector_store %arg4[%c0_8, %c0_9], %9 {strides = array<i32>} : memref<2x8xf32, #tpu.memory_space<vmem>>, vector<2x8xf32>,
    return
  }
  func.func @transform_0(%arg0: i32) -> (i32, i32, i32) {
    %c0_i32 = arith.constant 0 : i32
    %c0_i32_0 = arith.constant 0 : i32
    %c0_i32_1 = arith.constant 0 : i32
    %c0_i32_2 = arith.constant 0 : i32
    return %c0_i32, %c0_i32_0, %c0_i32_1 : i32, i32, i32
  }
  func.func @transform_1(%arg0: i32) -> (i32, i32) {
    %c0_i32 = arith.constant 0 : i32
    %c0_i32_0 = arith.constant 0 : i32
    %c0_i32_1 = arith.constant 0 : i32
    return %c0_i32, %c0_i32_0 : i32, i32
  }
  func.func @transform_2(%arg0: i32) -> (i32, i32) {
    %c0_i32 = arith.constant 0 : i32
    %c0_i32_0 = arith.constant 0 : i32
    %c0_i32_1 = arith.constant 0 : i32
    return %c0_i32, %c0_i32_0 : i32, i32
  }
  func.func @transform_3(%arg0: i32) -> (i32, i32) {
    %c0_i32 = arith.constant 0 : i32
    %c0_i32_0 = arith.constant 0 : i32
    %c0_i32_1 = arith.constant 0 : i32
    return %c0_i32, %c0_i32_0 : i32, i32
  }
}

</mosaic_0001>

<llo_original>
// kernel: modified_inception_forward.7
$region0: #{modified_inception_forward.7}
  #allocation0 [shape = 'u32[]', space=smem, size = 0x4, offset = 0x4, fixed_abs, tag = 'smem constant byte address 0x4 - core index']
  #allocation1 [shape = 'u32[144,128]{1,0:T(1,128)}', space=vmem, size = 0x12000, scoped, tag = 'internal scratch']
  %s0 = inlined_call_operand.vmem [shape: bf16[450,128], index: 0, kind: input, shape index: {}]
  %s1 = inlined_call_operand.vmem [shape: bf16[128,128], index: 1, kind: input, shape index: {}]
  %s2 = inlined_call_operand.vmem [shape: f32[1,128], index: 2, kind: input, shape index: {}]
  %s3 = inlined_call_operand.vmem [shape: bf16[450,128], index: 3, kind: output, shape index: {}]
  %s4 = sld [smem:[#allocation0]]
  $region22: #{modified_inception_forward.7} parent=0
    _
  %s6 = ssub.s32 1, %s4
  %s7 = scalar_select 0, %s6, %s4
  // Predicated region
  $region2: #{modified_inception_forward.7} parent=0 // pred_check
    _
  $region3: #{modified_inception_forward.7} parent=0 // pred_check_branch
    %9 = sbr.rel (0) target = $region5
  $region4: #{modified_inception_forward.7} parent=0 // pred_region
    _
  $region5: #{modified_inception_forward.7} parent=0 // pred_fallthru
    _
  // Predicated region
  $region6: #{modified_inception_forward.7} parent=0 // pred_check
    _
  $region7: #{modified_inception_forward.7} parent=0 // pred_check_branch
    %11 = sbr.rel (0) target = $region9
  $region8: #{modified_inception_forward.7} parent=0 // pred_region
    _
  $region9: #{modified_inception_forward.7} parent=0 // pred_fallthru
    _
  // Predicated region
  $region10: #{modified_inception_forward.7} parent=0 // pred_check
    _
  $region11: #{modified_inception_forward.7} parent=0 // pred_check_branch
    %13 = sbr.rel (0) target = $region13
  $region12: #{modified_inception_forward.7} parent=0 // pred_region
    _
  $region13: #{modified_inception_forward.7} parent=0 // pred_fallthru
    _
  %v15 = vld [vmem:[%s0] sm:$0xf]
  %v16 = vld [vmem:[%s0 + $0x4] sm:$0xf]
  %v17 = vld [vmem:[%s0 + $0x8] sm:$0xf]
  %v18 = vld [vmem:[%s0 + $0xc] sm:$0xf]
  %v19 = vld [vmem:[%s0 + $0x10] sm:$0xf]
  %v20 = vld [vmem:[%s0 + $0x14] sm:$0xf]
  %v21 = vld [vmem:[%s0 + $0x18] sm:$0xf]
  %v22 = vld [vmem:[%s0 + $0x1c] sm:$0xf]
  %v23 = vld [vmem:[%s0 + $0x20] sm:$0xf]
  %v24 = vld [vmem:[%s0 + $0x24] sm:$0xf]
  %v25 = vld [vmem:[%s0 + $0x28] sm:$0xf]
  %v26 = vld [vmem:[%s0 + $0x2c] sm:$0xf]
  %v27 = vld [vmem:[%s0 + $0x30] sm:$0xf]
  %v28 = vld [vmem:[%s0 + $0x34] sm:$0xf]
  %v29 = vld [vmem:[%s0 + $0x38] sm:$0xf]
  %v30 = vld [vmem:[%s0 + $0x3c] sm:$0xf]
  %v31 = vld [vmem:[%s0 + $0x40] sm:$0xf]
  %v32 = vld [vmem:[%s0 + $0x44] sm:$0xf]
  %v33 = vld [vmem:[%s0 + $0x48] sm:$0xf]
  %v34 = vld [vmem:[%s0 + $0x4c] sm:$0xf]
  %v35 = vld [vmem:[%s0 + $0x50] sm:$0xf]
  %v36 = vld [vmem:[%s0 + $0x54] sm:$0xf]
  %v37 = vld [vmem:[%s0 + $0x58] sm:$0xf]
  %v38 = vld [vmem:[%s0 + $0x5c] sm:$0xf]
  %v39 = vld [vmem:[%s0 + $0x60] sm:$0xf]
  %v40 = vld [vmem:[%s0 + $0x64] sm:$0xf]
  %v41 = vld [vmem:[%s0 + $0x68] sm:$0xf]
  %v42 = vld [vmem:[%s0 + $0x6c] sm:$0xf]
  %v43 = vld [vmem:[%s0 + $0x70] sm:$0xf]
  %v44 = vld [vmem:[%s0 + $0x74] sm:$0xf]
  %v45 = vld [vmem:[%s0 + $0x78] sm:$0xf]
  %v46 = vld [vmem:[%s0 + $0x7c] sm:$0xf]
  %v47 = vld [vmem:[%s0 + $0x80] sm:$0xf]
  %v48 = vld [vmem:[%s0 + $0x84] sm:$0xf]
  %v49 = vld [vmem:[%s0 + $0x88] sm:$0xf]
  %v50 = vld [vmem:[%s0 + $0x8c] sm:$0xf]
  %v51 = vld [vmem:[%s0 + $0x90] sm:$0xf]
  %v52 = vld [vmem:[%s0 + $0x94] sm:$0xf]
  %v53 = vld [vmem:[%s0 + $0x98] sm:$0xf]
  %v54 = vld [vmem:[%s0 + $0x9c] sm:$0xf]
  %v55 = vld [vmem:[%s0 + $0xa0] sm:$0xf]
  %v56 = vld [vmem:[%s0 + $0xa4] sm:$0xf]
  %v57 = vld [vmem:[%s0 + $0xa8] sm:$0xf]
  %v58 = vld [vmem:[%s0 + $0xac] sm:$0xf]
  %v59 = vld [vmem:[%s0 + $0xb0] sm:$0xf]
  %v60 = vld [vmem:[%s0 + $0xb4] sm:$0xf]
  %v61 = vld [vmem:[%s0 + $0xb8] sm:$0xf]
  %v62 = vld [vmem:[%s0 + $0xbc] sm:$0xf]
  %v63 = vld [vmem:[%s0 + $0xc0] sm:$0xf]
  %v64 = vld [vmem:[%s0 + $0xc4] sm:$0xf]
  %v65 = vld [vmem:[%s0 + $0xc8] sm:$0xf]
  %v66 = vld [vmem:[%s0 + $0xcc] sm:$0xf]
  %v67 = vld [vmem:[%s0 + $0xd0] sm:$0xf]
  %v68 = vld [vmem:[%s0 + $0xd4] sm:$0xf]
  %v69 = vld [vmem:[%s0 + $0xd8] sm:$0xf]
  %v70 = vld [vmem:[%s0 + $0xdc] sm:$0xf]
  %v71 = vld [vmem:[%s0 + $0xe0] sm:$0x1]
  %v72 = vld [vmem:[%s1] sm:$0xf]
  %v73 = vld [vmem:[%s1 + $0x4] sm:$0xf]
  %v74 = vld [vmem:[%s1 + $0x8] sm:$0xf]
  %v75 = vld [vmem:[%s1 + $0xc] sm:$0xf]
  %v76 = vld [vmem:[%s1 + $0x10] sm:$0xf]
  %v77 = vld [vmem:[%s1 + $0x14] sm:$0xf]
  %v78 = vld [vmem:[%s1 + $0x18] sm:$0xf]
  %v79 = vld [vmem:[%s1 + $0x1c] sm:$0xf]
  %v80 = vld [vmem:[%s1 + $0x20] sm:$0xf]
  %v81 = vld [vmem:[%s1 + $0x24] sm:$0xf]
  %v82 = vld [vmem:[%s1 + $0x28] sm:$0xf]
  %v83 = vld [vmem:[%s1 + $0x2c] sm:$0xf]
  %v84 = vld [vmem:[%s1 + $0x30] sm:$0xf]
  %v85 = vld [vmem:[%s1 + $0x34] sm:$0xf]
  %v86 = vld [vmem:[%s1 + $0x38] sm:$0xf]
  %v87 = vld [vmem:[%s1 + $0x3c] sm:$0xf]
  %v88 = vld [vmem:[%s2] sm:$0x1]
  %v90 = vlaneseq
  %v91 = vshrl.u32 %v90, 7
  %v92 = vsub.s32 0, %v91
  %v93 = vrot.slane %v88, %v92
  %v152 = vunpack.c.l.b16 %v15
  %v153 = vunpack.c.l.b16 %v16
  %v154 = vunpack.c.l.b16 %v17
  %v155 = vunpack.c.l.b16 %v18
  %v156 = vunpack.c.l.b16 %v19
  %v157 = vunpack.c.l.b16 %v20
  %v158 = vunpack.c.l.b16 %v21
  %v159 = vunpack.c.l.b16 %v22
  %v160 = vunpack.c.l.b16 %v23
  %v161 = vunpack.c.l.b16 %v24
  %v162 = vunpack.c.l.b16 %v25
  %v163 = vunpack.c.l.b16 %v26
  %v164 = vunpack.c.l.b16 %v27
  %v165 = vunpack.c.l.b16 %v28
  %v166 = vunpack.c.l.b16 %v29
  %v167 = vunpack.c.l.b16 %v30
  %v168 = vunpack.c.l.b16 %v31
  %v169 = vunpack.c.l.b16 %v32
  %v170 = vunpack.c.l.b16 %v33
  %v171 = vunpack.c.l.b16 %v34
  %v172 = vunpack.c.l.b16 %v35
  %v173 = vunpack.c.l.b16 %v36
  %v174 = vunpack.c.l.b16 %v37
  %v175 = vunpack.c.l.b16 %v38
  %v176 = vunpack.c.l.b16 %v39
  %v177 = vunpack.c.l.b16 %v40
  %v178 = vunpack.c.l.b16 %v41
  %v179 = vunpack.c.l.b16 %v42
  %v180 = vunpack.c.l.b16 %v43
  %v181 = vunpack.c.l.b16 %v44
  %v182 = vunpack.c.l.b16 %v45
  %v183 = vunpack.c.l.b16 %v46
  %v184 = vunpack.c.l.b16 %v47
  %v185 = vunpack.c.l.b16 %v48
  %v186 = vunpack.c.l.b16 %v49
  %v187 = vunpack.c.l.b16 %v50
  %v188 = vunpack.c.l.b16 %v51
  %v189 = vunpack.c.l.b16 %v52
  %v190 = vunpack.c.l.b16 %v53
  %v191 = vunpack.c.l.b16 %v54
  %v192 = vunpack.c.l.b16 %v55
  %v193 = vunpack.c.l.b16 %v56
  %v194 = vunpack.c.l.b16 %v57
  %v195 = vunpack.c.l.b16 %v58
  %v196 = vunpack.c.l.b16 %v59
  %v197 = vunpack.c.l.b16 %v60
  %v198 = vunpack.c.l.b16 %v61
  %v199 = vunpack.c.l.b16 %v62
  %v200 = vunpack.c.l.b16 %v63
  %v201 = vunpack.c.l.b16 %v64
  %v202 = vunpack.c.l.b16 %v65
  %v203 = vunpack.c.l.b16 %v66
  %v204 = vunpack.c.l.b16 %v67
  %v205 = vunpack.c.l.b16 %v68
  %v206 = vunpack.c.l.b16 %v69
  %v207 = vunpack.c.l.b16 %v70
  %v208 = vunpack.c.l.b16 %v71
  %v209 = vpack.c.b16 %v153, %v152
  %v210 = vpack.c.b16 %v155, %v154
  %v211 = vpack.c.b16 %v157, %v156
  %v212 = vpack.c.b16 %v159, %v158
  %v213 = vpack.c.b16 %v161, %v160
  %v214 = vpack.c.b16 %v163, %v162
  %v215 = vpack.c.b16 %v165, %v164
  %v216 = vpack.c.b16 %v167, %v166
  %v217 = vpack.c.b16 %v169, %v168
  %v218 = vpack.c.b16 %v171, %v170
  %v219 = vpack.c.b16 %v173, %v172
  %v220 = vpack.c.b16 %v175, %v174
  %v221 = vpack.c.b16 %v177, %v176
  %v222 = vpack.c.b16 %v179, %v178
  %v223 = vpack.c.b16 %v181, %v180
  %v224 = vpack.c.b16 %v183, %v182
  %v225 = vpack.c.b16 %v185, %v184
  %v226 = vpack.c.b16 %v187, %v186
  %v227 = vpack.c.b16 %v189, %v188
  %v228 = vpack.c.b16 %v191, %v190
  %v229 = vpack.c.b16 %v193, %v192
  %v230 = vpack.c.b16 %v195, %v194
  %v231 = vpack.c.b16 %v197, %v196
  %v232 = vpack.c.b16 %v199, %v198
  %v233 = vpack.c.b16 %v201, %v200
  %v234 = vpack.c.b16 %v203, %v202
  %v235 = vpack.c.b16 %v205, %v204
  %v236 = vpack.c.b16 %v207, %v206
  %v237 = vpack.c.b16 %v208, %v208
  %v283 = vunpack.c.l.b16 %v72
  %v284 = vunpack.c.l.b16 %v73
  %v285 = vunpack.c.l.b16 %v74
  %v286 = vunpack.c.l.b16 %v75
  %v287 = vunpack.c.l.b16 %v76
  %v288 = vunpack.c.l.b16 %v77
  %v289 = vunpack.c.l.b16 %v78
  %v290 = vunpack.c.l.b16 %v79
  %v291 = vunpack.c.l.b16 %v80
  %v292 = vunpack.c.l.b16 %v81
  %v293 = vunpack.c.l.b16 %v82
  %v294 = vunpack.c.l.b16 %v83
  %v295 = vunpack.c.l.b16 %v84
  %v296 = vunpack.c.l.b16 %v85
  %v297 = vunpack.c.l.b16 %v86
  %v298 = vunpack.c.l.b16 %v87
  %v299 = vpack.c.b16 %v284, %v283
  %v300 = vpack.c.b16 %v286, %v285
  %v301 = vpack.c.b16 %v288, %v287
  %v302 = vpack.c.b16 %v290, %v289
  %v303 = vpack.c.b16 %v292, %v291
  %v304 = vpack.c.b16 %v294, %v293
  %v305 = vpack.c.b16 %v296, %v295
  %v306 = vpack.c.b16 %v298, %v297
  %315 = vmatprep.subr.bf16.mxu0 0
  %316 = vmatpush1.bf16.msra.mxu0 %v299
  %317 = vmatprep.subr.bf16.mxu0 0
  %318 = vmatpush1.bf16.msra.mxu0 %v300
  %319 = vmatprep.subr.bf16.mxu0 0
  %320 = vmatpush1.bf16.msra.mxu0 %v301
  %321 = vmatprep.subr.bf16.mxu0 0
  %322 = vmatpush1.bf16.msra.mxu0 %v302
  %323 = vmatprep.subr.bf16.mxu0 0
  %324 = vmatpush1.bf16.msra.mxu0 %v303
  %325 = vmatprep.subr.bf16.mxu0 0
  %326 = vmatpush1.bf16.msra.mxu0 %v304
  %327 = vmatprep.subr.bf16.mxu0 0
  %328 = vmatpush1.bf16.msra.mxu0 %v305
  %329 = vmatprep.subr.bf16.mxu0 0
  %330 = vmatpush1.bf16.msra.mxu0 %v306
  %331 = vmatprep.subr.bf16.mxu0 0
  %332 = vmatpush1.bf16.msra.mxu0 0
  %333 = vmatprep.subr.bf16.mxu0 0
  %334 = vmatpush1.bf16.msra.mxu0 0
  %335 = vmatprep.subr.bf16.mxu0 0
  %336 = vmatpush1.bf16.msra.mxu0 0
  %337 = vmatprep.subr.bf16.mxu0 0
  %338 = vmatpush1.bf16.msra.mxu0 0
  %339 = vmatprep.subr.bf16.mxu0 0
  %340 = vmatpush1.bf16.msra.mxu0 0
  %341 = vmatprep.subr.bf16.mxu0 0
  %342 = vmatpush1.bf16.msra.mxu0 0
  %343 = vmatprep.subr.bf16.mxu0 0
  %344 = vmatpush1.bf16.msra.mxu0 0
  %345 = vmatprep.subr.bf16.mxu0 0
  %346 = vmatpush1.bf16.msra.mxu0 0
  %347 = vmatprep.mubr.bf16.mxu0 0
  %348 = vmatmul.mubr.bf16.gmra.mrb[0].mxu0 %v209
  %v349 = vpop.f32.mrb[0].mxu0
  %v350 = vadd.f32 %v93, %v349
  %v351 = vpop.f32.mrb[0].mxu0
  %v352 = vpop.f32.mrb[0].mxu0
  %v353 = vadd.f32 %v93, %v352
  %v354 = vpop.f32.mrb[0].mxu0
  %355 = vmatprep.mubr.bf16.mxu0 0
  %356 = vmatmul.mubr.bf16.gmra.mrb[0].mxu0 %v210
  %v357 = vpop.f32.mrb[0].mxu0
  %v358 = vadd.f32 %v93, %v357
  %v359 = vpop.f32.mrb[0].mxu0
  %v360 = vpop.f32.mrb[0].mxu0
  %v361 = vadd.f32 %v93, %v360
  %v362 = vpop.f32.mrb[0].mxu0
  %363 = vmatprep.mubr.bf16.mxu0 0
  %364 = vmatmul.mubr.bf16.gmra.mrb[0].mxu0 %v211
  %v365 = vpop.f32.mrb[0].mxu0
  %v366 = vadd.f32 %v93, %v365
  %v367 = vpop.f32.mrb[0].mxu0
  %v368 = vpop.f32.mrb[0].mxu0
  %v369 = vadd.f32 %v93, %v368
  %v370 = vpop.f32.mrb[0].mxu0
  %371 = vmatprep.mubr.bf16.mxu0 0
  %372 = vmatmul.mubr.bf16.gmra.mrb[0].mxu0 %v212
  %v373 = vpop.f32.mrb[0].mxu0
  %v374 = vadd.f32 %v93, %v373
  %v375 = vpop.f32.mrb[0].mxu0
  %v376 = vpop.f32.mrb[0].mxu0
  %v377 = vadd.f32 %v93, %v376
  %v378 = vpop.f32.mrb[0].mxu0
  %379 = vmatprep.mubr.bf16.mxu0 0
  %380 = vmatmul.mubr.bf16.gmra.mrb[0].mxu0 %v213
  %v381 = vpop.f32.mrb[0].mxu0
  %v382 = vadd.f32 %v93, %v381
  %v383 = vpop.f32.mrb[0].mxu0
  %v384 = vpop.f32.mrb[0].mxu0
  %v385 = vadd.f32 %v93, %v384
  %v386 = vpop.f32.mrb[0].mxu0
  %387 = vmatprep.mubr.bf16.mxu0 0
  %388 = vmatmul.mubr.bf16.gmra.mrb[0].mxu0 %v214
  %v389 = vpop.f32.mrb[0].mxu0
  %v390 = vadd.f32 %v93, %v389
  %v391 = vpop.f32.mrb[0].mxu0
  %v392 = vpop.f32.mrb[0].mxu0
  %v393 = vadd.f32 %v93, %v392
  %v394 = vpop.f32.mrb[0].mxu0
  %395 = vmatprep.mubr.bf16.mxu0 0
  %396 = vmatmul.mubr.bf16.gmra.mrb[0].mxu0 %v215
  %v397 = vpop.f32.mrb[0].mxu0
  %v398 = vadd.f32 %v93, %v397
  %v399 = vpop.f32.mrb[0].mxu0
  %v400 = vpop.f32.mrb[0].mxu0
  %v401 = vadd.f32 %v93, %v400
  %v402 = vpop.f32.mrb[0].mxu0
  %403 = vmatprep.mubr.bf16.mxu0 0
  %404 = vmatmul.mubr.bf16.gmra.mrb[0].mxu0 %v216
  %v405 = vpop.f32.mrb[0].mxu0
  %v406 = vadd.f32 %v93, %v405
  %v407 = vpop.f32.mrb[0].mxu0
  %v408 = vpop.f32.mrb[0].mxu0
  %v409 = vadd.f32 %v93, %v408
  %v410 = vpop.f32.mrb[0].mxu0
  %411 = vmatprep.mubr.bf16.mxu0 0
  %412 = vmatmul.mubr.bf16.gmra.mrb[0].mxu0 %v217
  %v413 = vpop.f32.mrb[0].mxu0
  %v414 = vadd.f32 %v93, %v413
  %v415 = vpop.f32.mrb[0].mxu0
  %v416 = vpop.f32.mrb[0].mxu0
  %v417 = vadd.f32 %v93, %v416
  %v418 = vpop.f32.mrb[0].mxu0
  %419 = vmatprep.mubr.bf16.mxu0 0
  %420 = vmatmul.mubr.bf16.gmra.mrb[0].mxu0 %v218
  %v421 = vpop.f32.mrb[0].mxu0
  %v422 = vadd.f32 %v93, %v421
  %v423 = vpop.f32.mrb[0].mxu0
  %v424 = vpop.f32.mrb[0].mxu0
  %v425 = vadd.f32 %v93, %v424
  %v426 = vpop.f32.mrb[0].mxu0
  %427 = vmatprep.mubr.bf16.mxu0 0
  %428 = vmatmul.mubr.bf16.gmra.mrb[0].mxu0 %v219
  %v429 = vpop.f32.mrb[0].mxu0
  %v430 = vadd.f32 %v93, %v429
  %v431 = vpop.f32.mrb[0].mxu0
  %v432 = vpop.f32.mrb[0].mxu0
  %v433 = vadd.f32 %v93, %v432
  %v434 = vpop.f32.mrb[0].mxu0
  %435 = vmatprep.mubr.bf16.mxu0 0
  %436 = vmatmul.mubr.bf16.gmra.mrb[0].mxu0 %v220
  %v437 = vpop.f32.mrb[0].mxu0
  %v438 = vadd.f32 %v93, %v437
  %v439 = vpop.f32.mrb[0].mxu0
  %v440 = vpop.f32.mrb[0].mxu0
  %v441 = vadd.f32 %v93, %v440
  %v442 = vpop.f32.mrb[0].mxu0
  %443 = vmatprep.mubr.bf16.mxu0 0
  %444 = vmatmul.mubr.bf16.gmra.mrb[0].mxu0 %v221
  %v445 = vpop.f32.mrb[0].mxu0
  %v446 = vadd.f32 %v93, %v445
  %v447 = vpop.f32.mrb[0].mxu0
  %v448 = vpop.f32.mrb[0].mxu0
  %v449 = vadd.f32 %v93, %v448
  %v450 = vpop.f32.mrb[0].mxu0
  %451 = vmatprep.mubr.bf16.mxu0 0
  %452 = vmatmul.mubr.bf16.gmra.mrb[0].mxu0 %v222
  %v453 = vpop.f32.mrb[0].mxu0
  %v454 = vadd.f32 %v93, %v453
  %v455 = vpop.f32.mrb[0].mxu0
  %v456 = vpop.f32.mrb[0].mxu0
  %v457 = vadd.f32 %v93, %v456
  %v458 = vpop.f32.mrb[0].mxu0
  %459 = vmatprep.mubr.bf16.mxu0 0
  %460 = vmatmul.mubr.bf16.gmra.mrb[0].mxu0 %v223
  %v461 = vpop.f32.mrb[0].mxu0
  %v462 = vadd.f32 %v93, %v461
  %v463 = vpop.f32.mrb[0].mxu0
  %v464 = vpop.f32.mrb[0].mxu0
  %v465 = vadd.f32 %v93, %v464
  %v466 = vpop.f32.mrb[0].mxu0
  %467 = vmatprep.mubr.bf16.mxu0 0
  %468 = vmatmul.mubr.bf16.gmra.mrb[0].mxu0 %v224
  %v469 = vpop.f32.mrb[0].mxu0
  %v470 = vadd.f32 %v93, %v469
  %v471 = vpop.f32.mrb[0].mxu0
  %v472 = vpop.f32.mrb[0].mxu0
  %v473 = vadd.f32 %v93, %v472
  %v474 = vpop.f32.mrb[0].mxu0
  %475 = vmatprep.mubr.bf16.mxu0 0
  %476 = vmatmul.mubr.bf16.gmra.mrb[0].mxu0 %v225
  %v477 = vpop.f32.mrb[0].mxu0
  %v478 = vadd.f32 %v93, %v477
  %v479 = vpop.f32.mrb[0].mxu0
  %v480 = vpop.f32.mrb[0].mxu0
  %v481 = vadd.f32 %v93, %v480
  %v482 = vpop.f32.mrb[0].mxu0
  %483 = vmatprep.mubr.bf16.mxu0 0
  %484 = vmatmul.mubr.bf16.gmra.mrb[0].mxu0 %v226
  %v485 = vpop.f32.mrb[0].mxu0
  %v486 = vadd.f32 %v93, %v485
  %v487 = vpop.f32.mrb[0].mxu0
  %v488 = vpop.f32.mrb[0].mxu0
  %v489 = vadd.f32 %v93, %v488
  %v490 = vpop.f32.mrb[0].mxu0
  %491 = vmatprep.mubr.bf16.mxu0 0
  %492 = vmatmul.mubr.bf16.gmra.mrb[0].mxu0 %v227
  %v493 = vpop.f32.mrb[0].mxu0
  %v494 = vadd.f32 %v93, %v493
  %v495 = vpop.f32.mrb[0].mxu0
  %v496 = vpop.f32.mrb[0].mxu0
  %v497 = vadd.f32 %v93, %v496
  %v498 = vpop.f32.mrb[0].mxu0
  %499 = vmatprep.mubr.bf16.mxu0 0
  %500 = vmatmul.mubr.bf16.gmra.mrb[0].mxu0 %v228
  %v501 = vpop.f32.mrb[0].mxu0
  %v502 = vadd.f32 %v93, %v501
  %v503 = vpop.f32.mrb[0].mxu0
  %v504 = vpop.f32.mrb[0].mxu0
  %v505 = vadd.f32 %v93, %v504
  %v506 = vpop.f32.mrb[0].mxu0
  %507 = vmatprep.mubr.bf16.mxu0 0
  %508 = vmatmul.mubr.bf16.gmra.mrb[0].mxu0 %v229
  %v509 = vpop.f32.mrb[0].mxu0
  %v510 = vadd.f32 %v93, %v509
  %v511 = vpop.f32.mrb[0].mxu0
  %v512 = vpop.f32.mrb[0].mxu0
  %v513 = vadd.f32 %v93, %v512
  %v514 = vpop.f32.mrb[0].mxu0
  %515 = vmatprep.mubr.bf16.mxu0 0
  %516 = vmatmul.mubr.bf16.gmra.mrb[0].mxu0 %v230
  %v517 = vpop.f32.mrb[0].mxu0
  %v518 = vadd.f32 %v93, %v517
  %v519 = vpop.f32.mrb[0].mxu0
  %v520 = vpop.f32.mrb[0].mxu0
  %v521 = vadd.f32 %v93, %v520
  %v522 = vpop.f32.mrb[0].mxu0
  %523 = vmatprep.mubr.bf16.mxu0 0
  %524 = vmatmul.mubr.bf16.gmra.mrb[0].mxu0 %v231
  %v525 = vpop.f32.mrb[0].mxu0
  %v526 = vadd.f32 %v93, %v525
  %v527 = vpop.f32.mrb[0].mxu0
  %v528 = vpop.f32.mrb[0].mxu0
  %v529 = vadd.f32 %v93, %v528
  %v530 = vpop.f32.mrb[0].mxu0
  %531 = vmatprep.mubr.bf16.mxu0 0
  %532 = vmatmul.mubr.bf16.gmra.mrb[0].mxu0 %v232
  %v533 = vpop.f32.mrb[0].mxu0
  %v534 = vadd.f32 %v93, %v533
  %v535 = vpop.f32.mrb[0].mxu0
  %v536 = vpop.f32.mrb[0].mxu0
  %v537 = vadd.f32 %v93, %v536
  %v538 = vpop.f32.mrb[0].mxu0
  %539 = vmatprep.mubr.bf16.mxu0 0
  %540 = vmatmul.mubr.bf16.gmra.mrb[0].mxu0 %v233
  %v541 = vpop.f32.mrb[0].mxu0
  %v542 = vadd.f32 %v93, %v541
  %v543 = vpop.f32.mrb[0].mxu0
  %v544 = vpop.f32.mrb[0].mxu0
  %v545 = vadd.f32 %v93, %v544
  %v546 = vpop.f32.mrb[0].mxu0
  %547 = vmatprep.mubr.bf16.mxu0 0
  %548 = vmatmul.mubr.bf16.gmra.mrb[0].mxu0 %v234
  %v549 = vpop.f32.mrb[0].mxu0
  %v550 = vadd.f32 %v93, %v549
  %v551 = vpop.f32.mrb[0].mxu0
  %v552 = vpop.f32.mrb[0].mxu0
  %v553 = vadd.f32 %v93, %v552
  %v554 = vpop.f32.mrb[0].mxu0
  %555 = vmatprep.mubr.bf16.mxu0 0
  %556 = vmatmul.mubr.bf16.gmra.mrb[0].mxu0 %v235
  %v557 = vpop.f32.mrb[0].mxu0
  %v558 = vadd.f32 %v93, %v557
  %v559 = vpop.f32.mrb[0].mxu0
  %v560 = vpop.f32.mrb[0].mxu0
  %v561 = vadd.f32 %v93, %v560
  %v562 = vpop.f32.mrb[0].mxu0
  %563 = vmatprep.mubr.bf16.mxu0 0
  %564 = vmatmul.mubr.bf16.gmra.mrb[0].mxu0 %v236
  %v565 = vpop.f32.mrb[0].mxu0
  %v566 = vadd.f32 %v93, %v565
  %v567 = vpop.f32.mrb[0].mxu0
  %v568 = vpop.f32.mrb[0].mxu0
  %v569 = vadd.f32 %v93, %v568
  %v570 = vpop.f32.mrb[0].mxu0
  %571 = vmatprep.mubr.bf16.mxu0 0
  %572 = vmatmul.mubr.bf16.gmra.mrb[0].mxu0 %v237
  %v573 = vpop.f32.mrb[0].mxu0
  %v574 = vadd.f32 %v93, %v573
  %v575 = vpop.f32.mrb[0].mxu0
  %v576 = vpop.f32.mrb[0].mxu0
  %v577 = vpop.f32.mrb[0].mxu0
  %578 = vdwg.mxu0
  %v579 = vmax.f32 %v350, 0.0
  %v580 = vmax.f32 %v353, 0.0
  %v581 = vmax.f32 %v358, 0.0
  %v582 = vmax.f32 %v361, 0.0
  %v583 = vmax.f32 %v366, 0.0
  %v584 = vmax.f32 %v369, 0.0
  %v585 = vmax.f32 %v374, 0.0
  %v586 = vmax.f32 %v377, 0.0
  %v587 = vmax.f32 %v382, 0.0
  %v588 = vmax.f32 %v385, 0.0
  %v589 = vmax.f32 %v390, 0.0
  %v590 = vmax.f32 %v393, 0.0
  %v591 = vmax.f32 %v398, 0.0
  %v592 = vmax.f32 %v401, 0.0
  %v593 = vmax.f32 %v406, 0.0
  %v594 = vmax.f32 %v409, 0.0
  %v595 = vmax.f32 %v414, 0.0
  %v596 = vmax.f32 %v417, 0.0
  %v597 = vmax.f32 %v422, 0.0
  %v598 = vmax.f32 %v425, 0.0
  %v599 = vmax.f32 %v430, 0.0
  %v600 = vmax.f32 %v433, 0.0
  %v601 = vmax.f32 %v438, 0.0
  %v602 = vmax.f32 %v441, 0.0
  %v603 = vmax.f32 %v446, 0.0
  %v604 = vmax.f32 %v449, 0.0
  %v605 = vmax.f32 %v454, 0.0
  %v606 = vmax.f32 %v457, 0.0
  %v607 = vmax.f32 %v462, 0.0
  %v608 = vmax.f32 %v465, 0.0
  %v609 = vmax.f32 %v470, 0.0
  %v610 = vmax.f32 %v473, 0.0
  %v611 = vmax.f32 %v478, 0.0
  %v612 = vmax.f32 %v481, 0.0
  %v613 = vmax.f32 %v486, 0.0
  %v614 = vmax.f32 %v489, 0.0
  %v615 = vmax.f32 %v494, 0.0
  %v616 = vmax.f32 %v497, 0.0
  %v617 = vmax.f32 %v502, 0.0
  %v618 = vmax.f32 %v505, 0.0
  %v619 = vmax.f32 %v510, 0.0
  %v620 = vmax.f32 %v513, 0.0
  %v621 = vmax.f32 %v518, 0.0
  %v622 = vmax.f32 %v521, 0.0
  %v623 = vmax.f32 %v526, 0.0
  %v624 = vmax.f32 %v529, 0.0
  %v625 = vmax.f32 %v534, 0.0
  %v626 = vmax.f32 %v537, 0.0
  %v627 = vmax.f32 %v542, 0.0
  %v628 = vmax.f32 %v545, 0.0
  %v629 = vmax.f32 %v550, 0.0
  %v630 = vmax.f32 %v553, 0.0
  %v631 = vmax.f32 %v558, 0.0
  %v632 = vmax.f32 %v561, 0.0
  %v633 = vmax.f32 %v566, 0.0
  %v634 = vmax.f32 %v569, 0.0
  %v635 = vmax.f32 %v574, 0.0
  %v636 = vpack.c.bf16 %v580, %v579
  %v637 = vpack.c.bf16 %v582, %v581
  %v638 = vpack.c.bf16 %v584, %v583
  %v639 = vpack.c.bf16 %v586, %v585
  %v640 = vpack.c.bf16 %v588, %v587
  %v641 = vpack.c.bf16 %v590, %v589
  %v642 = vpack.c.bf16 %v592, %v591
  %v643 = vpack.c.bf16 %v594, %v593
  %v644 = vpack.c.bf16 %v596, %v595
  %v645 = vpack.c.bf16 %v598, %v597
  %v646 = vpack.c.bf16 %v600, %v599
  %v647 = vpack.c.bf16 %v602, %v601
  %v648 = vpack.c.bf16 %v604, %v603
  %v649 = vpack.c.bf16 %v606, %v605
  %v650 = vpack.c.bf16 %v608, %v607
  %v651 = vpack.c.bf16 %v610, %v609
  %v652 = vpack.c.bf16 %v612, %v611
  %v653 = vpack.c.bf16 %v614, %v613
  %v654 = vpack.c.bf16 %v616, %v615
  %v655 = vpack.c.bf16 %v618, %v617
  %v656 = vpack.c.bf16 %v620, %v619
  %v657 = vpack.c.bf16 %v622, %v621
  %v658 = vpack.c.bf16 %v624, %v623
  %v659 = vpack.c.bf16 %v626, %v625
  %v660 = vpack.c.bf16 %v628, %v627
  %v661 = vpack.c.bf16 %v630, %v629
  %v662 = vpack.c.bf16 %v632, %v631
  %v663 = vpack.c.bf16 %v634, %v633
  %v664 = vpack.c.bf16 %v635, %v635
  %v694 = vunpack.c.l.b16 %v636
  %v695 = vunpack.c.h.b16 %v636
  %v696 = vunpack.c.l.b16 %v637
  %v697 = vunpack.c.h.b16 %v637
  %v698 = vunpack.c.l.b16 %v638
  %v699 = vunpack.c.h.b16 %v638
  %v700 = vunpack.c.l.b16 %v639
  %v701 = vunpack.c.h.b16 %v639
  %v702 = vunpack.c.l.b16 %v640
  %v703 = vunpack.c.h.b16 %v640
  %v704 = vunpack.c.l.b16 %v641
  %v705 = vunpack.c.h.b16 %v641
  %v706 = vunpack.c.l.b16 %v642
  %v707 = vunpack.c.h.b16 %v642
  %v708 = vunpack.c.l.b16 %v643
  %v709 = vunpack.c.h.b16 %v643
  %v710 = vunpack.c.l.b16 %v644
  %v711 = vunpack.c.h.b16 %v644
  %v712 = vunpack.c.l.b16 %v645
  %v713 = vunpack.c.h.b16 %v645
  %v714 = vunpack.c.l.b16 %v646
  %v715 = vunpack.c.h.b16 %v646
  %v716 = vunpack.c.l.b16 %v647
  %v717 = vunpack.c.h.b16 %v647
  %v718 = vunpack.c.l.b16 %v648
  %v719 = vunpack.c.h.b16 %v648
  %v720 = vunpack.c.l.b16 %v649
  %v721 = vunpack.c.h.b16 %v649
  %v722 = vunpack.c.l.b16 %v650
  %v723 = vunpack.c.h.b16 %v650
  %v724 = vunpack.c.l.b16 %v651
  %v725 = vunpack.c.h.b16 %v651
  %v726 = vunpack.c.l.b16 %v652
  %v727 = vunpack.c.h.b16 %v652
  %v728 = vunpack.c.l.b16 %v653
  %v729 = vunpack.c.h.b16 %v653
  %v730 = vunpack.c.l.b16 %v654
  %v731 = vunpack.c.h.b16 %v654
  %v732 = vunpack.c.l.b16 %v655
  %v733 = vunpack.c.h.b16 %v655
  %v734 = vunpack.c.l.b16 %v656
  %v735 = vunpack.c.h.b16 %v656
  %v736 = vunpack.c.l.b16 %v657
  %v737 = vunpack.c.h.b16 %v657
  %v738 = vunpack.c.l.b16 %v658
  %v739 = vunpack.c.h.b16 %v658
  %v740 = vunpack.c.l.b16 %v659
  %v741 = vunpack.c.h.b16 %v659
  %v742 = vunpack.c.l.b16 %v660
  %v743 = vunpack.c.h.b16 %v660
  %v744 = vunpack.c.l.b16 %v661
  %v745 = vunpack.c.h.b16 %v661
  %v746 = vunpack.c.l.b16 %v662
  %v747 = vunpack.c.h.b16 %v662
  %v748 = vunpack.c.l.b16 %v663
  %v749 = vunpack.c.h.b16 %v663
  %v750 = vunpack.c.l.b16 %v664
  %v751 = vpack.c.b16 %v694, %v694
  %v752 = vpack.c.b16 %v695, %v695
  %v753 = vpack.c.b16 %v696, %v696
  %v754 = vpack.c.b16 %v697, %v697
  %v755 = vpack.c.b16 %v698, %v698
  %v756 = vpack.c.b16 %v699, %v699
  %v757 = vpack.c.b16 %v700, %v700
  %v758 = vpack.c.b16 %v701, %v701
  %v759 = vpack.c.b16 %v702, %v702
  %v760 = vpack.c.b16 %v703, %v703
  %v761 = vpack.c.b16 %v704, %v704
  %v762 = vpack.c.b16 %v705, %v705
  %v763 = vpack.c.b16 %v706, %v706
  %v764 = vpack.c.b16 %v707, %v707
  %v765 = vpack.c.b16 %v708, %v708
  %v766 = vpack.c.b16 %v709, %v709
  %v767 = vpack.c.b16 %v710, %v710
  %v768 = vpack.c.b16 %v711, %v711
  %v769 = vpack.c.b16 %v712, %v712
  %v770 = vpack.c.b16 %v713, %v713
  %v771 = vpack.c.b16 %v714, %v714
  %v772 = vpack.c.b16 %v715, %v715
  %v773 = vpack.c.b16 %v716, %v716
  %v774 = vpack.c.b16 %v717, %v717
  %v775 = vpack.c.b16 %v718, %v718
  %v776 = vpack.c.b16 %v719, %v719
  %v777 = vpack.c.b16 %v720, %v720
  %v778 = vpack.c.b16 %v721, %v721
  %v779 = vpack.c.b16 %v722, %v722
  %v780 = vpack.c.b16 %v723, %v723
  %v781 = vpack.c.b16 %v724, %v724
  %v782 = vpack.c.b16 %v725, %v725
  %v783 = vpack.c.b16 %v726, %v726
  %v784 = vpack.c.b16 %v727, %v727
  %v785 = vpack.c.b16 %v728, %v728
  %v786 = vpack.c.b16 %v729, %v729
  %v787 = vpack.c.b16 %v730, %v730
  %v788 = vpack.c.b16 %v731, %v731
  %v789 = vpack.c.b16 %v732, %v732
  %v790 = vpack.c.b16 %v733, %v733
  %v791 = vpack.c.b16 %v734, %v734
  %v792 = vpack.c.b16 %v735, %v735
  %v793 = vpack.c.b16 %v736, %v736
  %v794 = vpack.c.b16 %v737, %v737
  %v795 = vpack.c.b16 %v738, %v738
  %v796 = vpack.c.b16 %v739, %v739
  %v797 = vpack.c.b16 %v740, %v740
  %v798 = vpack.c.b16 %v741, %v741
  %v799 = vpack.c.b16 %v742, %v742
  %v800 = vpack.c.b16 %v743, %v743
  %v801 = vpack.c.b16 %v744, %v744
  %v802 = vpack.c.b16 %v745, %v745
  %v803 = vpack.c.b16 %v746, %v746
  %v804 = vpack.c.b16 %v747, %v747
  %v805 = vpack.c.b16 %v748, %v748
  %v806 = vpack.c.b16 %v749, %v749
  %v807 = vpack.c.b16 %v750, %v750
  %865 = vst [vmem:[%s3] sm:$0xf] %v751
  %866 = vst [vmem:[%s3 + $0x4] sm:$0xf] %v752
  %867 = vst [vmem:[%s3 + $0x8] sm:$0xf] %v753
  %868 = vst [vmem:[%s3 + $0xc] sm:$0xf] %v754
  %869 = vst [vmem:[%s3 + $0x10] sm:$0xf] %v755
  %870 = vst [vmem:[%s3 + $0x14] sm:$0xf] %v756
  %871 = vst [vmem:[%s3 + $0x18] sm:$0xf] %v757
  %872 = vst [vmem:[%s3 + $0x1c] sm:$0xf] %v758
  %873 = vst [vmem:[%s3 + $0x20] sm:$0xf] %v759
  %874 = vst [vmem:[%s3 + $0x24] sm:$0xf] %v760
  %875 = vst [vmem:[%s3 + $0x28] sm:$0xf] %v761
  %876 = vst [vmem:[%s3 + $0x2c] sm:$0xf] %v762
  %877 = vst [vmem:[%s3 + $0x30] sm:$0xf] %v763
  %878 = vst [vmem:[%s3 + $0x34] sm:$0xf] %v764
  %879 = vst [vmem:[%s3 + $0x38] sm:$0xf] %v765
  %880 = vst [vmem:[%s3 + $0x3c] sm:$0xf] %v766
  %881 = vst [vmem:[%s3 + $0x40] sm:$0xf] %v767
  %882 = vst [vmem:[%s3 + $0x44] sm:$0xf] %v768
  %883 = vst [vmem:[%s3 + $0x48] sm:$0xf] %v769
  %884 = vst [vmem:[%s3 + $0x4c] sm:$0xf] %v770
  %885 = vst [vmem:[%s3 + $0x50] sm:$0xf] %v771
  %886 = vst [vmem:[%s3 + $0x54] sm:$0xf] %v772
  %887 = vst [vmem:[%s3 + $0x58] sm:$0xf] %v773
  %888 = vst [vmem:[%s3 + $0x5c] sm:$0xf] %v774
  %889 = vst [vmem:[%s3 + $0x60] sm:$0xf] %v775
  %890 = vst [vmem:[%s3 + $0x64] sm:$0xf] %v776
  %891 = vst [vmem:[%s3 + $0x68] sm:$0xf] %v777
  %892 = vst [vmem:[%s3 + $0x6c] sm:$0xf] %v778
  %893 = vst [vmem:[%s3 + $0x70] sm:$0xf] %v779
  %894 = vst [vmem:[%s3 + $0x74] sm:$0xf] %v780
  %895 = vst [vmem:[%s3 + $0x78] sm:$0xf] %v781
  %896 = vst [vmem:[%s3 + $0x7c] sm:$0xf] %v782
  %897 = vst [vmem:[%s3 + $0x80] sm:$0xf] %v783
  %898 = vst [vmem:[%s3 + $0x84] sm:$0xf] %v784
  %899 = vst [vmem:[%s3 + $0x88] sm:$0xf] %v785
  %900 = vst [vmem:[%s3 + $0x8c] sm:$0xf] %v786
  %901 = vst [vmem:[%s3 + $0x90] sm:$0xf] %v787
  %902 = vst [vmem:[%s3 + $0x94] sm:$0xf] %v788
  %903 = vst [vmem:[%s3 + $0x98] sm:$0xf] %v789
  %904 = vst [vmem:[%s3 + $0x9c] sm:$0xf] %v790
  %905 = vst [vmem:[%s3 + $0xa0] sm:$0xf] %v791
  %906 = vst [vmem:[%s3 + $0xa4] sm:$0xf] %v792
  %907 = vst [vmem:[%s3 + $0xa8] sm:$0xf] %v793
  %908 = vst [vmem:[%s3 + $0xac] sm:$0xf] %v794
  %909 = vst [vmem:[%s3 + $0xb0] sm:$0xf] %v795
  %910 = vst [vmem:[%s3 + $0xb4] sm:$0xf] %v796
  %911 = vst [vmem:[%s3 + $0xb8] sm:$0xf] %v797
  %912 = vst [vmem:[%s3 + $0xbc] sm:$0xf] %v798
  %913 = vst [vmem:[%s3 + $0xc0] sm:$0xf] %v799
  %914 = vst [vmem:[%s3 + $0xc4] sm:$0xf] %v800
  %915 = vst [vmem:[%s3 + $0xc8] sm:$0xf] %v801
  %916 = vst [vmem:[%s3 + $0xcc] sm:$0xf] %v802
  %917 = vst [vmem:[%s3 + $0xd0] sm:$0xf] %v803
  %918 = vst [vmem:[%s3 + $0xd4] sm:$0xf] %v804
  %919 = vst [vmem:[%s3 + $0xd8] sm:$0xf] %v805
  %920 = vst [vmem:[%s3 + $0xdc] sm:$0xf] %v806
  %921 = vst [vmem:[%s3 + $0xe0] sm:$0x1] %v807
  // Predicated region
  $region14: #{modified_inception_forward.7} parent=0 // pred_check
    _
  $region15: #{modified_inception_forward.7} parent=0 // pred_check_branch
    %923 = sbr.rel (0) target = $region17
  $region16: #{modified_inception_forward.7} parent=0 // pred_region
    _
  $region17: #{modified_inception_forward.7} parent=0 // pred_fallthru
    _
  // Predicated region
  $region18: #{modified_inception_forward.7} parent=0 // pred_check
    _
  $region19: #{modified_inception_forward.7} parent=0 // pred_check_branch
    %925 = sbr.rel (0) target = $region21
  $region20: #{modified_inception_forward.7} parent=0 // pred_region
    _
  $region21: #{modified_inception_forward.7} parent=0 // pred_fallthru
    _

// kernel: modified_inception_forward.8
$region0: #{modified_inception_forward.8}
  #allocation0 [shape = 'u32[]', space=smem, size = 0x4, offset = 0x4, fixed_abs, tag = 'smem constant byte address 0x4 - core index']
  #allocation1 [shape = 'u32[144,128]{1,0:T(1,128)}', space=vmem, size = 0x12000, scoped, tag = 'internal scratch']
  %s0 = inlined_call_operand.vmem [shape: bf16[450,256], index: 0, kind: input, shape index: {}]
  %s1 = inlined_call_operand.vmem [shape: bf16[256,128], index: 1, kind: input, shape index: {}]
  %s2 = inlined_call_operand.vmem [shape: f32[1,128], index: 2, kind: input, shape index: {}]
  %s3 = inlined_call_operand.vmem [shape: bf16[450,128], index: 3, kind: output, shape index: {}]
  %s4 = sld [smem:[#allocation0]]
  $region22: #{modified_inception_forward.8} parent=0
    _
  %s6 = ssub.s32 1, %s4
  %s7 = scalar_select 0, %s6, %s4
  // Predicated region
  $region2: #{modified_inception_forward.8} parent=0 // pred_check
    _
  $region3: #{modified_inception_forward.8} parent=0 // pred_check_branch
    %9 = sbr.rel (0) target = $region5
  $region4: #{modified_inception_forward.8} parent=0 // pred_region
    _
  $region5: #{modified_inception_forward.8} parent=0 // pred_fallthru
    _
  // Predicated region
  $region6: #{modified_inception_forward.8} parent=0 // pred_check
    _
  $region7: #{modified_inception_forward.8} parent=0 // pred_check_branch
    %11 = sbr.rel (0) target = $region9
  $region8: #{modified_inception_forward.8} parent=0 // pred_region
    _
  $region9: #{modified_inception_forward.8} parent=0 // pred_fallthru
    _
  // Predicated region
  $region10: #{modified_inception_forward.8} parent=0 // pred_check
    _
  $region11: #{modified_inception_forward.8} parent=0 // pred_check_branch
    %13 = sbr.rel (0) target = $region13
  $region12: #{modified_inception_forward.8} parent=0 // pred_region
    _
  $region13: #{modified_inception_forward.8} parent=0 // pred_fallthru
    _
  %v15 = vld [vmem:[%s0] sm:$0xff]
  %v16 = vld [vmem:[%s0 + $0x8] sm:$0xff]
  %v17 = vld [vmem:[%s0 + $0x10] sm:$0xff]
  %v18 = vld [vmem:[%s0 + $0x18] sm:$0xff]
  %v19 = vld [vmem:[%s0 + $0x20] sm:$0xff]
  %v20 = vld [vmem:[%s0 + $0x28] sm:$0xff]
  %v21 = vld [vmem:[%s0 + $0x30] sm:$0xff]
  %v22 = vld [vmem:[%s0 + $0x38] sm:$0xff]
  %v23 = vld [vmem:[%s0 + $0x40] sm:$0xff]
  %v24 = vld [vmem:[%s0 + $0x48] sm:$0xff]
  %v25 = vld [vmem:[%s0 + $0x50] sm:$0xff]
  %v26 = vld [vmem:[%s0 + $0x58] sm:$0xff]
  %v27 = vld [vmem:[%s0 + $0x60] sm:$0xff]
  %v28 = vld [vmem:[%s0 + $0x68] sm:$0xff]
  %v29 = vld [vmem:[%s0 + $0x70] sm:$0xff]
  %v30 = vld [vmem:[%s0 + $0x78] sm:$0xff]
  %v31 = vld [vmem:[%s0 + $0x80] sm:$0xff]
  %v32 = vld [vmem:[%s0 + $0x88] sm:$0xff]
  %v33 = vld [vmem:[%s0 + $0x90] sm:$0xff]
  %v34 = vld [vmem:[%s0 + $0x98] sm:$0xff]
  %v35 = vld [vmem:[%s0 + $0xa0] sm:$0xff]
  %v36 = vld [vmem:[%s0 + $0xa8] sm:$0xff]
  %v37 = vld [vmem:[%s0 + $0xb0] sm:$0xff]
  %v38 = vld [vmem:[%s0 + $0xb8] sm:$0xff]
  %v39 = vld [vmem:[%s0 + $0xc0] sm:$0xff]
  %v40 = vld [vmem:[%s0 + $0xc8] sm:$0xff]
  %v41 = vld [vmem:[%s0 + $0xd0] sm:$0xff]
  %v42 = vld [vmem:[%s0 + $0xd8] sm:$0xff]
  %v43 = vld [vmem:[%s0 + $0xe0] sm:$0xff]
  %v44 = vld [vmem:[%s0 + $0xe8] sm:$0xff]
  %v45 = vld [vmem:[%s0 + $0xf0] sm:$0xff]
  %v46 = vld [vmem:[%s0 + $0xf8] sm:$0xff]
  %v47 = vld [vmem:[%s0 + $0x100] sm:$0xff]
  %v48 = vld [vmem:[%s0 + $0x108] sm:$0xff]
  %v49 = vld [vmem:[%s0 + $0x110] sm:$0xff]
  %v50 = vld [vmem:[%s0 + $0x118] sm:$0xff]
  %v51 = vld [vmem:[%s0 + $0x120] sm:$0xff]
  %v52 = vld [vmem:[%s0 + $0x128] sm:$0xff]
  %v53 = vld [vmem:[%s0 + $0x130] sm:$0xff]
  %v54 = vld [vmem:[%s0 + $0x138] sm:$0xff]
  %v55 = vld [vmem:[%s0 + $0x140] sm:$0xff]
  %v56 = vld [vmem:[%s0 + $0x148] sm:$0xff]
  %v57 = vld [vmem:[%s0 + $0x150] sm:$0xff]
  %v58 = vld [vmem:[%s0 + $0x158] sm:$0xff]
  %v59 = vld [vmem:[%s0 + $0x160] sm:$0xff]
  %v60 = vld [vmem:[%s0 + $0x168] sm:$0xff]
  %v61 = vld [vmem:[%s0 + $0x170] sm:$0xff]
  %v62 = vld [vmem:[%s0 + $0x178] sm:$0xff]
  %v63 = vld [vmem:[%s0 + $0x180] sm:$0xff]
  %v64 = vld [vmem:[%s0 + $0x188] sm:$0xff]
  %v65 = vld [vmem:[%s0 + $0x190] sm:$0xff]
  %v66 = vld [vmem:[%s0 + $0x198] sm:$0xff]
  %v67 = vld [vmem:[%s0 + $0x1a0] sm:$0xff]
  %v68 = vld [vmem:[%s0 + $0x1a8] sm:$0xff]
  %v69 = vld [vmem:[%s0 + $0x1b0] sm:$0xff]
  %v70 = vld [vmem:[%s0 + $0x1b8] sm:$0xff]
  %v71 = vld [vmem:[%s0 + $0x1c0] sm:$0x11]
  %v72 = vld [vmem:[%s1] sm:$0xf]
  %v73 = vld [vmem:[%s1 + $0x4] sm:$0xf]
  %v74 = vld [vmem:[%s1 + $0x8] sm:$0xf]
  %v75 = vld [vmem:[%s1 + $0xc] sm:$0xf]
  %v76 = vld [vmem:[%s1 + $0x10] sm:$0xf]
  %v77 = vld [vmem:[%s1 + $0x14] sm:$0xf]
  %v78 = vld [vmem:[%s1 + $0x18] sm:$0xf]
  %v79 = vld [vmem:[%s1 + $0x1c] sm:$0xf]
  %v80 = vld [vmem:[%s1 + $0x20] sm:$0xf]
  %v81 = vld [vmem:[%s1 + $0x24] sm:$0xf]
  %v82 = vld [vmem:[%s1 + $0x28] sm:$0xf]
  %v83 = vld [vmem:[%s1 + $0x2c] sm:$0xf]
  %v84 = vld [vmem:[%s1 + $0x30] sm:$0xf]
  %v85 = vld [vmem:[%s1 + $0x34] sm:$0xf]
  %v86 = vld [vmem:[%s1 + $0x38] sm:$0xf]
  %v87 = vld [vmem:[%s1 + $0x3c] sm:$0xf]
  %v88 = vld [vmem:[%s1 + $0x40] sm:$0xf]
  %v89 = vld [vmem:[%s1 + $0x44] sm:$0xf]
  %v90 = vld [vmem:[%s1 + $0x48] sm:$0xf]
  %v91 = vld [vmem:[%s1 + $0x4c] sm:$0xf]
  %v92 = vld [vmem:[%s1 + $0x50] sm:$0xf]
  %v93 = vld [vmem:[%s1 + $0x54] sm:$0xf]
  %v94 = vld [vmem:[%s1 + $0x58] sm:$0xf]
  %v95 = vld [vmem:[%s1 + $0x5c] sm:$0xf]
  %v96 = vld [vmem:[%s1 + $0x60] sm:$0xf]
  %v97 = vld [vmem:[%s1 + $0x64] sm:$0xf]
  %v98 = vld [vmem:[%s1 + $0x68] sm:$0xf]
  %v99 = vld [vmem:[%s1 + $0x6c] sm:$0xf]
  %v100 = vld [vmem:[%s1 + $0x70] sm:$0xf]
  %v101 = vld [vmem:[%s1 + $0x74] sm:$0xf]
  %v102 = vld [vmem:[%s1 + $0x78] sm:$0xf]
  %v103 = vld [vmem:[%s1 + $0x7c] sm:$0xf]
  %v104 = vld [vmem:[%s2] sm:$0x1]
  %v106 = vlaneseq
  %v107 = vshrl.u32 %v106, 7
  %v108 = vsub.s32 0, %v107
  %v109 = vrot.slane %v104, %v108
  %v168 = vunpack.c.l.b16 %v15
  %v169 = vunpack.c.h.b16 %v15
  %v170 = vunpack.c.l.b16 %v16
  %v171 = vunpack.c.h.b16 %v16
  %v172 = vunpack.c.l.b16 %v17
  %v173 = vunpack.c.h.b16 %v17
  %v174 = vunpack.c.l.b16 %v18
  %v175 = vunpack.c.h.b16 %v18
  %v176 = vunpack.c.l.b16 %v19
  %v177 = vunpack.c.h.b16 %v19
  %v178 = vunpack.c.l.b16 %v20
  %v179 = vunpack.c.h.b16 %v20
  %v180 = vunpack.c.l.b16 %v21
  %v181 = vunpack.c.h.b16 %v21
  %v182 = vunpack.c.l.b16 %v22
  %v183 = vunpack.c.h.b16 %v22
  %v184 = vunpack.c.l.b16 %v23
  %v185 = vunpack.c.h.b16 %v23
  %v186 = vunpack.c.l.b16 %v24
  %v187 = vunpack.c.h.b16 %v24
  %v188 = vunpack.c.l.b16 %v25
  %v189 = vunpack.c.h.b16 %v25
  %v190 = vunpack.c.l.b16 %v26
  %v191 = vunpack.c.h.b16 %v26
  %v192 = vunpack.c.l.b16 %v27
  %v193 = vunpack.c.h.b16 %v27
  %v194 = vunpack.c.l.b16 %v28
  %v195 = vunpack.c.h.b16 %v28
  %v196 = vunpack.c.l.b16 %v29
  %v197 = vunpack.c.h.b16 %v29
  %v198 = vunpack.c.l.b16 %v30
  %v199 = vunpack.c.h.b16 %v30
  %v200 = vunpack.c.l.b16 %v31
  %v201 = vunpack.c.h.b16 %v31
  %v202 = vunpack.c.l.b16 %v32
  %v203 = vunpack.c.h.b16 %v32
  %v204 = vunpack.c.l.b16 %v33
  %v205 = vunpack.c.h.b16 %v33
  %v206 = vunpack.c.l.b16 %v34
  %v207 = vunpack.c.h.b16 %v34
  %v208 = vunpack.c.l.b16 %v35
  %v209 = vunpack.c.h.b16 %v35
  %v210 = vunpack.c.l.b16 %v36
  %v211 = vunpack.c.h.b16 %v36
  %v212 = vunpack.c.l.b16 %v37
  %v213 = vunpack.c.h.b16 %v37
  %v214 = vunpack.c.l.b16 %v38
  %v215 = vunpack.c.h.b16 %v38
  %v216 = vunpack.c.l.b16 %v39
  %v217 = vunpack.c.h.b16 %v39
  %v218 = vunpack.c.l.b16 %v40
  %v219 = vunpack.c.h.b16 %v40
  %v220 = vunpack.c.l.b16 %v41
  %v221 = vunpack.c.h.b16 %v41
  %v222 = vunpack.c.l.b16 %v42
  %v223 = vunpack.c.h.b16 %v42
  %v224 = vunpack.c.l.b16 %v43
  %v225 = vunpack.c.h.b16 %v43
  %v226 = vunpack.c.l.b16 %v44
  %v227 = vunpack.c.h.b16 %v44
  %v228 = vunpack.c.l.b16 %v45
  %v229 = vunpack.c.h.b16 %v45
  %v230 = vunpack.c.l.b16 %v46
  %v231 = vunpack.c.h.b16 %v46
  %v232 = vunpack.c.l.b16 %v47
  %v233 = vunpack.c.h.b16 %v47
  %v234 = vunpack.c.l.b16 %v48
  %v235 = vunpack.c.h.b16 %v48
  %v236 = vunpack.c.l.b16 %v49
  %v237 = vunpack.c.h.b16 %v49
  %v238 = vunpack.c.l.b16 %v50
  %v239 = vunpack.c.h.b16 %v50
  %v240 = vunpack.c.l.b16 %v51
  %v241 = vunpack.c.h.b16 %v51
  %v242 = vunpack.c.l.b16 %v52
  %v243 = vunpack.c.h.b16 %v52
  %v244 = vunpack.c.l.b16 %v53
  %v245 = vunpack.c.h.b16 %v53
  %v246 = vunpack.c.l.b16 %v54
  %v247 = vunpack.c.h.b16 %v54
  %v248 = vunpack.c.l.b16 %v55
  %v249 = vunpack.c.h.b16 %v55
  %v250 = vunpack.c.l.b16 %v56
  %v251 = vunpack.c.h.b16 %v56
  %v252 = vunpack.c.l.b16 %v57
  %v253 = vunpack.c.h.b16 %v57
  %v254 = vunpack.c.l.b16 %v58
  %v255 = vunpack.c.h.b16 %v58
  %v256 = vunpack.c.l.b16 %v59
  %v257 = vunpack.c.h.b16 %v59
  %v258 = vunpack.c.l.b16 %v60
  %v259 = vunpack.c.h.b16 %v60
  %v260 = vunpack.c.l.b16 %v61
  %v261 = vunpack.c.h.b16 %v61
  %v262 = vunpack.c.l.b16 %v62
  %v263 = vunpack.c.h.b16 %v62
  %v264 = vunpack.c.l.b16 %v63
  %v265 = vunpack.c.h.b16 %v63
  %v266 = vunpack.c.l.b16 %v64
  %v267 = vunpack.c.h.b16 %v64
  %v268 = vunpack.c.l.b16 %v65
  %v269 = vunpack.c.h.b16 %v65
  %v270 = vunpack.c.l.b16 %v66
  %v271 = vunpack.c.h.b16 %v66
  %v272 = vunpack.c.l.b16 %v67
  %v273 = vunpack.c.h.b16 %v67
  %v274 = vunpack.c.l.b16 %v68
  %v275 = vunpack.c.h.b16 %v68
  %v276 = vunpack.c.l.b16 %v69
  %v277 = vunpack.c.h.b16 %v69
  %v278 = vunpack.c.l.b16 %v70
  %v279 = vunpack.c.h.b16 %v70
  %v280 = vunpack.c.l.b16 %v71
  %v281 = vunpack.c.h.b16 %v71
  %v282 = vpack.c.b16 %v170, %v168
  %v283 = vpack.c.b16 %v171, %v169
  %v284 = vpack.c.b16 %v174, %v172
  %v285 = vpack.c.b16 %v175, %v173
  %v286 = vpack.c.b16 %v178, %v176
  %v287 = vpack.c.b16 %v179, %v177
  %v288 = vpack.c.b16 %v182, %v180
  %v289 = vpack.c.b16 %v183, %v181
  %v290 = vpack.c.b16 %v186, %v184
  %v291 = vpack.c.b16 %v187, %v185
  %v292 = vpack.c.b16 %v190, %v188
  %v293 = vpack.c.b16 %v191, %v189
  %v294 = vpack.c.b16 %v194, %v192
  %v295 = vpack.c.b16 %v195, %v193
  %v296 = vpack.c.b16 %v198, %v196
  %v297 = vpack.c.b16 %v199, %v197
  %v298 = vpack.c.b16 %v202, %v200
  %v299 = vpack.c.b16 %v203, %v201
  %v300 = vpack.c.b16 %v206, %v204
  %v301 = vpack.c.b16 %v207, %v205
  %v302 = vpack.c.b16 %v210, %v208
  %v303 = vpack.c.b16 %v211, %v209
  %v304 = vpack.c.b16 %v214, %v212
  %v305 = vpack.c.b16 %v215, %v213
  %v306 = vpack.c.b16 %v218, %v216
  %v307 = vpack.c.b16 %v219, %v217
  %v308 = vpack.c.b16 %v222, %v220
  %v309 = vpack.c.b16 %v223, %v221
  %v310 = vpack.c.b16 %v226, %v224
  %v311 = vpack.c.b16 %v227, %v225
  %v312 = vpack.c.b16 %v230, %v228
  %v313 = vpack.c.b16 %v231, %v229
  %v314 = vpack.c.b16 %v234, %v232
  %v315 = vpack.c.b16 %v235, %v233
  %v316 = vpack.c.b16 %v238, %v236
  %v317 = vpack.c.b16 %v239, %v237
  %v318 = vpack.c.b16 %v242, %v240
  %v319 = vpack.c.b16 %v243, %v241
  %v320 = vpack.c.b16 %v246, %v244
  %v321 = vpack.c.b16 %v247, %v245
  %v322 = vpack.c.b16 %v250, %v248
  %v323 = vpack.c.b16 %v251, %v249
  %v324 = vpack.c.b16 %v254, %v252
  %v325 = vpack.c.b16 %v255, %v253
  %v326 = vpack.c.b16 %v258, %v256
  %v327 = vpack.c.b16 %v259, %v257
  %v328 = vpack.c.b16 %v262, %v260
  %v329 = vpack.c.b16 %v263, %v261
  %v330 = vpack.c.b16 %v266, %v264
  %v331 = vpack.c.b16 %v267, %v265
  %v332 = vpack.c.b16 %v270, %v268
  %v333 = vpack.c.b16 %v271, %v269
  %v334 = vpack.c.b16 %v274, %v272
  %v335 = vpack.c.b16 %v275, %v273
  %v336 = vpack.c.b16 %v278, %v276
  %v337 = vpack.c.b16 %v279, %v277
  %v338 = vpack.c.b16 %v280, %v280
  %v339 = vpack.c.b16 %v281, %v281
  %v430 = vunpack.c.l.b16 %v72
  %v431 = vunpack.c.l.b16 %v73
  %v432 = vunpack.c.l.b16 %v74
  %v433 = vunpack.c.l.b16 %v75
  %v434 = vunpack.c.l.b16 %v76
  %v435 = vunpack.c.l.b16 %v77
  %v436 = vunpack.c.l.b16 %v78
  %v437 = vunpack.c.l.b16 %v79
  %v438 = vunpack.c.l.b16 %v80
  %v439 = vunpack.c.l.b16 %v81
  %v440 = vunpack.c.l.b16 %v82
  %v441 = vunpack.c.l.b16 %v83
  %v442 = vunpack.c.l.b16 %v84
  %v443 = vunpack.c.l.b16 %v85
  %v444 = vunpack.c.l.b16 %v86
  %v445 = vunpack.c.l.b16 %v87
  %v446 = vunpack.c.l.b16 %v88
  %v447 = vunpack.c.l.b16 %v89
  %v448 = vunpack.c.l.b16 %v90
  %v449 = vunpack.c.l.b16 %v91
  %v450 = vunpack.c.l.b16 %v92
  %v451 = vunpack.c.l.b16 %v93
  %v452 = vunpack.c.l.b16 %v94
  %v453 = vunpack.c.l.b16 %v95
  %v454 = vunpack.c.l.b16 %v96
  %v455 = vunpack.c.l.b16 %v97
  %v456 = vunpack.c.l.b16 %v98
  %v457 = vunpack.c.l.b16 %v99
  %v458 = vunpack.c.l.b16 %v100
  %v459 = vunpack.c.l.b16 %v101
  %v460 = vunpack.c.l.b16 %v102
  %v461 = vunpack.c.l.b16 %v103
  %v462 = vpack.c.b16 %v431, %v430
  %v463 = vpack.c.b16 %v433, %v432
  %v464 = vpack.c.b16 %v435, %v434
  %v465 = vpack.c.b16 %v437, %v436
  %v466 = vpack.c.b16 %v439, %v438
  %v467 = vpack.c.b16 %v441, %v440
  %v468 = vpack.c.b16 %v443, %v442
  %v469 = vpack.c.b16 %v445, %v444
  %v470 = vpack.c.b16 %v447, %v446
  %v471 = vpack.c.b16 %v449, %v448
  %v472 = vpack.c.b16 %v451, %v450
  %v473 = vpack.c.b16 %v453, %v452
  %v474 = vpack.c.b16 %v455, %v454
  %v475 = vpack.c.b16 %v457, %v456
  %v476 = vpack.c.b16 %v459, %v458
  %v477 = vpack.c.b16 %v461, %v460
  %494 = vmatprep.subr.bf16.mxu0 0
  %495 = vmatpush1.bf16.msra.mxu0 %v462
  %496 = vmatprep.subr.bf16.mxu0 0
  %497 = vmatpush1.bf16.msra.mxu0 %v463
  %498 = vmatprep.subr.bf16.mxu0 0
  %499 = vmatpush1.bf16.msra.mxu0 %v464
  %500 = vmatprep.subr.bf16.mxu0 0
  %501 = vmatpush1.bf16.msra.mxu0 %v465
  %502 = vmatprep.subr.bf16.mxu0 0
  %503 = vmatpush1.bf16.msra.mxu0 %v466
  %504 = vmatprep.subr.bf16.mxu0 0
  %505 = vmatpush1.bf16.msra.mxu0 %v467
  %506 = vmatprep.subr.bf16.mxu0 0
  %507 = vmatpush1.bf16.msra.mxu0 %v468
  %508 = vmatprep.subr.bf16.mxu0 0
  %509 = vmatpush1.bf16.msra.mxu0 %v469
  %510 = vmatprep.subr.bf16.mxu0 0
  %511 = vmatpush1.bf16.msra.mxu0 %v470
  %512 = vmatprep.subr.bf16.mxu0 0
  %513 = vmatpush1.bf16.msra.mxu0 %v471
  %514 = vmatprep.subr.bf16.mxu0 0
  %515 = vmatpush1.bf16.msra.mxu0 %v472
  %516 = vmatprep.subr.bf16.mxu0 0
  %517 = vmatpush1.bf16.msra.mxu0 %v473
  %518 = vmatprep.subr.bf16.mxu0 0
  %519 = vmatpush1.bf16.msra.mxu0 %v474
  %520 = vmatprep.subr.bf16.mxu0 0
  %521 = vmatpush1.bf16.msra.mxu0 %v475
  %522 = vmatprep.subr.bf16.mxu0 0
  %523 = vmatpush1.bf16.msra.mxu0 %v476
  %524 = vmatprep.subr.bf16.mxu0 0
  %525 = vmatpush1.bf16.msra.mxu0 %v477
  %526 = vmatprep.mubr.bf16.mxu0 %v283
  %527 = vmatmul.mubr.bf16.gmra.mrb[0].mxu0 %v282
  %v528 = vpop.f32.mrb[0].mxu0
  %v529 = vadd.f32 %v109, %v528
  %v530 = vpop.f32.mrb[0].mxu0
  %v531 = vpop.f32.mrb[0].mxu0
  %v532 = vadd.f32 %v109, %v531
  %v533 = vpop.f32.mrb[0].mxu0
  %534 = vmatprep.mubr.bf16.mxu0 %v285
  %535 = vmatmul.mubr.bf16.gmra.mrb[0].mxu0 %v284
  %v536 = vpop.f32.mrb[0].mxu0
  %v537 = vadd.f32 %v109, %v536
  %v538 = vpop.f32.mrb[0].mxu0
  %v539 = vpop.f32.mrb[0].mxu0
  %v540 = vadd.f32 %v109, %v539
  %v541 = vpop.f32.mrb[0].mxu0
  %542 = vmatprep.mubr.bf16.mxu0 %v287
  %543 = vmatmul.mubr.bf16.gmra.mrb[0].mxu0 %v286
  %v544 = vpop.f32.mrb[0].mxu0
  %v545 = vadd.f32 %v109, %v544
  %v546 = vpop.f32.mrb[0].mxu0
  %v547 = vpop.f32.mrb[0].mxu0
  %v548 = vadd.f32 %v109, %v547
  %v549 = vpop.f32.mrb[0].mxu0
  %550 = vmatprep.mubr.bf16.mxu0 %v289
  %551 = vmatmul.mubr.bf16.gmra.mrb[0].mxu0 %v288
  %v552 = vpop.f32.mrb[0].mxu0
  %v553 = vadd.f32 %v109, %v552
  %v554 = vpop.f32.mrb[0].mxu0
  %v555 = vpop.f32.mrb[0].mxu0
  %v556 = vadd.f32 %v109, %v555
  %v557 = vpop.f32.mrb[0].mxu0
  %558 = vmatprep.mubr.bf16.mxu0 %v291
  %559 = vmatmul.mubr.bf16.gmra.mrb[0].mxu0 %v290
  %v560 = vpop.f32.mrb[0].mxu0
  %v561 = vadd.f32 %v109, %v560
  %v562 = vpop.f32.mrb[0].mxu0
  %v563 = vpop.f32.mrb[0].mxu0
  %v564 = vadd.f32 %v109, %v563
  %v565 = vpop.f32.mrb[0].mxu0
  %566 = vmatprep.mubr.bf16.mxu0 %v293
  %567 = vmatmul.mubr.bf16.gmra.mrb[0].mxu0 %v292
  %v568 = vpop.f32.mrb[0].mxu0
  %v569 = vadd.f32 %v109, %v568
  %v570 = vpop.f32.mrb[0].mxu0
  %v571 = vpop.f32.mrb[0].mxu0
  %v572 = vadd.f32 %v109, %v571
  %v573 = vpop.f32.mrb[0].mxu0
  %574 = vmatprep.mubr.bf16.mxu0 %v295
  %575 = vmatmul.mubr.bf16.gmra.mrb[0].mxu0 %v294
  %v576 = vpop.f32.mrb[0].mxu0
  %v577 = vadd.f32 %v109, %v576
  %v578 = vpop.f32.mrb[0].mxu0
  %v579 = vpop.f32.mrb[0].mxu0
  %v580 = vadd.f32 %v109, %v579
  %v581 = vpop.f32.mrb[0].mxu0
  %582 = vmatprep.mubr.bf16.mxu0 %v297
  %583 = vmatmul.mubr.bf16.gmra.mrb[0].mxu0 %v296
  %v584 = vpop.f32.mrb[0].mxu0
  %v585 = vadd.f32 %v109, %v584
  %v586 = vpop.f32.mrb[0].mxu0
  %v587 = vpop.f32.mrb[0].mxu0
  %v588 = vadd.f32 %v109, %v587
  %v589 = vpop.f32.mrb[0].mxu0
  %590 = vmatprep.mubr.bf16.mxu0 %v299
  %591 = vmatmul.mubr.bf16.gmra.mrb[0].mxu0 %v298
  %v592 = vpop.f32.mrb[0].mxu0
  %v593 = vadd.f32 %v109, %v592
  %v594 = vpop.f32.mrb[0].mxu0
  %v595 = vpop.f32.mrb[0].mxu0
  %v596 = vadd.f32 %v109, %v595
  %v597 = vpop.f32.mrb[0].mxu0
  %598 = vmatprep.mubr.bf16.mxu0 %v301
  %599 = vmatmul.mubr.bf16.gmra.mrb[0].mxu0 %v300
  %v600 = vpop.f32.mrb[0].mxu0
  %v601 = vadd.f32 %v109, %v600
  %v602 = vpop.f32.mrb[0].mxu0
  %v603 = vpop.f32.mrb[0].mxu0
  %v604 = vadd.f32 %v109, %v603
  %v605 = vpop.f32.mrb[0].mxu0
  %606 = vmatprep.mubr.bf16.mxu0 %v303
  %607 = vmatmul.mubr.bf16.gmra.mrb[0].mxu0 %v302
  %v608 = vpop.f32.mrb[0].mxu0
  %v609 = vadd.f32 %v109, %v608
  %v610 = vpop.f32.mrb[0].mxu0
  %v611 = vpop.f32.mrb[0].mxu0
  %v612 = vadd.f32 %v109, %v611
  %v613 = vpop.f32.mrb[0].mxu0
  %614 = vmatprep.mubr.bf16.mxu0 %v305
  %615 = vmatmul.mubr.bf16.gmra.mrb[0].mxu0 %v304
  %v616 = vpop.f32.mrb[0].mxu0
  %v617 = vadd.f32 %v109, %v616
  %v618 = vpop.f32.mrb[0].mxu0
  %v619 = vpop.f32.mrb[0].mxu0
  %v620 = vadd.f32 %v109, %v619
  %v621 = vpop.f32.mrb[0].mxu0
  %622 = vmatprep.mubr.bf16.mxu0 %v307
  %623 = vmatmul.mubr.bf16.gmra.mrb[0].mxu0 %v306
  %v624 = vpop.f32.mrb[0].mxu0
  %v625 = vadd.f32 %v109, %v624
  %v626 = vpop.f32.mrb[0].mxu0
  %v627 = vpop.f32.mrb[0].mxu0
  %v628 = vadd.f32 %v109, %v627
  %v629 = vpop.f32.mrb[0].mxu0
  %630 = vmatprep.mubr.bf16.mxu0 %v309
  %631 = vmatmul.mubr.bf16.gmra.mrb[0].mxu0 %v308
  %v632 = vpop.f32.mrb[0].mxu0
  %v633 = vadd.f32 %v109, %v632
  %v634 = vpop.f32.mrb[0].mxu0
  %v635 = vpop.f32.mrb[0].mxu0
  %v636 = vadd.f32 %v109, %v635
  %v637 = vpop.f32.mrb[0].mxu0
  %638 = vmatprep.mubr.bf16.mxu0 %v311
  %639 = vmatmul.mubr.bf16.gmra.mrb[0].mxu0 %v310
  %v640 = vpop.f32.mrb[0].mxu0
  %v641 = vadd.f32 %v109, %v640
  %v642 = vpop.f32.mrb[0].mxu0
  %v643 = vpop.f32.mrb[0].mxu0
  %v644 = vadd.f32 %v109, %v643
  %v645 = vpop.f32.mrb[0].mxu0
  %646 = vmatprep.mubr.bf16.mxu0 %v313
  %647 = vmatmul.mubr.bf16.gmra.mrb[0].mxu0 %v312
  %v648 = vpop.f32.mrb[0].mxu0
  %v649 = vadd.f32 %v109, %v648
  %v650 = vpop.f32.mrb[0].mxu0
  %v651 = vpop.f32.mrb[0].mxu0
  %v652 = vadd.f32 %v109, %v651
  %v653 = vpop.f32.mrb[0].mxu0
  %654 = vmatprep.mubr.bf16.mxu0 %v315
  %655 = vmatmul.mubr.bf16.gmra.mrb[0].mxu0 %v314
  %v656 = vpop.f32.mrb[0].mxu0
  %v657 = vadd.f32 %v109, %v656
  %v658 = vpop.f32.mrb[0].mxu0
  %v659 = vpop.f32.mrb[0].mxu0
  %v660 = vadd.f32 %v109, %v659
  %v661 = vpop.f32.mrb[0].mxu0
  %662 = vmatprep.mubr.bf16.mxu0 %v317
  %663 = vmatmul.mubr.bf16.gmra.mrb[0].mxu0 %v316
  %v664 = vpop.f32.mrb[0].mxu0
  %v665 = vadd.f32 %v109, %v664
  %v666 = vpop.f32.mrb[0].mxu0
  %v667 = vpop.f32.mrb[0].mxu0
  %v668 = vadd.f32 %v109, %v667
  %v669 = vpop.f32.mrb[0].mxu0
  %670 = vmatprep.mubr.bf16.mxu0 %v319
  %671 = vmatmul.mubr.bf16.gmra.mrb[0].mxu0 %v318
  %v672 = vpop.f32.mrb[0].mxu0
  %v673 = vadd.f32 %v109, %v672
  %v674 = vpop.f32.mrb[0].mxu0
  %v675 = vpop.f32.mrb[0].mxu0
  %v676 = vadd.f32 %v109, %v675
  %v677 = vpop.f32.mrb[0].mxu0
  %678 = vmatprep.mubr.bf16.mxu0 %v321
  %679 = vmatmul.mubr.bf16.gmra.mrb[0].mxu0 %v320
  %v680 = vpop.f32.mrb[0].mxu0
  %v681 = vadd.f32 %v109, %v680
  %v682 = vpop.f32.mrb[0].mxu0
  %v683 = vpop.f32.mrb[0].mxu0
  %v684 = vadd.f32 %v109, %v683
  %v685 = vpop.f32.mrb[0].mxu0
  %686 = vmatprep.mubr.bf16.mxu0 %v323
  %687 = vmatmul.mubr.bf16.gmra.mrb[0].mxu0 %v322
  %v688 = vpop.f32.mrb[0].mxu0
  %v689 = vadd.f32 %v109, %v688
  %v690 = vpop.f32.mrb[0].mxu0
  %v691 = vpop.f32.mrb[0].mxu0
  %v692 = vadd.f32 %v109, %v691
  %v693 = vpop.f32.mrb[0].mxu0
  %694 = vmatprep.mubr.bf16.mxu0 %v325
  %695 = vmatmul.mubr.bf16.gmra.mrb[0].mxu0 %v324
  %v696 = vpop.f32.mrb[0].mxu0
  %v697 = vadd.f32 %v109, %v696
  %v698 = vpop.f32.mrb[0].mxu0
  %v699 = vpop.f32.mrb[0].mxu0
  %v700 = vadd.f32 %v109, %v699
  %v701 = vpop.f32.mrb[0].mxu0
  %702 = vmatprep.mubr.bf16.mxu0 %v327
  %703 = vmatmul.mubr.bf16.gmra.mrb[0].mxu0 %v326
  %v704 = vpop.f32.mrb[0].mxu0
  %v705 = vadd.f32 %v109, %v704
  %v706 = vpop.f32.mrb[0].mxu0
  %v707 = vpop.f32.mrb[0].mxu0
  %v708 = vadd.f32 %v109, %v707
  %v709 = vpop.f32.mrb[0].mxu0
  %710 = vmatprep.mubr.bf16.mxu0 %v329
  %711 = vmatmul.mubr.bf16.gmra.mrb[0].mxu0 %v328
  %v712 = vpop.f32.mrb[0].mxu0
  %v713 = vadd.f32 %v109, %v712
  %v714 = vpop.f32.mrb[0].mxu0
  %v715 = vpop.f32.mrb[0].mxu0
  %v716 = vadd.f32 %v109, %v715
  %v717 = vpop.f32.mrb[0].mxu0
  %718 = vmatprep.mubr.bf16.mxu0 %v331
  %719 = vmatmul.mubr.bf16.gmra.mrb[0].mxu0 %v330
  %v720 = vpop.f32.mrb[0].mxu0
  %v721 = vadd.f32 %v109, %v720
  %v722 = vpop.f32.mrb[0].mxu0
  %v723 = vpop.f32.mrb[0].mxu0
  %v724 = vadd.f32 %v109, %v723
  %v725 = vpop.f32.mrb[0].mxu0
  %726 = vmatprep.mubr.bf16.mxu0 %v333
  %727 = vmatmul.mubr.bf16.gmra.mrb[0].mxu0 %v332
  %v728 = vpop.f32.mrb[0].mxu0
  %v729 = vadd.f32 %v109, %v728
  %v730 = vpop.f32.mrb[0].mxu0
  %v731 = vpop.f32.mrb[0].mxu0
  %v732 = vadd.f32 %v109, %v731
  %v733 = vpop.f32.mrb[0].mxu0
  %734 = vmatprep.mubr.bf16.mxu0 %v335
  %735 = vmatmul.mubr.bf16.gmra.mrb[0].mxu0 %v334
  %v736 = vpop.f32.mrb[0].mxu0
  %v737 = vadd.f32 %v109, %v736
  %v738 = vpop.f32.mrb[0].mxu0
  %v739 = vpop.f32.mrb[0].mxu0
  %v740 = vadd.f32 %v109, %v739
  %v741 = vpop.f32.mrb[0].mxu0
  %742 = vmatprep.mubr.bf16.mxu0 %v337
  %743 = vmatmul.mubr.bf16.gmra.mrb[0].mxu0 %v336
  %v744 = vpop.f32.mrb[0].mxu0
  %v745 = vadd.f32 %v109, %v744
  %v746 = vpop.f32.mrb[0].mxu0
  %v747 = vpop.f32.mrb[0].mxu0
  %v748 = vadd.f32 %v109, %v747
  %v749 = vpop.f32.mrb[0].mxu0
  %750 = vmatprep.mubr.bf16.mxu0 %v339
  %751 = vmatmul.mubr.bf16.gmra.mrb[0].mxu0 %v338
  %v752 = vpop.f32.mrb[0].mxu0
  %v753 = vadd.f32 %v109, %v752
  %v754 = vpop.f32.mrb[0].mxu0
  %v755 = vpop.f32.mrb[0].mxu0
  %v756 = vpop.f32.mrb[0].mxu0
  %757 = vdwg.mxu0
  %v758 = vmax.f32 %v529, 0.0
  %v759 = vmax.f32 %v532, 0.0
  %v760 = vmax.f32 %v537, 0.0
  %v761 = vmax.f32 %v540, 0.0
  %v762 = vmax.f32 %v545, 0.0
  %v763 = vmax.f32 %v548, 0.0
  %v764 = vmax.f32 %v553, 0.0
  %v765 = vmax.f32 %v556, 0.0
  %v766 = vmax.f32 %v561, 0.0
  %v767 = vmax.f32 %v564, 0.0
  %v768 = vmax.f32 %v569, 0.0
  %v769 = vmax.f32 %v572, 0.0
  %v770 = vmax.f32 %v577, 0.0
  %v771 = vmax.f32 %v580, 0.0
  %v772 = vmax.f32 %v585, 0.0
  %v773 = vmax.f32 %v588, 0.0
  %v774 = vmax.f32 %v593, 0.0
  %v775 = vmax.f32 %v596, 0.0
  %v776 = vmax.f32 %v601, 0.0
  %v777 = vmax.f32 %v604, 0.0
  %v778 = vmax.f32 %v609, 0.0
  %v779 = vmax.f32 %v612, 0.0
  %v780 = vmax.f32 %v617, 0.0
  %v781 = vmax.f32 %v620, 0.0
  %v782 = vmax.f32 %v625, 0.0
  %v783 = vmax.f32 %v628, 0.0
  %v784 = vmax.f32 %v633, 0.0
  %v785 = vmax.f32 %v636, 0.0
  %v786 = vmax.f32 %v641, 0.0
  %v787 = vmax.f32 %v644, 0.0
  %v788 = vmax.f32 %v649, 0.0
  %v789 = vmax.f32 %v652, 0.0
  %v790 = vmax.f32 %v657, 0.0
  %v791 = vmax.f32 %v660, 0.0
  %v792 = vmax.f32 %v665, 0.0
  %v793 = vmax.f32 %v668, 0.0
  %v794 = vmax.f32 %v673, 0.0
  %v795 = vmax.f32 %v676, 0.0
  %v796 = vmax.f32 %v681, 0.0
  %v797 = vmax.f32 %v684, 0.0
  %v798 = vmax.f32 %v689, 0.0
  %v799 = vmax.f32 %v692, 0.0
  %v800 = vmax.f32 %v697, 0.0
  %v801 = vmax.f32 %v700, 0.0
  %v802 = vmax.f32 %v705, 0.0
  %v803 = vmax.f32 %v708, 0.0
  %v804 = vmax.f32 %v713, 0.0
  %v805 = vmax.f32 %v716, 0.0
  %v806 = vmax.f32 %v721, 0.0
  %v807 = vmax.f32 %v724, 0.0
  %v808 = vmax.f32 %v729, 0.0
  %v809 = vmax.f32 %v732, 0.0
  %v810 = vmax.f32 %v737, 0.0
  %v811 = vmax.f32 %v740, 0.0
  %v812 = vmax.f32 %v745, 0.0
  %v813 = vmax.f32 %v748, 0.0
  %v814 = vmax.f32 %v753, 0.0
  %v815 = vpack.c.bf16 %v759, %v758
  %v816 = vpack.c.bf16 %v761, %v760
  %v817 = vpack.c.bf16 %v763, %v762
  %v818 = vpack.c.bf16 %v765, %v764
  %v819 = vpack.c.bf16 %v767, %v766
  %v820 = vpack.c.bf16 %v769, %v768
  %v821 = vpack.c.bf16 %v771, %v770
  %v822 = vpack.c.bf16 %v773, %v772
  %v823 = vpack.c.bf16 %v775, %v774
  %v824 = vpack.c.bf16 %v777, %v776
  %v825 = vpack.c.bf16 %v779, %v778
  %v826 = vpack.c.bf16 %v781, %v780
  %v827 = vpack.c.bf16 %v783, %v782
  %v828 = vpack.c.bf16 %v785, %v784
  %v829 = vpack.c.bf16 %v787, %v786
  %v830 = vpack.c.bf16 %v789, %v788
  %v831 = vpack.c.bf16 %v791, %v790
  %v832 = vpack.c.bf16 %v793, %v792
  %v833 = vpack.c.bf16 %v795, %v794
  %v834 = vpack.c.bf16 %v797, %v796
  %v835 = vpack.c.bf16 %v799, %v798
  %v836 = vpack.c.bf16 %v801, %v800
  %v837 = vpack.c.bf16 %v803, %v802
  %v838 = vpack.c.bf16 %v805, %v804
  %v839 = vpack.c.bf16 %v807, %v806
  %v840 = vpack.c.bf16 %v809, %v808
  %v841 = vpack.c.bf16 %v811, %v810
  %v842 = vpack.c.bf16 %v813, %v812
  %v843 = vpack.c.bf16 %v814, %v814
  %v873 = vunpack.c.l.b16 %v815
  %v874 = vunpack.c.h.b16 %v815
  %v875 = vunpack.c.l.b16 %v816
  %v876 = vunpack.c.h.b16 %v816
  %v877 = vunpack.c.l.b16 %v817
  %v878 = vunpack.c.h.b16 %v817
  %v879 = vunpack.c.l.b16 %v818
  %v880 = vunpack.c.h.b16 %v818
  %v881 = vunpack.c.l.b16 %v819
  %v882 = vunpack.c.h.b16 %v819
  %v883 = vunpack.c.l.b16 %v820
  %v884 = vunpack.c.h.b16 %v820
  %v885 = vunpack.c.l.b16 %v821
  %v886 = vunpack.c.h.b16 %v821
  %v887 = vunpack.c.l.b16 %v822
  %v888 = vunpack.c.h.b16 %v822
  %v889 = vunpack.c.l.b16 %v823
  %v890 = vunpack.c.h.b16 %v823
  %v891 = vunpack.c.l.b16 %v824
  %v892 = vunpack.c.h.b16 %v824
  %v893 = vunpack.c.l.b16 %v825
  %v894 = vunpack.c.h.b16 %v825
  %v895 = vunpack.c.l.b16 %v826
  %v896 = vunpack.c.h.b16 %v826
  %v897 = vunpack.c.l.b16 %v827
  %v898 = vunpack.c.h.b16 %v827
  %v899 = vunpack.c.l.b16 %v828
  %v900 = vunpack.c.h.b16 %v828
  %v901 = vunpack.c.l.b16 %v829
  %v902 = vunpack.c.h.b16 %v829
  %v903 = vunpack.c.l.b16 %v830
  %v904 = vunpack.c.h.b16 %v830
  %v905 = vunpack.c.l.b16 %v831
  %v906 = vunpack.c.h.b16 %v831
  %v907 = vunpack.c.l.b16 %v832
  %v908 = vunpack.c.h.b16 %v832
  %v909 = vunpack.c.l.b16 %v833
  %v910 = vunpack.c.h.b16 %v833
  %v911 = vunpack.c.l.b16 %v834
  %v912 = vunpack.c.h.b16 %v834
  %v913 = vunpack.c.l.b16 %v835
  %v914 = vunpack.c.h.b16 %v835
  %v915 = vunpack.c.l.b16 %v836
  %v916 = vunpack.c.h.b16 %v836
  %v917 = vunpack.c.l.b16 %v837
  %v918 = vunpack.c.h.b16 %v837
  %v919 = vunpack.c.l.b16 %v838
  %v920 = vunpack.c.h.b16 %v838
  %v921 = vunpack.c.l.b16 %v839
  %v922 = vunpack.c.h.b16 %v839
  %v923 = vunpack.c.l.b16 %v840
  %v924 = vunpack.c.h.b16 %v840
  %v925 = vunpack.c.l.b16 %v841
  %v926 = vunpack.c.h.b16 %v841
  %v927 = vunpack.c.l.b16 %v842
  %v928 = vunpack.c.h.b16 %v842
  %v929 = vunpack.c.l.b16 %v843
  %v930 = vpack.c.b16 %v873, %v873
  %v931 = vpack.c.b16 %v874, %v874
  %v932 = vpack.c.b16 %v875, %v875
  %v933 = vpack.c.b16 %v876, %v876
  %v934 = vpack.c.b16 %v877, %v877
  %v935 = vpack.c.b16 %v878, %v878
  %v936 = vpack.c.b16 %v879, %v879
  %v937 = vpack.c.b16 %v880, %v880
  %v938 = vpack.c.b16 %v881, %v881
  %v939 = vpack.c.b16 %v882, %v882
  %v940 = vpack.c.b16 %v883, %v883
  %v941 = vpack.c.b16 %v884, %v884
  %v942 = vpack.c.b16 %v885, %v885
  %v943 = vpack.c.b16 %v886, %v886
  %v944 = vpack.c.b16 %v887, %v887
  %v945 = vpack.c.b16 %v888, %v888
  %v946 = vpack.c.b16 %v889, %v889
  %v947 = vpack.c.b16 %v890, %v890
  %v948 = vpack.c.b16 %v891, %v891
  %v949 = vpack.c.b16 %v892, %v892
  %v950 = vpack.c.b16 %v893, %v893
  %v951 = vpack.c.b16 %v894, %v894
  %v952 = vpack.c.b16 %v895, %v895
  %v953 = vpack.c.b16 %v896, %v896
  %v954 = vpack.c.b16 %v897, %v897
  %v955 = vpack.c.b16 %v898, %v898
  %v956 = vpack.c.b16 %v899, %v899
  %v957 = vpack.c.b16 %v900, %v900
  %v958 = vpack.c.b16 %v901, %v901
  %v959 = vpack.c.b16 %v902, %v902
  %v960 = vpack.c.b16 %v903, %v903
  %v961 = vpack.c.b16 %v904, %v904
  %v962 = vpack.c.b16 %v905, %v905
  %v963 = vpack.c.b16 %v906, %v906
  %v964 = vpack.c.b16 %v907, %v907
  %v965 = vpack.c.b16 %v908, %v908
  %v966 = vpack.c.b16 %v909, %v909
  %v967 = vpack.c.b16 %v910, %v910
  %v968 = vpack.c.b16 %v911, %v911
  %v969 = vpack.c.b16 %v912, %v912
  %v970 = vpack.c.b16 %v913, %v913
  %v971 = vpack.c.b16 %v914, %v914
  %v972 = vpack.c.b16 %v915, %v915
  %v973 = vpack.c.b16 %v916, %v916
  %v974 = vpack.c.b16 %v917, %v917
  %v975 = vpack.c.b16 %v918, %v918
  %v976 = vpack.c.b16 %v919, %v919
  %v977 = vpack.c.b16 %v920, %v920
  %v978 = vpack.c.b16 %v921, %v921
  %v979 = vpack.c.b16 %v922, %v922
  %v980 = vpack.c.b16 %v923, %v923
  %v981 = vpack.c.b16 %v924, %v924
  %v982 = vpack.c.b16 %v925, %v925
  %v983 = vpack.c.b16 %v926, %v926
  %v984 = vpack.c.b16 %v927, %v927
  %v985 = vpack.c.b16 %v928, %v928
  %v986 = vpack.c.b16 %v929, %v929
  %1044 = vst [vmem:[%s3] sm:$0xf] %v930
  %1045 = vst [vmem:[%s3 + $0x4] sm:$0xf] %v931
  %1046 = vst [vmem:[%s3 + $0x8] sm:$0xf] %v932
  %1047 = vst [vmem:[%s3 + $0xc] sm:$0xf] %v933
  %1048 = vst [vmem:[%s3 + $0x10] sm:$0xf] %v934
  %1049 = vst [vmem:[%s3 + $0x14] sm:$0xf] %v935
  %1050 = vst [vmem:[%s3 + $0x18] sm:$0xf] %v936
  %1051 = vst [vmem:[%s3 + $0x1c] sm:$0xf] %v937
  %1052 = vst [vmem:[%s3 + $0x20] sm:$0xf] %v938
  %1053 = vst [vmem:[%s3 + $0x24] sm:$0xf] %v939
  %1054 = vst [vmem:[%s3 + $0x28] sm:$0xf] %v940
  %1055 = vst [vmem:[%s3 + $0x2c] sm:$0xf] %v941
  %1056 = vst [vmem:[%s3 + $0x30] sm:$0xf] %v942
  %1057 = vst [vmem:[%s3 + $0x34] sm:$0xf] %v943
  %1058 = vst [vmem:[%s3 + $0x38] sm:$0xf] %v944
  %1059 = vst [vmem:[%s3 + $0x3c] sm:$0xf] %v945
  %1060 = vst [vmem:[%s3 + $0x40] sm:$0xf] %v946
  %1061 = vst [vmem:[%s3 + $0x44] sm:$0xf] %v947
  %1062 = vst [vmem:[%s3 + $0x48] sm:$0xf] %v948
  %1063 = vst [vmem:[%s3 + $0x4c] sm:$0xf] %v949
  %1064 = vst [vmem:[%s3 + $0x50] sm:$0xf] %v950
  %1065 = vst [vmem:[%s3 + $0x54] sm:$0xf] %v951
  %1066 = vst [vmem:[%s3 + $0x58] sm:$0xf] %v952
  %1067 = vst [vmem:[%s3 + $0x5c] sm:$0xf] %v953
  %1068 = vst [vmem:[%s3 + $0x60] sm:$0xf] %v954
  %1069 = vst [vmem:[%s3 + $0x64] sm:$0xf] %v955
  %1070 = vst [vmem:[%s3 + $0x68] sm:$0xf] %v956
  %1071 = vst [vmem:[%s3 + $0x6c] sm:$0xf] %v957
  %1072 = vst [vmem:[%s3 + $0x70] sm:$0xf] %v958
  %1073 = vst [vmem:[%s3 + $0x74] sm:$0xf] %v959
  %1074 = vst [vmem:[%s3 + $0x78] sm:$0xf] %v960
  %1075 = vst [vmem:[%s3 + $0x7c] sm:$0xf] %v961
  %1076 = vst [vmem:[%s3 + $0x80] sm:$0xf] %v962
  %1077 = vst [vmem:[%s3 + $0x84] sm:$0xf] %v963
  %1078 = vst [vmem:[%s3 + $0x88] sm:$0xf] %v964
  %1079 = vst [vmem:[%s3 + $0x8c] sm:$0xf] %v965
  %1080 = vst [vmem:[%s3 + $0x90] sm:$0xf] %v966
  %1081 = vst [vmem:[%s3 + $0x94] sm:$0xf] %v967
  %1082 = vst [vmem:[%s3 + $0x98] sm:$0xf] %v968
  %1083 = vst [vmem:[%s3 + $0x9c] sm:$0xf] %v969
  %1084 = vst [vmem:[%s3 + $0xa0] sm:$0xf] %v970
  %1085 = vst [vmem:[%s3 + $0xa4] sm:$0xf] %v971
  %1086 = vst [vmem:[%s3 + $0xa8] sm:$0xf] %v972
  %1087 = vst [vmem:[%s3 + $0xac] sm:$0xf] %v973
  %1088 = vst [vmem:[%s3 + $0xb0] sm:$0xf] %v974
  %1089 = vst [vmem:[%s3 + $0xb4] sm:$0xf] %v975
  %1090 = vst [vmem:[%s3 + $0xb8] sm:$0xf] %v976
  %1091 = vst [vmem:[%s3 + $0xbc] sm:$0xf] %v977
  %1092 = vst [vmem:[%s3 + $0xc0] sm:$0xf] %v978
  %1093 = vst [vmem:[%s3 + $0xc4] sm:$0xf] %v979
  %1094 = vst [vmem:[%s3 + $0xc8] sm:$0xf] %v980
  %1095 = vst [vmem:[%s3 + $0xcc] sm:$0xf] %v981
  %1096 = vst [vmem:[%s3 + $0xd0] sm:$0xf] %v982
  %1097 = vst [vmem:[%s3 + $0xd4] sm:$0xf] %v983
  %1098 = vst [vmem:[%s3 + $0xd8] sm:$0xf] %v984
  %1099 = vst [vmem:[%s3 + $0xdc] sm:$0xf] %v985
  %1100 = vst [vmem:[%s3 + $0xe0] sm:$0x1] %v986
  // Predicated region
  $region14: #{modified_inception_forward.8} parent=0 // pred_check
    _
  $region15: #{modified_inception_forward.8} parent=0 // pred_check_branch
    %1102 = sbr.rel (0) target = $region17
  $region16: #{modified_inception_forward.8} parent=0 // pred_region
    _
  $region17: #{modified_inception_forward.8} parent=0 // pred_fallthru
    _
  // Predicated region
  $region18: #{modified_inception_forward.8} parent=0 // pred_check
    _
  $region19: #{modified_inception_forward.8} parent=0 // pred_check_branch
    %1104 = sbr.rel (0) target = $region21
  $region20: #{modified_inception_forward.8} parent=0 // pred_region
    _
  $region21: #{modified_inception_forward.8} parent=0 // pred_fallthru
    _

// kernel: modified_inception_forward.9
$region0: #{modified_inception_forward.9}
  #allocation0 [shape = 'u32[]', space=smem, size = 0x4, offset = 0x4, fixed_abs, tag = 'smem constant byte address 0x4 - core index']
  #allocation1 [shape = 'u32[144,128]{1,0:T(1,128)}', space=vmem, size = 0x12000, scoped, tag = 'internal scratch']
  %s0 = inlined_call_operand.vmem [shape: bf16[450,384], index: 0, kind: input, shape index: {}]
  %s1 = inlined_call_operand.vmem [shape: bf16[384,128], index: 1, kind: input, shape index: {}]
  %s2 = inlined_call_operand.vmem [shape: f32[1,128], index: 2, kind: input, shape index: {}]
  %s3 = inlined_call_operand.vmem [shape: bf16[450,128], index: 3, kind: output, shape index: {}]
  %s4 = sld [smem:[#allocation0]]
  $region22: #{modified_inception_forward.9} parent=0
    _
  %s6 = ssub.s32 1, %s4
  %s7 = scalar_select 0, %s6, %s4
  // Predicated region
  $region2: #{modified_inception_forward.9} parent=0 // pred_check
    _
  $region3: #{modified_inception_forward.9} parent=0 // pred_check_branch
    %9 = sbr.rel (0) target = $region5
  $region4: #{modified_inception_forward.9} parent=0 // pred_region
    _
  $region5: #{modified_inception_forward.9} parent=0 // pred_fallthru
    _
  // Predicated region
  $region6: #{modified_inception_forward.9} parent=0 // pred_check
    _
  $region7: #{modified_inception_forward.9} parent=0 // pred_check_branch
    %11 = sbr.rel (0) target = $region9
  $region8: #{modified_inception_forward.9} parent=0 // pred_region
    _
  $region9: #{modified_inception_forward.9} parent=0 // pred_fallthru
    _
  // Predicated region
  $region10: #{modified_inception_forward.9} parent=0 // pred_check
    _
  $region11: #{modified_inception_forward.9} parent=0 // pred_check_branch
    %13 = sbr.rel (0) target = $region13
  $region12: #{modified_inception_forward.9} parent=0 // pred_region
    _
  $region13: #{modified_inception_forward.9} parent=0 // pred_fallthru
    _
  %v15 = vld [vmem:[%s0] sm:$0xff]
  %v16 = vld [vmem:[%s0 + $0x8] sm:$0xf]
  %v17 = vld [vmem:[%s0 + $0xc] sm:$0xff]
  %v18 = vld [vmem:[%s0 + $0x14] sm:$0xf]
  %v19 = vld [vmem:[%s0 + $0x18] sm:$0xff]
  %v20 = vld [vmem:[%s0 + $0x20] sm:$0xf]
  %v21 = vld [vmem:[%s0 + $0x24] sm:$0xff]
  %v22 = vld [vmem:[%s0 + $0x2c] sm:$0xf]
  %v23 = vld [vmem:[%s0 + $0x30] sm:$0xff]
  %v24 = vld [vmem:[%s0 + $0x38] sm:$0xf]
  %v25 = vld [vmem:[%s0 + $0x3c] sm:$0xff]
  %v26 = vld [vmem:[%s0 + $0x44] sm:$0xf]
  %v27 = vld [vmem:[%s0 + $0x48] sm:$0xff]
  %v28 = vld [vmem:[%s0 + $0x50] sm:$0xf]
  %v29 = vld [vmem:[%s0 + $0x54] sm:$0xff]
  %v30 = vld [vmem:[%s0 + $0x5c] sm:$0xf]
  %v31 = vld [vmem:[%s0 + $0x60] sm:$0xff]
  %v32 = vld [vmem:[%s0 + $0x68] sm:$0xf]
  %v33 = vld [vmem:[%s0 + $0x6c] sm:$0xff]
  %v34 = vld [vmem:[%s0 + $0x74] sm:$0xf]
  %v35 = vld [vmem:[%s0 + $0x78] sm:$0xff]
  %v36 = vld [vmem:[%s0 + $0x80] sm:$0xf]
  %v37 = vld [vmem:[%s0 + $0x84] sm:$0xff]
  %v38 = vld [vmem:[%s0 + $0x8c] sm:$0xf]
  %v39 = vld [vmem:[%s0 + $0x90] sm:$0xff]
  %v40 = vld [vmem:[%s0 + $0x98] sm:$0xf]
  %v41 = vld [vmem:[%s0 + $0x9c] sm:$0xff]
  %v42 = vld [vmem:[%s0 + $0xa4] sm:$0xf]
  %v43 = vld [vmem:[%s0 + $0xa8] sm:$0xff]
  %v44 = vld [vmem:[%s0 + $0xb0] sm:$0xf]
  %v45 = vld [vmem:[%s0 + $0xb4] sm:$0xff]
  %v46 = vld [vmem:[%s0 + $0xbc] sm:$0xf]
  %v47 = vld [vmem:[%s0 + $0xc0] sm:$0xff]
  %v48 = vld [vmem:[%s0 + $0xc8] sm:$0xf]
  %v49 = vld [vmem:[%s0 + $0xcc] sm:$0xff]
  %v50 = vld [vmem:[%s0 + $0xd4] sm:$0xf]
  %v51 = vld [vmem:[%s0 + $0xd8] sm:$0xff]
  %v52 = vld [vmem:[%s0 + $0xe0] sm:$0xf]
  %v53 = vld [vmem:[%s0 + $0xe4] sm:$0xff]
  %v54 = vld [vmem:[%s0 + $0xec] sm:$0xf]
  %v55 = vld [vmem:[%s0 + $0xf0] sm:$0xff]
  %v56 = vld [vmem:[%s0 + $0xf8] sm:$0xf]
  %v57 = vld [vmem:[%s0 + $0xfc] sm:$0xff]
  %v58 = vld [vmem:[%s0 + $0x104] sm:$0xf]
  %v59 = vld [vmem:[%s0 + $0x108] sm:$0xff]
  %v60 = vld [vmem:[%s0 + $0x110] sm:$0xf]
  %v61 = vld [vmem:[%s0 + $0x114] sm:$0xff]
  %v62 = vld [vmem:[%s0 + $0x11c] sm:$0xf]
  %v63 = vld [vmem:[%s0 + $0x120] sm:$0xff]
  %v64 = vld [vmem:[%s0 + $0x128] sm:$0xf]
  %v65 = vld [vmem:[%s0 + $0x12c] sm:$0xff]
  %v66 = vld [vmem:[%s0 + $0x134] sm:$0xf]
  %v67 = vld [vmem:[%s0 + $0x138] sm:$0xff]
  %v68 = vld [vmem:[%s0 + $0x140] sm:$0xf]
  %v69 = vld [vmem:[%s0 + $0x144] sm:$0xff]
  %v70 = vld [vmem:[%s0 + $0x14c] sm:$0xf]
  %v71 = vld [vmem:[%s0 + $0x150] sm:$0xff]
  %v72 = vld [vmem:[%s0 + $0x158] sm:$0xf]
  %v73 = vld [vmem:[%s0 + $0x15c] sm:$0xff]
  %v74 = vld [vmem:[%s0 + $0x164] sm:$0xf]
  %v75 = vld [vmem:[%s0 + $0x168] sm:$0xff]
  %v76 = vld [vmem:[%s0 + $0x170] sm:$0xf]
  %v77 = vld [vmem:[%s0 + $0x174] sm:$0xff]
  %v78 = vld [vmem:[%s0 + $0x17c] sm:$0xf]
  %v79 = vld [vmem:[%s0 + $0x180] sm:$0xff]
  %v80 = vld [vmem:[%s0 + $0x188] sm:$0xf]
  %v81 = vld [vmem:[%s0 + $0x18c] sm:$0xff]
  %v82 = vld [vmem:[%s0 + $0x194] sm:$0xf]
  %v83 = vld [vmem:[%s0 + $0x198] sm:$0xff]
  %v84 = vld [vmem:[%s0 + $0x1a0] sm:$0xf]
  %v85 = vld [vmem:[%s0 + $0x1a4] sm:$0xff]
  %v86 = vld [vmem:[%s0 + $0x1ac] sm:$0xf]
  %v87 = vld [vmem:[%s0 + $0x1b0] sm:$0xff]
  %v88 = vld [vmem:[%s0 + $0x1b8] sm:$0xf]
  %v89 = vld [vmem:[%s0 + $0x1bc] sm:$0xff]
  %v90 = vld [vmem:[%s0 + $0x1c4] sm:$0xf]
  %v91 = vld [vmem:[%s0 + $0x1c8] sm:$0xff]
  %v92 = vld [vmem:[%s0 + $0x1d0] sm:$0xf]
  %v93 = vld [vmem:[%s0 + $0x1d4] sm:$0xff]
  %v94 = vld [vmem:[%s0 + $0x1dc] sm:$0xf]
  %v95 = vld [vmem:[%s0 + $0x1e0] sm:$0xff]
  %v96 = vld [vmem:[%s0 + $0x1e8] sm:$0xf]
  %v97 = vld [vmem:[%s0 + $0x1ec] sm:$0xff]
  %v98 = vld [vmem:[%s0 + $0x1f4] sm:$0xf]
  %v99 = vld [vmem:[%s0 + $0x1f8] sm:$0xff]
  %v100 = vld [vmem:[%s0 + $0x200] sm:$0xf]
  %v101 = vld [vmem:[%s0 + $0x204] sm:$0xff]
  %v102 = vld [vmem:[%s0 + $0x20c] sm:$0xf]
  %v103 = vld [vmem:[%s0 + $0x210] sm:$0xff]
  %v104 = vld [vmem:[%s0 + $0x218] sm:$0xf]
  %v105 = vld [vmem:[%s0 + $0x21c] sm:$0xff]
  %v106 = vld [vmem:[%s0 + $0x224] sm:$0xf]
  %v107 = vld [vmem:[%s0 + $0x228] sm:$0xff]
  %v108 = vld [vmem:[%s0 + $0x230] sm:$0xf]
  %v109 = vld [vmem:[%s0 + $0x234] sm:$0xff]
  %v110 = vld [vmem:[%s0 + $0x23c] sm:$0xf]
  %v111 = vld [vmem:[%s0 + $0x240] sm:$0xff]
  %v112 = vld [vmem:[%s0 + $0x248] sm:$0xf]
  %v113 = vld [vmem:[%s0 + $0x24c] sm:$0xff]
  %v114 = vld [vmem:[%s0 + $0x254] sm:$0xf]
  %v115 = vld [vmem:[%s0 + $0x258] sm:$0xff]
  %v116 = vld [vmem:[%s0 + $0x260] sm:$0xf]
  %v117 = vld [vmem:[%s0 + $0x264] sm:$0xff]
  %v118 = vld [vmem:[%s0 + $0x26c] sm:$0xf]
  %v119 = vld [vmem:[%s0 + $0x270] sm:$0xff]
  %v120 = vld [vmem:[%s0 + $0x278] sm:$0xf]
  %v121 = vld [vmem:[%s0 + $0x27c] sm:$0xff]
  %v122 = vld [vmem:[%s0 + $0x284] sm:$0xf]
  %v123 = vld [vmem:[%s0 + $0x288] sm:$0xff]
  %v124 = vld [vmem:[%s0 + $0x290] sm:$0xf]
  %v125 = vld [vmem:[%s0 + $0x294] sm:$0xff]
  %v126 = vld [vmem:[%s0 + $0x29c] sm:$0xf]
  %v127 = vld [vmem:[%s0 + $0x2a0] sm:$0x11]
  %v128 = vld [vmem:[%s0 + $0x2a8] sm:$0x1]
  %v129 = vld [vmem:[%s1] sm:$0xf]
  %v130 = vld [vmem:[%s1 + $0x4] sm:$0xf]
  %v131 = vld [vmem:[%s1 + $0x8] sm:$0xf]
  %v132 = vld [vmem:[%s1 + $0xc] sm:$0xf]
  %v133 = vld [vmem:[%s1 + $0x10] sm:$0xf]
  %v134 = vld [vmem:[%s1 + $0x14] sm:$0xf]
  %v135 = vld [vmem:[%s1 + $0x18] sm:$0xf]
  %v136 = vld [vmem:[%s1 + $0x1c] sm:$0xf]
  %v137 = vld [vmem:[%s1 + $0x20] sm:$0xf]
  %v138 = vld [vmem:[%s1 + $0x24] sm:$0xf]
  %v139 = vld [vmem:[%s1 + $0x28] sm:$0xf]
  %v140 = vld [vmem:[%s1 + $0x2c] sm:$0xf]
  %v141 = vld [vmem:[%s1 + $0x30] sm:$0xf]
  %v142 = vld [vmem:[%s1 + $0x34] sm:$0xf]
  %v143 = vld [vmem:[%s1 + $0x38] sm:$0xf]
  %v144 = vld [vmem:[%s1 + $0x3c] sm:$0xf]
  %v145 = vld [vmem:[%s1 + $0x40] sm:$0xf]
  %v146 = vld [vmem:[%s1 + $0x44] sm:$0xf]
  %v147 = vld [vmem:[%s1 + $0x48] sm:$0xf]
  %v148 = vld [vmem:[%s1 + $0x4c] sm:$0xf]
  %v149 = vld [vmem:[%s1 + $0x50] sm:$0xf]
  %v150 = vld [vmem:[%s1 + $0x54] sm:$0xf]
  %v151 = vld [vmem:[%s1 + $0x58] sm:$0xf]
  %v152 = vld [vmem:[%s1 + $0x5c] sm:$0xf]
  %v153 = vld [vmem:[%s1 + $0x60] sm:$0xf]
  %v154 = vld [vmem:[%s1 + $0x64] sm:$0xf]
  %v155 = vld [vmem:[%s1 + $0x68] sm:$0xf]
  %v156 = vld [vmem:[%s1 + $0x6c] sm:$0xf]
  %v157 = vld [vmem:[%s1 + $0x70] sm:$0xf]
  %v158 = vld [vmem:[%s1 + $0x74] sm:$0xf]
  %v159 = vld [vmem:[%s1 + $0x78] sm:$0xf]
  %v160 = vld [vmem:[%s1 + $0x7c] sm:$0xf]
  %v161 = vld [vmem:[%s1 + $0x80] sm:$0xf]
  %v162 = vld [vmem:[%s1 + $0x84] sm:$0xf]
  %v163 = vld [vmem:[%s1 + $0x88] sm:$0xf]
  %v164 = vld [vmem:[%s1 + $0x8c] sm:$0xf]
  %v165 = vld [vmem:[%s1 + $0x90] sm:$0xf]
  %v166 = vld [vmem:[%s1 + $0x94] sm:$0xf]
  %v167 = vld [vmem:[%s1 + $0x98] sm:$0xf]
  %v168 = vld [vmem:[%s1 + $0x9c] sm:$0xf]
  %v169 = vld [vmem:[%s1 + $0xa0] sm:$0xf]
  %v170 = vld [vmem:[%s1 + $0xa4] sm:$0xf]
  %v171 = vld [vmem:[%s1 + $0xa8] sm:$0xf]
  %v172 = vld [vmem:[%s1 + $0xac] sm:$0xf]
  %v173 = vld [vmem:[%s1 + $0xb0] sm:$0xf]
  %v174 = vld [vmem:[%s1 + $0xb4] sm:$0xf]
  %v175 = vld [vmem:[%s1 + $0xb8] sm:$0xf]
  %v176 = vld [vmem:[%s1 + $0xbc] sm:$0xf]
  %v177 = vld [vmem:[%s2] sm:$0x1]
  %v179 = vlaneseq
  %v180 = vshrl.u32 %v179, 7
  %v181 = vsub.s32 0, %v180
  %v182 = vrot.slane %v177, %v181
  %v298 = vunpack.c.l.b16 %v15
  %v299 = vunpack.c.h.b16 %v15
  %v300 = vunpack.c.l.b16 %v16
  %v301 = vunpack.c.l.b16 %v17
  %v302 = vunpack.c.h.b16 %v17
  %v303 = vunpack.c.l.b16 %v18
  %v304 = vunpack.c.l.b16 %v19
  %v305 = vunpack.c.h.b16 %v19
  %v306 = vunpack.c.l.b16 %v20
  %v307 = vunpack.c.l.b16 %v21
  %v308 = vunpack.c.h.b16 %v21
  %v309 = vunpack.c.l.b16 %v22
  %v310 = vunpack.c.l.b16 %v23
  %v311 = vunpack.c.h.b16 %v23
  %v312 = vunpack.c.l.b16 %v24
  %v313 = vunpack.c.l.b16 %v25
  %v314 = vunpack.c.h.b16 %v25
  %v315 = vunpack.c.l.b16 %v26
  %v316 = vunpack.c.l.b16 %v27
  %v317 = vunpack.c.h.b16 %v27
  %v318 = vunpack.c.l.b16 %v28
  %v319 = vunpack.c.l.b16 %v29
  %v320 = vunpack.c.h.b16 %v29
  %v321 = vunpack.c.l.b16 %v30
  %v322 = vunpack.c.l.b16 %v31
  %v323 = vunpack.c.h.b16 %v31
  %v324 = vunpack.c.l.b16 %v32
  %v325 = vunpack.c.l.b16 %v33
  %v326 = vunpack.c.h.b16 %v33
  %v327 = vunpack.c.l.b16 %v34
  %v328 = vunpack.c.l.b16 %v35
  %v329 = vunpack.c.h.b16 %v35
  %v330 = vunpack.c.l.b16 %v36
  %v331 = vunpack.c.l.b16 %v37
  %v332 = vunpack.c.h.b16 %v37
  %v333 = vunpack.c.l.b16 %v38
  %v334 = vunpack.c.l.b16 %v39
  %v335 = vunpack.c.h.b16 %v39
  %v336 = vunpack.c.l.b16 %v40
  %v337 = vunpack.c.l.b16 %v41
  %v338 = vunpack.c.h.b16 %v41
  %v339 = vunpack.c.l.b16 %v42
  %v340 = vunpack.c.l.b16 %v43
  %v341 = vunpack.c.h.b16 %v43
  %v342 = vunpack.c.l.b16 %v44
  %v343 = vunpack.c.l.b16 %v45
  %v344 = vunpack.c.h.b16 %v45
  %v345 = vunpack.c.l.b16 %v46
  %v346 = vunpack.c.l.b16 %v47
  %v347 = vunpack.c.h.b16 %v47
  %v348 = vunpack.c.l.b16 %v48
  %v349 = vunpack.c.l.b16 %v49
  %v350 = vunpack.c.h.b16 %v49
  %v351 = vunpack.c.l.b16 %v50
  %v352 = vunpack.c.l.b16 %v51
  %v353 = vunpack.c.h.b16 %v51
  %v354 = vunpack.c.l.b16 %v52
  %v355 = vunpack.c.l.b16 %v53
  %v356 = vunpack.c.h.b16 %v53
  %v357 = vunpack.c.l.b16 %v54
  %v358 = vunpack.c.l.b16 %v55
  %v359 = vunpack.c.h.b16 %v55
  %v360 = vunpack.c.l.b16 %v56
  %v361 = vunpack.c.l.b16 %v57
  %v362 = vunpack.c.h.b16 %v57
  %v363 = vunpack.c.l.b16 %v58
  %v364 = vunpack.c.l.b16 %v59
  %v365 = vunpack.c.h.b16 %v59
  %v366 = vunpack.c.l.b16 %v60
  %v367 = vunpack.c.l.b16 %v61
  %v368 = vunpack.c.h.b16 %v61
  %v369 = vunpack.c.l.b16 %v62
  %v370 = vunpack.c.l.b16 %v63
  %v371 = vunpack.c.h.b16 %v63
  %v372 = vunpack.c.l.b16 %v64
  %v373 = vunpack.c.l.b16 %v65
  %v374 = vunpack.c.h.b16 %v65
  %v375 = vunpack.c.l.b16 %v66
  %v376 = vunpack.c.l.b16 %v67
  %v377 = vunpack.c.h.b16 %v67
  %v378 = vunpack.c.l.b16 %v68
  %v379 = vunpack.c.l.b16 %v69
  %v380 = vunpack.c.h.b16 %v69
  %v381 = vunpack.c.l.b16 %v70
  %v382 = vunpack.c.l.b16 %v71
  %v383 = vunpack.c.h.b16 %v71
  %v384 = vunpack.c.l.b16 %v72
  %v385 = vunpack.c.l.b16 %v73
  %v386 = vunpack.c.h.b16 %v73
  %v387 = vunpack.c.l.b16 %v74
  %v388 = vunpack.c.l.b16 %v75
  %v389 = vunpack.c.h.b16 %v75
  %v390 = vunpack.c.l.b16 %v76
  %v391 = vunpack.c.l.b16 %v77
  %v392 = vunpack.c.h.b16 %v77
  %v393 = vunpack.c.l.b16 %v78
  %v394 = vunpack.c.l.b16 %v79
  %v395 = vunpack.c.h.b16 %v79
  %v396 = vunpack.c.l.b16 %v80
  %v397 = vunpack.c.l.b16 %v81
  %v398 = vunpack.c.h.b16 %v81
  %v399 = vunpack.c.l.b16 %v82
  %v400 = vunpack.c.l.b16 %v83
  %v401 = vunpack.c.h.b16 %v83
  %v402 = vunpack.c.l.b16 %v84
  %v403 = vunpack.c.l.b16 %v85
  %v404 = vunpack.c.h.b16 %v85
  %v405 = vunpack.c.l.b16 %v86
  %v406 = vunpack.c.l.b16 %v87
  %v407 = vunpack.c.h.b16 %v87
  %v408 = vunpack.c.l.b16 %v88
  %v409 = vunpack.c.l.b16 %v89
  %v410 = vunpack.c.h.b16 %v89
  %v411 = vunpack.c.l.b16 %v90
  %v412 = vunpack.c.l.b16 %v91
  %v413 = vunpack.c.h.b16 %v91
  %v414 = vunpack.c.l.b16 %v92
  %v415 = vunpack.c.l.b16 %v93
  %v416 = vunpack.c.h.b16 %v93
  %v417 = vunpack.c.l.b16 %v94
  %v418 = vunpack.c.l.b16 %v95
  %v419 = vunpack.c.h.b16 %v95
  %v420 = vunpack.c.l.b16 %v96
  %v421 = vunpack.c.l.b16 %v97
  %v422 = vunpack.c.h.b16 %v97
  %v423 = vunpack.c.l.b16 %v98
  %v424 = vunpack.c.l.b16 %v99
  %v425 = vunpack.c.h.b16 %v99
  %v426 = vunpack.c.l.b16 %v100
  %v427 = vunpack.c.l.b16 %v101
  %v428 = vunpack.c.h.b16 %v101
  %v429 = vunpack.c.l.b16 %v102
  %v430 = vunpack.c.l.b16 %v103
  %v431 = vunpack.c.h.b16 %v103
  %v432 = vunpack.c.l.b16 %v104
  %v433 = vunpack.c.l.b16 %v105
  %v434 = vunpack.c.h.b16 %v105
  %v435 = vunpack.c.l.b16 %v106
  %v436 = vunpack.c.l.b16 %v107
  %v437 = vunpack.c.h.b16 %v107
  %v438 = vunpack.c.l.b16 %v108
  %v439 = vunpack.c.l.b16 %v109
  %v440 = vunpack.c.h.b16 %v109
  %v441 = vunpack.c.l.b16 %v110
  %v442 = vunpack.c.l.b16 %v111
  %v443 = vunpack.c.h.b16 %v111
  %v444 = vunpack.c.l.b16 %v112
  %v445 = vunpack.c.l.b16 %v113
  %v446 = vunpack.c.h.b16 %v113
  %v447 = vunpack.c.l.b16 %v114
  %v448 = vunpack.c.l.b16 %v115
  %v449 = vunpack.c.h.b16 %v115
  %v450 = vunpack.c.l.b16 %v116
  %v451 = vunpack.c.l.b16 %v117
  %v452 = vunpack.c.h.b16 %v117
  %v453 = vunpack.c.l.b16 %v118
  %v454 = vunpack.c.l.b16 %v119
  %v455 = vunpack.c.h.b16 %v119
  %v456 = vunpack.c.l.b16 %v120
  %v457 = vunpack.c.l.b16 %v121
  %v458 = vunpack.c.h.b16 %v121
  %v459 = vunpack.c.l.b16 %v122
  %v460 = vunpack.c.l.b16 %v123
  %v461 = vunpack.c.h.b16 %v123
  %v462 = vunpack.c.l.b16 %v124
  %v463 = vunpack.c.l.b16 %v125
  %v464 = vunpack.c.h.b16 %v125
  %v465 = vunpack.c.l.b16 %v126
  %v466 = vunpack.c.l.b16 %v127
  %v467 = vunpack.c.h.b16 %v127
  %v468 = vunpack.c.l.b16 %v128
  %v469 = vpack.c.b16 %v301, %v298
  %v470 = vpack.c.b16 %v302, %v299
  %v471 = vpack.c.b16 %v303, %v300
  %v472 = vpack.c.b16 %v307, %v304
  %v473 = vpack.c.b16 %v308, %v305
  %v474 = vpack.c.b16 %v309, %v306
  %v475 = vpack.c.b16 %v313, %v310
  %v476 = vpack.c.b16 %v314, %v311
  %v477 = vpack.c.b16 %v315, %v312
  %v478 = vpack.c.b16 %v319, %v316
  %v479 = vpack.c.b16 %v320, %v317
  %v480 = vpack.c.b16 %v321, %v318
  %v481 = vpack.c.b16 %v325, %v322
  %v482 = vpack.c.b16 %v326, %v323
  %v483 = vpack.c.b16 %v327, %v324
  %v484 = vpack.c.b16 %v331, %v328
  %v485 = vpack.c.b16 %v332, %v329
  %v486 = vpack.c.b16 %v333, %v330
  %v487 = vpack.c.b16 %v337, %v334
  %v488 = vpack.c.b16 %v338, %v335
  %v489 = vpack.c.b16 %v339, %v336
  %v490 = vpack.c.b16 %v343, %v340
  %v491 = vpack.c.b16 %v344, %v341
  %v492 = vpack.c.b16 %v345, %v342
  %v493 = vpack.c.b16 %v349, %v346
  %v494 = vpack.c.b16 %v350, %v347
  %v495 = vpack.c.b16 %v351, %v348
  %v496 = vpack.c.b16 %v355, %v352
  %v497 = vpack.c.b16 %v356, %v353
  %v498 = vpack.c.b16 %v357, %v354
  %v499 = vpack.c.b16 %v361, %v358
  %v500 = vpack.c.b16 %v362, %v359
  %v501 = vpack.c.b16 %v363, %v360
  %v502 = vpack.c.b16 %v367, %v364
  %v503 = vpack.c.b16 %v368, %v365
  %v504 = vpack.c.b16 %v369, %v366
  %v505 = vpack.c.b16 %v373, %v370
  %v506 = vpack.c.b16 %v374, %v371
  %v507 = vpack.c.b16 %v375, %v372
  %v508 = vpack.c.b16 %v379, %v376
  %v509 = vpack.c.b16 %v380, %v377
  %v510 = vpack.c.b16 %v381, %v378
  %v511 = vpack.c.b16 %v385, %v382
  %v512 = vpack.c.b16 %v386, %v383
  %v513 = vpack.c.b16 %v387, %v384
  %v514 = vpack.c.b16 %v391, %v388
  %v515 = vpack.c.b16 %v392, %v389
  %v516 = vpack.c.b16 %v393, %v390
  %v517 = vpack.c.b16 %v397, %v394
  %v518 = vpack.c.b16 %v398, %v395
  %v519 = vpack.c.b16 %v399, %v396
  %v520 = vpack.c.b16 %v403, %v400
  %v521 = vpack.c.b16 %v404, %v401
  %v522 = vpack.c.b16 %v405, %v402
  %v523 = vpack.c.b16 %v409, %v406
  %v524 = vpack.c.b16 %v410, %v407
  %v525 = vpack.c.b16 %v411, %v408
  %v526 = vpack.c.b16 %v415, %v412
  %v527 = vpack.c.b16 %v416, %v413
  %v528 = vpack.c.b16 %v417, %v414
  %v529 = vpack.c.b16 %v421, %v418
  %v530 = vpack.c.b16 %v422, %v419
  %v531 = vpack.c.b16 %v423, %v420
  %v532 = vpack.c.b16 %v427, %v424
  %v533 = vpack.c.b16 %v428, %v425
  %v534 = vpack.c.b16 %v429, %v426
  %v535 = vpack.c.b16 %v433, %v430
  %v536 = vpack.c.b16 %v434, %v431
  %v537 = vpack.c.b16 %v435, %v432
  %v538 = vpack.c.b16 %v439, %v436
  %v539 = vpack.c.b16 %v440, %v437
  %v540 = vpack.c.b16 %v441, %v438
  %v541 = vpack.c.b16 %v445, %v442
  %v542 = vpack.c.b16 %v446, %v443
  %v543 = vpack.c.b16 %v447, %v444
  %v544 = vpack.c.b16 %v451, %v448
  %v545 = vpack.c.b16 %v452, %v449
  %v546 = vpack.c.b16 %v453, %v450
  %v547 = vpack.c.b16 %v457, %v454
  %v548 = vpack.c.b16 %v458, %v455
  %v549 = vpack.c.b16 %v459, %v456
  %v550 = vpack.c.b16 %v463, %v460
  %v551 = vpack.c.b16 %v464, %v461
  %v552 = vpack.c.b16 %v465, %v462
  %v553 = vpack.c.b16 %v466, %v466
  %v554 = vpack.c.b16 %v467, %v467
  %v555 = vpack.c.b16 %v468, %v468
  %v691 = vunpack.c.l.b16 %v129
  %v692 = vunpack.c.l.b16 %v130
  %v693 = vunpack.c.l.b16 %v131
  %v694 = vunpack.c.l.b16 %v132
  %v695 = vunpack.c.l.b16 %v133
  %v696 = vunpack.c.l.b16 %v134
  %v697 = vunpack.c.l.b16 %v135
  %v698 = vunpack.c.l.b16 %v136
  %v699 = vunpack.c.l.b16 %v137
  %v700 = vunpack.c.l.b16 %v138
  %v701 = vunpack.c.l.b16 %v139
  %v702 = vunpack.c.l.b16 %v140
  %v703 = vunpack.c.l.b16 %v141
  %v704 = vunpack.c.l.b16 %v142
  %v705 = vunpack.c.l.b16 %v143
  %v706 = vunpack.c.l.b16 %v144
  %v707 = vunpack.c.l.b16 %v145
  %v708 = vunpack.c.l.b16 %v146
  %v709 = vunpack.c.l.b16 %v147
  %v710 = vunpack.c.l.b16 %v148
  %v711 = vunpack.c.l.b16 %v149
  %v712 = vunpack.c.l.b16 %v150
  %v713 = vunpack.c.l.b16 %v151
  %v714 = vunpack.c.l.b16 %v152
  %v715 = vunpack.c.l.b16 %v153
  %v716 = vunpack.c.l.b16 %v154
  %v717 = vunpack.c.l.b16 %v155
  %v718 = vunpack.c.l.b16 %v156
  %v719 = vunpack.c.l.b16 %v157
  %v720 = vunpack.c.l.b16 %v158
  %v721 = vunpack.c.l.b16 %v159
  %v722 = vunpack.c.l.b16 %v160
  %v723 = vunpack.c.l.b16 %v161
  %v724 = vunpack.c.l.b16 %v162
  %v725 = vunpack.c.l.b16 %v163
  %v726 = vunpack.c.l.b16 %v164
  %v727 = vunpack.c.l.b16 %v165
  %v728 = vunpack.c.l.b16 %v166
  %v729 = vunpack.c.l.b16 %v167
  %v730 = vunpack.c.l.b16 %v168
  %v731 = vunpack.c.l.b16 %v169
  %v732 = vunpack.c.l.b16 %v170
  %v733 = vunpack.c.l.b16 %v171
  %v734 = vunpack.c.l.b16 %v172
  %v735 = vunpack.c.l.b16 %v173
  %v736 = vunpack.c.l.b16 %v174
  %v737 = vunpack.c.l.b16 %v175
  %v738 = vunpack.c.l.b16 %v176
  %v739 = vpack.c.b16 %v692, %v691
  %v740 = vpack.c.b16 %v694, %v693
  %v741 = vpack.c.b16 %v696, %v695
  %v742 = vpack.c.b16 %v698, %v697
  %v743 = vpack.c.b16 %v700, %v699
  %v744 = vpack.c.b16 %v702, %v701
  %v745 = vpack.c.b16 %v704, %v703
  %v746 = vpack.c.b16 %v706, %v705
  %v747 = vpack.c.b16 %v708, %v707
  %v748 = vpack.c.b16 %v710, %v709
  %v749 = vpack.c.b16 %v712, %v711
  %v750 = vpack.c.b16 %v714, %v713
  %v751 = vpack.c.b16 %v716, %v715
  %v752 = vpack.c.b16 %v718, %v717
  %v753 = vpack.c.b16 %v720, %v719
  %v754 = vpack.c.b16 %v722, %v721
  %v755 = vpack.c.b16 %v724, %v723
  %v756 = vpack.c.b16 %v726, %v725
  %v757 = vpack.c.b16 %v728, %v727
  %v758 = vpack.c.b16 %v730, %v729
  %v759 = vpack.c.b16 %v732, %v731
  %v760 = vpack.c.b16 %v734, %v733
  %v761 = vpack.c.b16 %v736, %v735
  %v762 = vpack.c.b16 %v738, %v737
  %787 = vmatprep.subr.bf16.mxu0 0
  %788 = vmatpush1.bf16.msra.mxu0 %v739
  %789 = vmatprep.subr.bf16.mxu0 0
  %790 = vmatpush1.bf16.msra.mxu0 %v740
  %791 = vmatprep.subr.bf16.mxu0 0
  %792 = vmatpush1.bf16.msra.mxu0 %v741
  %793 = vmatprep.subr.bf16.mxu0 0
  %794 = vmatpush1.bf16.msra.mxu0 %v742
  %795 = vmatprep.subr.bf16.mxu0 0
  %796 = vmatpush1.bf16.msra.mxu0 %v743
  %797 = vmatprep.subr.bf16.mxu0 0
  %798 = vmatpush1.bf16.msra.mxu0 %v744
  %799 = vmatprep.subr.bf16.mxu0 0
  %800 = vmatpush1.bf16.msra.mxu0 %v745
  %801 = vmatprep.subr.bf16.mxu0 0
  %802 = vmatpush1.bf16.msra.mxu0 %v746
  %803 = vmatprep.subr.bf16.mxu0 0
  %804 = vmatpush1.bf16.msra.mxu0 %v747
  %805 = vmatprep.subr.bf16.mxu0 0
  %806 = vmatpush1.bf16.msra.mxu0 %v748
  %807 = vmatprep.subr.bf16.mxu0 0
  %808 = vmatpush1.bf16.msra.mxu0 %v749
  %809 = vmatprep.subr.bf16.mxu0 0
  %810 = vmatpush1.bf16.msra.mxu0 %v750
  %811 = vmatprep.subr.bf16.mxu0 0
  %812 = vmatpush1.bf16.msra.mxu0 %v751
  %813 = vmatprep.subr.bf16.mxu0 0
  %814 = vmatpush1.bf16.msra.mxu0 %v752
  %815 = vmatprep.subr.bf16.mxu0 0
  %816 = vmatpush1.bf16.msra.mxu0 %v753
  %817 = vmatprep.subr.bf16.mxu0 0
  %818 = vmatpush1.bf16.msra.mxu0 %v754
  %819 = vmatprep.mubr.bf16.mxu0 %v470
  %820 = vmatmul.mubr.bf16.gmra.mrb[0].mxu0 %v469
  %v821 = vpop.f32.mrb[0].mxu0
  %v822 = vadd.f32 %v182, %v821
  %v823 = vpop.f32.mrb[0].mxu0
  %v824 = vpop.f32.mrb[0].mxu0
  %v825 = vadd.f32 %v182, %v824
  %v826 = vpop.f32.mrb[0].mxu0
  %827 = vmatprep.mubr.bf16.mxu0 %v473
  %828 = vmatmul.mubr.bf16.gmra.mrb[0].mxu0 %v472
  %v829 = vpop.f32.mrb[0].mxu0
  %v830 = vadd.f32 %v182, %v829
  %v831 = vpop.f32.mrb[0].mxu0
  %v832 = vpop.f32.mrb[0].mxu0
  %v833 = vadd.f32 %v182, %v832
  %v834 = vpop.f32.mrb[0].mxu0
  %835 = vmatprep.mubr.bf16.mxu0 %v476
  %836 = vmatmul.mubr.bf16.gmra.mrb[0].mxu0 %v475
  %v837 = vpop.f32.mrb[0].mxu0
  %v838 = vadd.f32 %v182, %v837
  %v839 = vpop.f32.mrb[0].mxu0
  %v840 = vpop.f32.mrb[0].mxu0
  %v841 = vadd.f32 %v182, %v840
  %v842 = vpop.f32.mrb[0].mxu0
  %843 = vmatprep.mubr.bf16.mxu0 %v479
  %844 = vmatmul.mubr.bf16.gmra.mrb[0].mxu0 %v478
  %v845 = vpop.f32.mrb[0].mxu0
  %v846 = vadd.f32 %v182, %v845
  %v847 = vpop.f32.mrb[0].mxu0
  %v848 = vpop.f32.mrb[0].mxu0
  %v849 = vadd.f32 %v182, %v848
  %v850 = vpop.f32.mrb[0].mxu0
  %851 = vmatprep.mubr.bf16.mxu0 %v482
  %852 = vmatmul.mubr.bf16.gmra.mrb[0].mxu0 %v481
  %v853 = vpop.f32.mrb[0].mxu0
  %v854 = vadd.f32 %v182, %v853
  %v855 = vpop.f32.mrb[0].mxu0
  %v856 = vpop.f32.mrb[0].mxu0
  %v857 = vadd.f32 %v182, %v856
  %v858 = vpop.f32.mrb[0].mxu0
  %859 = vmatprep.mubr.bf16.mxu0 %v485
  %860 = vmatmul.mubr.bf16.gmra.mrb[0].mxu0 %v484
  %v861 = vpop.f32.mrb[0].mxu0
  %v862 = vadd.f32 %v182, %v861
  %v863 = vpop.f32.mrb[0].mxu0
  %v864 = vpop.f32.mrb[0].mxu0
  %v865 = vadd.f32 %v182, %v864
  %v866 = vpop.f32.mrb[0].mxu0
  %867 = vmatprep.mubr.bf16.mxu0 %v488
  %868 = vmatmul.mubr.bf16.gmra.mrb[0].mxu0 %v487
  %v869 = vpop.f32.mrb[0].mxu0
  %v870 = vadd.f32 %v182, %v869
  %v871 = vpop.f32.mrb[0].mxu0
  %v872 = vpop.f32.mrb[0].mxu0
  %v873 = vadd.f32 %v182, %v872
  %v874 = vpop.f32.mrb[0].mxu0
  %875 = vmatprep.mubr.bf16.mxu0 %v491
  %876 = vmatmul.mubr.bf16.gmra.mrb[0].mxu0 %v490
  %v877 = vpop.f32.mrb[0].mxu0
  %v878 = vadd.f32 %v182, %v877
  %v879 = vpop.f32.mrb[0].mxu0
  %v880 = vpop.f32.mrb[0].mxu0
  %v881 = vadd.f32 %v182, %v880
  %v882 = vpop.f32.mrb[0].mxu0
  %883 = vmatprep.mubr.bf16.mxu0 %v494
  %884 = vmatmul.mubr.bf16.gmra.mrb[0].mxu0 %v493
  %v885 = vpop.f32.mrb[0].mxu0
  %v886 = vadd.f32 %v182, %v885
  %v887 = vpop.f32.mrb[0].mxu0
  %v888 = vpop.f32.mrb[0].mxu0
  %v889 = vadd.f32 %v182, %v888
  %v890 = vpop.f32.mrb[0].mxu0
  %891 = vmatprep.mubr.bf16.mxu0 %v497
  %892 = vmatmul.mubr.bf16.gmra.mrb[0].mxu0 %v496
  %v893 = vpop.f32.mrb[0].mxu0
  %v894 = vadd.f32 %v182, %v893
  %v895 = vpop.f32.mrb[0].mxu0
  %v896 = vpop.f32.mrb[0].mxu0
  %v897 = vadd.f32 %v182, %v896
  %v898 = vpop.f32.mrb[0].mxu0
  %899 = vmatprep.mubr.bf16.mxu0 %v500
  %900 = vmatmul.mubr.bf16.gmra.mrb[0].mxu0 %v499
  %v901 = vpop.f32.mrb[0].mxu0
  %v902 = vadd.f32 %v182, %v901
  %v903 = vpop.f32.mrb[0].mxu0
  %v904 = vpop.f32.mrb[0].mxu0
  %v905 = vadd.f32 %v182, %v904
  %v906 = vpop.f32.mrb[0].mxu0
  %907 = vmatprep.mubr.bf16.mxu0 %v503
  %908 = vmatmul.mubr.bf16.gmra.mrb[0].mxu0 %v502
  %v909 = vpop.f32.mrb[0].mxu0
  %v910 = vadd.f32 %v182, %v909
  %v911 = vpop.f32.mrb[0].mxu0
  %v912 = vpop.f32.mrb[0].mxu0
  %v913 = vadd.f32 %v182, %v912
  %v914 = vpop.f32.mrb[0].mxu0
  %915 = vmatprep.mubr.bf16.mxu0 %v506
  %916 = vmatmul.mubr.bf16.gmra.mrb[0].mxu0 %v505
  %v917 = vpop.f32.mrb[0].mxu0
  %v918 = vadd.f32 %v182, %v917
  %v919 = vpop.f32.mrb[0].mxu0
  %v920 = vpop.f32.mrb[0].mxu0
  %v921 = vadd.f32 %v182, %v920
  %v922 = vpop.f32.mrb[0].mxu0
  %923 = vmatprep.mubr.bf16.mxu0 %v509
  %924 = vmatmul.mubr.bf16.gmra.mrb[0].mxu0 %v508
  %v925 = vpop.f32.mrb[0].mxu0
  %v926 = vadd.f32 %v182, %v925
  %v927 = vpop.f32.mrb[0].mxu0
  %v928 = vpop.f32.mrb[0].mxu0
  %v929 = vadd.f32 %v182, %v928
  %v930 = vpop.f32.mrb[0].mxu0
  %931 = vmatprep.mubr.bf16.mxu0 %v512
  %932 = vmatmul.mubr.bf16.gmra.mrb[0].mxu0 %v511
  %v933 = vpop.f32.mrb[0].mxu0
  %v934 = vadd.f32 %v182, %v933
  %v935 = vpop.f32.mrb[0].mxu0
  %v936 = vpop.f32.mrb[0].mxu0
  %v937 = vadd.f32 %v182, %v936
  %v938 = vpop.f32.mrb[0].mxu0
  %939 = vmatprep.mubr.bf16.mxu0 %v515
  %940 = vmatmul.mubr.bf16.gmra.mrb[0].mxu0 %v514
  %v941 = vpop.f32.mrb[0].mxu0
  %v942 = vadd.f32 %v182, %v941
  %v943 = vpop.f32.mrb[0].mxu0
  %v944 = vpop.f32.mrb[0].mxu0
  %v945 = vadd.f32 %v182, %v944
  %v946 = vpop.f32.mrb[0].mxu0
  %947 = vmatprep.mubr.bf16.mxu0 %v518
  %948 = vmatmul.mubr.bf16.gmra.mrb[0].mxu0 %v517
  %v949 = vpop.f32.mrb[0].mxu0
  %v950 = vadd.f32 %v182, %v949
  %v951 = vpop.f32.mrb[0].mxu0
  %v952 = vpop.f32.mrb[0].mxu0
  %v953 = vadd.f32 %v182, %v952
  %v954 = vpop.f32.mrb[0].mxu0
  %955 = vmatprep.mubr.bf16.mxu0 %v521
  %956 = vmatmul.mubr.bf16.gmra.mrb[0].mxu0 %v520
  %v957 = vpop.f32.mrb[0].mxu0
  %v958 = vadd.f32 %v182, %v957
  %v959 = vpop.f32.mrb[0].mxu0
  %v960 = vpop.f32.mrb[0].mxu0
  %v961 = vadd.f32 %v182, %v960
  %v962 = vpop.f32.mrb[0].mxu0
  %963 = vmatprep.mubr.bf16.mxu0 %v524
  %964 = vmatmul.mubr.bf16.gmra.mrb[0].mxu0 %v523
  %v965 = vpop.f32.mrb[0].mxu0
  %v966 = vadd.f32 %v182, %v965
  %v967 = vpop.f32.mrb[0].mxu0
  %v968 = vpop.f32.mrb[0].mxu0
  %v969 = vadd.f32 %v182, %v968
  %v970 = vpop.f32.mrb[0].mxu0
  %971 = vmatprep.mubr.bf16.mxu0 %v527
  %972 = vmatmul.mubr.bf16.gmra.mrb[0].mxu0 %v526
  %v973 = vpop.f32.mrb[0].mxu0
  %v974 = vadd.f32 %v182, %v973
  %v975 = vpop.f32.mrb[0].mxu0
  %v976 = vpop.f32.mrb[0].mxu0
  %v977 = vadd.f32 %v182, %v976
  %v978 = vpop.f32.mrb[0].mxu0
  %979 = vmatprep.mubr.bf16.mxu0 %v530
  %980 = vmatmul.mubr.bf16.gmra.mrb[0].mxu0 %v529
  %v981 = vpop.f32.mrb[0].mxu0
  %v982 = vadd.f32 %v182, %v981
  %v983 = vpop.f32.mrb[0].mxu0
  %v984 = vpop.f32.mrb[0].mxu0
  %v985 = vadd.f32 %v182, %v984
  %v986 = vpop.f32.mrb[0].mxu0
  %987 = vmatprep.mubr.bf16.mxu0 %v533
  %988 = vmatmul.mubr.bf16.gmra.mrb[0].mxu0 %v532
  %v989 = vpop.f32.mrb[0].mxu0
  %v990 = vadd.f32 %v182, %v989
  %v991 = vpop.f32.mrb[0].mxu0
  %v992 = vpop.f32.mrb[0].mxu0
  %v993 = vadd.f32 %v182, %v992
  %v994 = vpop.f32.mrb[0].mxu0
  %995 = vmatprep.mubr.bf16.mxu0 %v536
  %996 = vmatmul.mubr.bf16.gmra.mrb[0].mxu0 %v535
  %v997 = vpop.f32.mrb[0].mxu0
  %v998 = vadd.f32 %v182, %v997
  %v999 = vpop.f32.mrb[0].mxu0
  %v1000 = vpop.f32.mrb[0].mxu0
  %v1001 = vadd.f32 %v182, %v1000
  %v1002 = vpop.f32.mrb[0].mxu0
  %1003 = vmatprep.mubr.bf16.mxu0 %v539
  %1004 = vmatmul.mubr.bf16.gmra.mrb[0].mxu0 %v538
  %v1005 = vpop.f32.mrb[0].mxu0
  %v1006 = vadd.f32 %v182, %v1005
  %v1007 = vpop.f32.mrb[0].mxu0
  %v1008 = vpop.f32.mrb[0].mxu0
  %v1009 = vadd.f32 %v182, %v1008
  %v1010 = vpop.f32.mrb[0].mxu0
  %1011 = vmatprep.mubr.bf16.mxu0 %v542
  %1012 = vmatmul.mubr.bf16.gmra.mrb[0].mxu0 %v541
  %v1013 = vpop.f32.mrb[0].mxu0
  %v1014 = vadd.f32 %v182, %v1013
  %v1015 = vpop.f32.mrb[0].mxu0
  %v1016 = vpop.f32.mrb[0].mxu0
  %v1017 = vadd.f32 %v182, %v1016
  %v1018 = vpop.f32.mrb[0].mxu0
  %1019 = vmatprep.mubr.bf16.mxu0 %v545
  %1020 = vmatmul.mubr.bf16.gmra.mrb[0].mxu0 %v544
  %v1021 = vpop.f32.mrb[0].mxu0
  %v1022 = vadd.f32 %v182, %v1021
  %v1023 = vpop.f32.mrb[0].mxu0
  %v1024 = vpop.f32.mrb[0].mxu0
  %v1025 = vadd.f32 %v182, %v1024
  %v1026 = vpop.f32.mrb[0].mxu0
  %1027 = vmatprep.mubr.bf16.mxu0 %v548
  %1028 = vmatmul.mubr.bf16.gmra.mrb[0].mxu0 %v547
  %v1029 = vpop.f32.mrb[0].mxu0
  %v1030 = vadd.f32 %v182, %v1029
  %v1031 = vpop.f32.mrb[0].mxu0
  %v1032 = vpop.f32.mrb[0].mxu0
  %v1033 = vadd.f32 %v182, %v1032
  %v1034 = vpop.f32.mrb[0].mxu0
  %1035 = vmatprep.mubr.bf16.mxu0 %v551
  %1036 = vmatmul.mubr.bf16.gmra.mrb[0].mxu0 %v550
  %v1037 = vpop.f32.mrb[0].mxu0
  %v1038 = vadd.f32 %v182, %v1037
  %v1039 = vpop.f32.mrb[0].mxu0
  %v1040 = vpop.f32.mrb[0].mxu0
  %v1041 = vadd.f32 %v182, %v1040
  %v1042 = vpop.f32.mrb[0].mxu0
  %1043 = vmatprep.mubr.bf16.mxu0 %v554
  %1044 = vmatmul.mubr.bf16.gmra.mrb[0].mxu0 %v553
  %v1045 = vpop.f32.mrb[0].mxu0
  %v1046 = vadd.f32 %v182, %v1045
  %v1047 = vpop.f32.mrb[0].mxu0
  %v1048 = vpop.f32.mrb[0].mxu0
  %v1049 = vpop.f32.mrb[0].mxu0
  %1050 = vdwg.mxu0
  %1051 = vmatprep.subr.bf16.mxu0 0
  %1052 = vmatpush1.bf16.msra.mxu0 %v755
  %1053 = vmatprep.subr.bf16.mxu0 0
  %1054 = vmatpush1.bf16.msra.mxu0 %v756
  %1055 = vmatprep.subr.bf16.mxu0 0
  %1056 = vmatpush1.bf16.msra.mxu0 %v757
  %1057 = vmatprep.subr.bf16.mxu0 0
  %1058 = vmatpush1.bf16.msra.mxu0 %v758
  %1059 = vmatprep.subr.bf16.mxu0 0
  %1060 = vmatpush1.bf16.msra.mxu0 %v759
  %1061 = vmatprep.subr.bf16.mxu0 0
  %1062 = vmatpush1.bf16.msra.mxu0 %v760
  %1063 = vmatprep.subr.bf16.mxu0 0
  %1064 = vmatpush1.bf16.msra.mxu0 %v761
  %1065 = vmatprep.subr.bf16.mxu0 0
  %1066 = vmatpush1.bf16.msra.mxu0 %v762
  %1067 = vmatprep.subr.bf16.mxu0 0
  %1068 = vmatpush1.bf16.msra.mxu0 0
  %1069 = vmatprep.subr.bf16.mxu0 0
  %1070 = vmatpush1.bf16.msra.mxu0 0
  %1071 = vmatprep.subr.bf16.mxu0 0
  %1072 = vmatpush1.bf16.msra.mxu0 0
  %1073 = vmatprep.subr.bf16.mxu0 0
  %1074 = vmatpush1.bf16.msra.mxu0 0
  %1075 = vmatprep.subr.bf16.mxu0 0
  %1076 = vmatpush1.bf16.msra.mxu0 0
  %1077 = vmatprep.subr.bf16.mxu0 0
  %1078 = vmatpush1.bf16.msra.mxu0 0
  %1079 = vmatprep.subr.bf16.mxu0 0
  %1080 = vmatpush1.bf16.msra.mxu0 0
  %1081 = vmatprep.subr.bf16.mxu0 0
  %1082 = vmatpush1.bf16.msra.mxu0 0
  %1083 = vmatprep.mubr.bf16.mxu0 0
  %1084 = vmatmul.mubr.bf16.gmra.mrb[0].mxu0 %v471
  %v1085 = vpop.f32.mrb[0].mxu0
  %v1086 = vadd.f32 %v822, %v1085
  %v1087 = vpop.f32.mrb[0].mxu0
  %v1088 = vpop.f32.mrb[0].mxu0
  %v1089 = vadd.f32 %v825, %v1088
  %v1090 = vpop.f32.mrb[0].mxu0
  %1091 = vmatprep.mubr.bf16.mxu0 0
  %1092 = vmatmul.mubr.bf16.gmra.mrb[0].mxu0 %v474
  %v1093 = vpop.f32.mrb[0].mxu0
  %v1094 = vadd.f32 %v830, %v1093
  %v1095 = vpop.f32.mrb[0].mxu0
  %v1096 = vpop.f32.mrb[0].mxu0
  %v1097 = vadd.f32 %v833, %v1096
  %v1098 = vpop.f32.mrb[0].mxu0
  %1099 = vmatprep.mubr.bf16.mxu0 0
  %1100 = vmatmul.mubr.bf16.gmra.mrb[0].mxu0 %v477
  %v1101 = vpop.f32.mrb[0].mxu0
  %v1102 = vadd.f32 %v838, %v1101
  %v1103 = vpop.f32.mrb[0].mxu0
  %v1104 = vpop.f32.mrb[0].mxu0
  %v1105 = vadd.f32 %v841, %v1104
  %v1106 = vpop.f32.mrb[0].mxu0
  %1107 = vmatprep.mubr.bf16.mxu0 0
  %1108 = vmatmul.mubr.bf16.gmra.mrb[0].mxu0 %v480
  %v1109 = vpop.f32.mrb[0].mxu0
  %v1110 = vadd.f32 %v846, %v1109
  %v1111 = vpop.f32.mrb[0].mxu0
  %v1112 = vpop.f32.mrb[0].mxu0
  %v1113 = vadd.f32 %v849, %v1112
  %v1114 = vpop.f32.mrb[0].mxu0
  %1115 = vmatprep.mubr.bf16.mxu0 0
  %1116 = vmatmul.mubr.bf16.gmra.mrb[0].mxu0 %v483
  %v1117 = vpop.f32.mrb[0].mxu0
  %v1118 = vadd.f32 %v854, %v1117
  %v1119 = vpop.f32.mrb[0].mxu0
  %v1120 = vpop.f32.mrb[0].mxu0
  %v1121 = vadd.f32 %v857, %v1120
  %v1122 = vpop.f32.mrb[0].mxu0
  %1123 = vmatprep.mubr.bf16.mxu0 0
  %1124 = vmatmul.mubr.bf16.gmra.mrb[0].mxu0 %v486
  %v1125 = vpop.f32.mrb[0].mxu0
  %v1126 = vadd.f32 %v862, %v1125
  %v1127 = vpop.f32.mrb[0].mxu0
  %v1128 = vpop.f32.mrb[0].mxu0
  %v1129 = vadd.f32 %v865, %v1128
  %v1130 = vpop.f32.mrb[0].mxu0
  %1131 = vmatprep.mubr.bf16.mxu0 0
  %1132 = vmatmul.mubr.bf16.gmra.mrb[0].mxu0 %v489
  %v1133 = vpop.f32.mrb[0].mxu0
  %v1134 = vadd.f32 %v870, %v1133
  %v1135 = vpop.f32.mrb[0].mxu0
  %v1136 = vpop.f32.mrb[0].mxu0
  %v1137 = vadd.f32 %v873, %v1136
  %v1138 = vpop.f32.mrb[0].mxu0
  %1139 = vmatprep.mubr.bf16.mxu0 0
  %1140 = vmatmul.mubr.bf16.gmra.mrb[0].mxu0 %v492
  %v1141 = vpop.f32.mrb[0].mxu0
  %v1142 = vadd.f32 %v878, %v1141
  %v1143 = vpop.f32.mrb[0].mxu0
  %v1144 = vpop.f32.mrb[0].mxu0
  %v1145 = vadd.f32 %v881, %v1144
  %v1146 = vpop.f32.mrb[0].mxu0
  %1147 = vmatprep.mubr.bf16.mxu0 0
  %1148 = vmatmul.mubr.bf16.gmra.mrb[0].mxu0 %v495
  %v1149 = vpop.f32.mrb[0].mxu0
  %v1150 = vadd.f32 %v886, %v1149
  %v1151 = vpop.f32.mrb[0].mxu0
  %v1152 = vpop.f32.mrb[0].mxu0
  %v1153 = vadd.f32 %v889, %v1152
  %v1154 = vpop.f32.mrb[0].mxu0
  %1155 = vmatprep.mubr.bf16.mxu0 0
  %1156 = vmatmul.mubr.bf16.gmra.mrb[0].mxu0 %v498
  %v1157 = vpop.f32.mrb[0].mxu0
  %v1158 = vadd.f32 %v894, %v1157
  %v1159 = vpop.f32.mrb[0].mxu0
  %v1160 = vpop.f32.mrb[0].mxu0
  %v1161 = vadd.f32 %v897, %v1160
  %v1162 = vpop.f32.mrb[0].mxu0
  %1163 = vmatprep.mubr.bf16.mxu0 0
  %1164 = vmatmul.mubr.bf16.gmra.mrb[0].mxu0 %v501
  %v1165 = vpop.f32.mrb[0].mxu0
  %v1166 = vadd.f32 %v902, %v1165
  %v1167 = vpop.f32.mrb[0].mxu0
  %v1168 = vpop.f32.mrb[0].mxu0
  %v1169 = vadd.f32 %v905, %v1168
  %v1170 = vpop.f32.mrb[0].mxu0
  %1171 = vmatprep.mubr.bf16.mxu0 0
  %1172 = vmatmul.mubr.bf16.gmra.mrb[0].mxu0 %v504
  %v1173 = vpop.f32.mrb[0].mxu0
  %v1174 = vadd.f32 %v910, %v1173
  %v1175 = vpop.f32.mrb[0].mxu0
  %v1176 = vpop.f32.mrb[0].mxu0
  %v1177 = vadd.f32 %v913, %v1176
  %v1178 = vpop.f32.mrb[0].mxu0
  %1179 = vmatprep.mubr.bf16.mxu0 0
  %1180 = vmatmul.mubr.bf16.gmra.mrb[0].mxu0 %v507
  %v1181 = vpop.f32.mrb[0].mxu0
  %v1182 = vadd.f32 %v918, %v1181
  %v1183 = vpop.f32.mrb[0].mxu0
  %v1184 = vpop.f32.mrb[0].mxu0
  %v1185 = vadd.f32 %v921, %v1184
  %v1186 = vpop.f32.mrb[0].mxu0
  %1187 = vmatprep.mubr.bf16.mxu0 0
  %1188 = vmatmul.mubr.bf16.gmra.mrb[0].mxu0 %v510
  %v1189 = vpop.f32.mrb[0].mxu0
  %v1190 = vadd.f32 %v926, %v1189
  %v1191 = vpop.f32.mrb[0].mxu0
  %v1192 = vpop.f32.mrb[0].mxu0
  %v1193 = vadd.f32 %v929, %v1192
  %v1194 = vpop.f32.mrb[0].mxu0
  %1195 = vmatprep.mubr.bf16.mxu0 0
  %1196 = vmatmul.mubr.bf16.gmra.mrb[0].mxu0 %v513
  %v1197 = vpop.f32.mrb[0].mxu0
  %v1198 = vadd.f32 %v934, %v1197
  %v1199 = vpop.f32.mrb[0].mxu0
  %v1200 = vpop.f32.mrb[0].mxu0
  %v1201 = vadd.f32 %v937, %v1200
  %v1202 = vpop.f32.mrb[0].mxu0
  %1203 = vmatprep.mubr.bf16.mxu0 0
  %1204 = vmatmul.mubr.bf16.gmra.mrb[0].mxu0 %v516
  %v1205 = vpop.f32.mrb[0].mxu0
  %v1206 = vadd.f32 %v942, %v1205
  %v1207 = vpop.f32.mrb[0].mxu0
  %v1208 = vpop.f32.mrb[0].mxu0
  %v1209 = vadd.f32 %v945, %v1208
  %v1210 = vpop.f32.mrb[0].mxu0
  %1211 = vmatprep.mubr.bf16.mxu0 0
  %1212 = vmatmul.mubr.bf16.gmra.mrb[0].mxu0 %v519
  %v1213 = vpop.f32.mrb[0].mxu0
  %v1214 = vadd.f32 %v950, %v1213
  %v1215 = vpop.f32.mrb[0].mxu0
  %v1216 = vpop.f32.mrb[0].mxu0
  %v1217 = vadd.f32 %v953, %v1216
  %v1218 = vpop.f32.mrb[0].mxu0
  %1219 = vmatprep.mubr.bf16.mxu0 0
  %1220 = vmatmul.mubr.bf16.gmra.mrb[0].mxu0 %v522
  %v1221 = vpop.f32.mrb[0].mxu0
  %v1222 = vadd.f32 %v958, %v1221
  %v1223 = vpop.f32.mrb[0].mxu0
  %v1224 = vpop.f32.mrb[0].mxu0
  %v1225 = vadd.f32 %v961, %v1224
  %v1226 = vpop.f32.mrb[0].mxu0
  %1227 = vmatprep.mubr.bf16.mxu0 0
  %1228 = vmatmul.mubr.bf16.gmra.mrb[0].mxu0 %v525
  %v1229 = vpop.f32.mrb[0].mxu0
  %v1230 = vadd.f32 %v966, %v1229
  %v1231 = vpop.f32.mrb[0].mxu0
  %v1232 = vpop.f32.mrb[0].mxu0
  %v1233 = vadd.f32 %v969, %v1232
  %v1234 = vpop.f32.mrb[0].mxu0
  %1235 = vmatprep.mubr.bf16.mxu0 0
  %1236 = vmatmul.mubr.bf16.gmra.mrb[0].mxu0 %v528
  %v1237 = vpop.f32.mrb[0].mxu0
  %v1238 = vadd.f32 %v974, %v1237
  %v1239 = vpop.f32.mrb[0].mxu0
  %v1240 = vpop.f32.mrb[0].mxu0
  %v1241 = vadd.f32 %v977, %v1240
  %v1242 = vpop.f32.mrb[0].mxu0
  %1243 = vmatprep.mubr.bf16.mxu0 0
  %1244 = vmatmul.mubr.bf16.gmra.mrb[0].mxu0 %v531
  %v1245 = vpop.f32.mrb[0].mxu0
  %v1246 = vadd.f32 %v982, %v1245
  %v1247 = vpop.f32.mrb[0].mxu0
  %v1248 = vpop.f32.mrb[0].mxu0
  %v1249 = vadd.f32 %v985, %v1248
  %v1250 = vpop.f32.mrb[0].mxu0
  %1251 = vmatprep.mubr.bf16.mxu0 0
  %1252 = vmatmul.mubr.bf16.gmra.mrb[0].mxu0 %v534
  %v1253 = vpop.f32.mrb[0].mxu0
  %v1254 = vadd.f32 %v990, %v1253
  %v1255 = vpop.f32.mrb[0].mxu0
  %v1256 = vpop.f32.mrb[0].mxu0
  %v1257 = vadd.f32 %v993, %v1256
  %v1258 = vpop.f32.mrb[0].mxu0
  %1259 = vmatprep.mubr.bf16.mxu0 0
  %1260 = vmatmul.mubr.bf16.gmra.mrb[0].mxu0 %v537
  %v1261 = vpop.f32.mrb[0].mxu0
  %v1262 = vadd.f32 %v998, %v1261
  %v1263 = vpop.f32.mrb[0].mxu0
  %v1264 = vpop.f32.mrb[0].mxu0
  %v1265 = vadd.f32 %v1001, %v1264
  %v1266 = vpop.f32.mrb[0].mxu0
  %1267 = vmatprep.mubr.bf16.mxu0 0
  %1268 = vmatmul.mubr.bf16.gmra.mrb[0].mxu0 %v540
  %v1269 = vpop.f32.mrb[0].mxu0
  %v1270 = vadd.f32 %v1006, %v1269
  %v1271 = vpop.f32.mrb[0].mxu0
  %v1272 = vpop.f32.mrb[0].mxu0
  %v1273 = vadd.f32 %v1009, %v1272
  %v1274 = vpop.f32.mrb[0].mxu0
  %1275 = vmatprep.mubr.bf16.mxu0 0
  %1276 = vmatmul.mubr.bf16.gmra.mrb[0].mxu0 %v543
  %v1277 = vpop.f32.mrb[0].mxu0
  %v1278 = vadd.f32 %v1014, %v1277
  %v1279 = vpop.f32.mrb[0].mxu0
  %v1280 = vpop.f32.mrb[0].mxu0
  %v1281 = vadd.f32 %v1017, %v1280
  %v1282 = vpop.f32.mrb[0].mxu0
  %1283 = vmatprep.mubr.bf16.mxu0 0
  %1284 = vmatmul.mubr.bf16.gmra.mrb[0].mxu0 %v546
  %v1285 = vpop.f32.mrb[0].mxu0
  %v1286 = vadd.f32 %v1022, %v1285
  %v1287 = vpop.f32.mrb[0].mxu0
  %v1288 = vpop.f32.mrb[0].mxu0
  %v1289 = vadd.f32 %v1025, %v1288
  %v1290 = vpop.f32.mrb[0].mxu0
  %1291 = vmatprep.mubr.bf16.mxu0 0
  %1292 = vmatmul.mubr.bf16.gmra.mrb[0].mxu0 %v549
  %v1293 = vpop.f32.mrb[0].mxu0
  %v1294 = vadd.f32 %v1030, %v1293
  %v1295 = vpop.f32.mrb[0].mxu0
  %v1296 = vpop.f32.mrb[0].mxu0
  %v1297 = vadd.f32 %v1033, %v1296
  %v1298 = vpop.f32.mrb[0].mxu0
  %1299 = vmatprep.mubr.bf16.mxu0 0
  %1300 = vmatmul.mubr.bf16.gmra.mrb[0].mxu0 %v552
  %v1301 = vpop.f32.mrb[0].mxu0
  %v1302 = vadd.f32 %v1038, %v1301
  %v1303 = vpop.f32.mrb[0].mxu0
  %v1304 = vpop.f32.mrb[0].mxu0
  %v1305 = vadd.f32 %v1041, %v1304
  %v1306 = vpop.f32.mrb[0].mxu0
  %1307 = vmatprep.mubr.bf16.mxu0 0
  %1308 = vmatmul.mubr.bf16.gmra.mrb[0].mxu0 %v555
  %v1309 = vpop.f32.mrb[0].mxu0
  %v1310 = vadd.f32 %v1046, %v1309
  %v1311 = vpop.f32.mrb[0].mxu0
  %v1312 = vpop.f32.mrb[0].mxu0
  %v1313 = vpop.f32.mrb[0].mxu0
  %1314 = vdwg.mxu0
  %v1315 = vmax.f32 %v1086, 0.0
  %v1316 = vmax.f32 %v1089, 0.0
  %v1317 = vmax.f32 %v1094, 0.0
  %v1318 = vmax.f32 %v1097, 0.0
  %v1319 = vmax.f32 %v1102, 0.0
  %v1320 = vmax.f32 %v1105, 0.0
  %v1321 = vmax.f32 %v1110, 0.0
  %v1322 = vmax.f32 %v1113, 0.0
  %v1323 = vmax.f32 %v1118, 0.0
  %v1324 = vmax.f32 %v1121, 0.0
  %v1325 = vmax.f32 %v1126, 0.0
  %v1326 = vmax.f32 %v1129, 0.0
  %v1327 = vmax.f32 %v1134, 0.0
  %v1328 = vmax.f32 %v1137, 0.0
  %v1329 = vmax.f32 %v1142, 0.0
  %v1330 = vmax.f32 %v1145, 0.0
  %v1331 = vmax.f32 %v1150, 0.0
  %v1332 = vmax.f32 %v1153, 0.0
  %v1333 = vmax.f32 %v1158, 0.0
  %v1334 = vmax.f32 %v1161, 0.0
  %v1335 = vmax.f32 %v1166, 0.0
  %v1336 = vmax.f32 %v1169, 0.0
  %v1337 = vmax.f32 %v1174, 0.0
  %v1338 = vmax.f32 %v1177, 0.0
  %v1339 = vmax.f32 %v1182, 0.0
  %v1340 = vmax.f32 %v1185, 0.0
  %v1341 = vmax.f32 %v1190, 0.0
  %v1342 = vmax.f32 %v1193, 0.0
  %v1343 = vmax.f32 %v1198, 0.0
  %v1344 = vmax.f32 %v1201, 0.0
  %v1345 = vmax.f32 %v1206, 0.0
  %v1346 = vmax.f32 %v1209, 0.0
  %v1347 = vmax.f32 %v1214, 0.0
  %v1348 = vmax.f32 %v1217, 0.0
  %v1349 = vmax.f32 %v1222, 0.0
  %v1350 = vmax.f32 %v1225, 0.0
  %v1351 = vmax.f32 %v1230, 0.0
  %v1352 = vmax.f32 %v1233, 0.0
  %v1353 = vmax.f32 %v1238, 0.0
  %v1354 = vmax.f32 %v1241, 0.0
  %v1355 = vmax.f32 %v1246, 0.0
  %v1356 = vmax.f32 %v1249, 0.0
  %v1357 = vmax.f32 %v1254, 0.0
  %v1358 = vmax.f32 %v1257, 0.0
  %v1359 = vmax.f32 %v1262, 0.0
  %v1360 = vmax.f32 %v1265, 0.0
  %v1361 = vmax.f32 %v1270, 0.0
  %v1362 = vmax.f32 %v1273, 0.0
  %v1363 = vmax.f32 %v1278, 0.0
  %v1364 = vmax.f32 %v1281, 0.0
  %v1365 = vmax.f32 %v1286, 0.0
  %v1366 = vmax.f32 %v1289, 0.0
  %v1367 = vmax.f32 %v1294, 0.0
  %v1368 = vmax.f32 %v1297, 0.0
  %v1369 = vmax.f32 %v1302, 0.0
  %v1370 = vmax.f32 %v1305, 0.0
  %v1371 = vmax.f32 %v1310, 0.0
  %v1372 = vpack.c.bf16 %v1316, %v1315
  %v1373 = vpack.c.bf16 %v1318, %v1317
  %v1374 = vpack.c.bf16 %v1320, %v1319
  %v1375 = vpack.c.bf16 %v1322, %v1321
  %v1376 = vpack.c.bf16 %v1324, %v1323
  %v1377 = vpack.c.bf16 %v1326, %v1325
  %v1378 = vpack.c.bf16 %v1328, %v1327
  %v1379 = vpack.c.bf16 %v1330, %v1329
  %v1380 = vpack.c.bf16 %v1332, %v1331
  %v1381 = vpack.c.bf16 %v1334, %v1333
  %v1382 = vpack.c.bf16 %v1336, %v1335
  %v1383 = vpack.c.bf16 %v1338, %v1337
  %v1384 = vpack.c.bf16 %v1340, %v1339
  %v1385 = vpack.c.bf16 %v1342, %v1341
  %v1386 = vpack.c.bf16 %v1344, %v1343
  %v1387 = vpack.c.bf16 %v1346, %v1345
  %v1388 = vpack.c.bf16 %v1348, %v1347
  %v1389 = vpack.c.bf16 %v1350, %v1349
  %v1390 = vpack.c.bf16 %v1352, %v1351
  %v1391 = vpack.c.bf16 %v1354, %v1353
  %v1392 = vpack.c.bf16 %v1356, %v1355
  %v1393 = vpack.c.bf16 %v1358, %v1357
  %v1394 = vpack.c.bf16 %v1360, %v1359
  %v1395 = vpack.c.bf16 %v1362, %v1361
  %v1396 = vpack.c.bf16 %v1364, %v1363
  %v1397 = vpack.c.bf16 %v1366, %v1365
  %v1398 = vpack.c.bf16 %v1368, %v1367
  %v1399 = vpack.c.bf16 %v1370, %v1369
  %v1400 = vpack.c.bf16 %v1371, %v1371
  %v1430 = vunpack.c.l.b16 %v1372
  %v1431 = vunpack.c.h.b16 %v1372
  %v1432 = vunpack.c.l.b16 %v1373
  %v1433 = vunpack.c.h.b16 %v1373
  %v1434 = vunpack.c.l.b16 %v1374
  %v1435 = vunpack.c.h.b16 %v1374
  %v1436 = vunpack.c.l.b16 %v1375
  %v1437 = vunpack.c.h.b16 %v1375
  %v1438 = vunpack.c.l.b16 %v1376
  %v1439 = vunpack.c.h.b16 %v1376
  %v1440 = vunpack.c.l.b16 %v1377
  %v1441 = vunpack.c.h.b16 %v1377
  %v1442 = vunpack.c.l.b16 %v1378
  %v1443 = vunpack.c.h.b16 %v1378
  %v1444 = vunpack.c.l.b16 %v1379
  %v1445 = vunpack.c.h.b16 %v1379
  %v1446 = vunpack.c.l.b16 %v1380
  %v1447 = vunpack.c.h.b16 %v1380
  %v1448 = vunpack.c.l.b16 %v1381
  %v1449 = vunpack.c.h.b16 %v1381
  %v1450 = vunpack.c.l.b16 %v1382
  %v1451 = vunpack.c.h.b16 %v1382
  %v1452 = vunpack.c.l.b16 %v1383
  %v1453 = vunpack.c.h.b16 %v1383
  %v1454 = vunpack.c.l.b16 %v1384
  %v1455 = vunpack.c.h.b16 %v1384
  %v1456 = vunpack.c.l.b16 %v1385
  %v1457 = vunpack.c.h.b16 %v1385
  %v1458 = vunpack.c.l.b16 %v1386
  %v1459 = vunpack.c.h.b16 %v1386
  %v1460 = vunpack.c.l.b16 %v1387
  %v1461 = vunpack.c.h.b16 %v1387
  %v1462 = vunpack.c.l.b16 %v1388
  %v1463 = vunpack.c.h.b16 %v1388
  %v1464 = vunpack.c.l.b16 %v1389
  %v1465 = vunpack.c.h.b16 %v1389
  %v1466 = vunpack.c.l.b16 %v1390
  %v1467 = vunpack.c.h.b16 %v1390
  %v1468 = vunpack.c.l.b16 %v1391
  %v1469 = vunpack.c.h.b16 %v1391
  %v1470 = vunpack.c.l.b16 %v1392
  %v1471 = vunpack.c.h.b16 %v1392
  %v1472 = vunpack.c.l.b16 %v1393
  %v1473 = vunpack.c.h.b16 %v1393
  %v1474 = vunpack.c.l.b16 %v1394
  %v1475 = vunpack.c.h.b16 %v1394
  %v1476 = vunpack.c.l.b16 %v1395
  %v1477 = vunpack.c.h.b16 %v1395
  %v1478 = vunpack.c.l.b16 %v1396
  %v1479 = vunpack.c.h.b16 %v1396
  %v1480 = vunpack.c.l.b16 %v1397
  %v1481 = vunpack.c.h.b16 %v1397
  %v1482 = vunpack.c.l.b16 %v1398
  %v1483 = vunpack.c.h.b16 %v1398
  %v1484 = vunpack.c.l.b16 %v1399
  %v1485 = vunpack.c.h.b16 %v1399
  %v1486 = vunpack.c.l.b16 %v1400
  %v1487 = vpack.c.b16 %v1430, %v1430
  %v1488 = vpack.c.b16 %v1431, %v1431
  %v1489 = vpack.c.b16 %v1432, %v1432
  %v1490 = vpack.c.b16 %v1433, %v1433
  %v1491 = vpack.c.b16 %v1434, %v1434
  %v1492 = vpack.c.b16 %v1435, %v1435
  %v1493 = vpack.c.b16 %v1436, %v1436
  %v1494 = vpack.c.b16 %v1437, %v1437
  %v1495 = vpack.c.b16 %v1438, %v1438
  %v1496 = vpack.c.b16 %v1439, %v1439
  %v1497 = vpack.c.b16 %v1440, %v1440
  %v1498 = vpack.c.b16 %v1441, %v1441
  %v1499 = vpack.c.b16 %v1442, %v1442
  %v1500 = vpack.c.b16 %v1443, %v1443
  %v1501 = vpack.c.b16 %v1444, %v1444
  %v1502 = vpack.c.b16 %v1445, %v1445
  %v1503 = vpack.c.b16 %v1446, %v1446
  %v1504 = vpack.c.b16 %v1447, %v1447
  %v1505 = vpack.c.b16 %v1448, %v1448
  %v1506 = vpack.c.b16 %v1449, %v1449
  %v1507 = vpack.c.b16 %v1450, %v1450
  %v1508 = vpack.c.b16 %v1451, %v1451
  %v1509 = vpack.c.b16 %v1452, %v1452
  %v1510 = vpack.c.b16 %v1453, %v1453
  %v1511 = vpack.c.b16 %v1454, %v1454
  %v1512 = vpack.c.b16 %v1455, %v1455
  %v1513 = vpack.c.b16 %v1456, %v1456
  %v1514 = vpack.c.b16 %v1457, %v1457
  %v1515 = vpack.c.b16 %v1458, %v1458
  %v1516 = vpack.c.b16 %v1459, %v1459
  %v1517 = vpack.c.b16 %v1460, %v1460
  %v1518 = vpack.c.b16 %v1461, %v1461
  %v1519 = vpack.c.b16 %v1462, %v1462
  %v1520 = vpack.c.b16 %v1463, %v1463
  %v1521 = vpack.c.b16 %v1464, %v1464
  %v1522 = vpack.c.b16 %v1465, %v1465
  %v1523 = vpack.c.b16 %v1466, %v1466
  %v1524 = vpack.c.b16 %v1467, %v1467
  %v1525 = vpack.c.b16 %v1468, %v1468
  %v1526 = vpack.c.b16 %v1469, %v1469
  %v1527 = vpack.c.b16 %v1470, %v1470
  %v1528 = vpack.c.b16 %v1471, %v1471
  %v1529 = vpack.c.b16 %v1472, %v1472
  %v1530 = vpack.c.b16 %v1473, %v1473
  %v1531 = vpack.c.b16 %v1474, %v1474
  %v1532 = vpack.c.b16 %v1475, %v1475
  %v1533 = vpack.c.b16 %v1476, %v1476
  %v1534 = vpack.c.b16 %v1477, %v1477
  %v1535 = vpack.c.b16 %v1478, %v1478
  %v1536 = vpack.c.b16 %v1479, %v1479
  %v1537 = vpack.c.b16 %v1480, %v1480
  %v1538 = vpack.c.b16 %v1481, %v1481
  %v1539 = vpack.c.b16 %v1482, %v1482
  %v1540 = vpack.c.b16 %v1483, %v1483
  %v1541 = vpack.c.b16 %v1484, %v1484
  %v1542 = vpack.c.b16 %v1485, %v1485
  %v1543 = vpack.c.b16 %v1486, %v1486
  %1601 = vst [vmem:[%s3] sm:$0xf] %v1487
  %1602 = vst [vmem:[%s3 + $0x4] sm:$0xf] %v1488
  %1603 = vst [vmem:[%s3 + $0x8] sm:$0xf] %v1489
  %1604 = vst [vmem:[%s3 + $0xc] sm:$0xf] %v1490
  %1605 = vst [vmem:[%s3 + $0x10] sm:$0xf] %v1491
  %1606 = vst [vmem:[%s3 + $0x14] sm:$0xf] %v1492
  %1607 = vst [vmem:[%s3 + $0x18] sm:$0xf] %v1493
  %1608 = vst [vmem:[%s3 + $0x1c] sm:$0xf] %v1494
  %1609 = vst [vmem:[%s3 + $0x20] sm:$0xf] %v1495
  %1610 = vst [vmem:[%s3 + $0x24] sm:$0xf] %v1496
  %1611 = vst [vmem:[%s3 + $0x28] sm:$0xf] %v1497
  %1612 = vst [vmem:[%s3 + $0x2c] sm:$0xf] %v1498
  %1613 = vst [vmem:[%s3 + $0x30] sm:$0xf] %v1499
  %1614 = vst [vmem:[%s3 + $0x34] sm:$0xf] %v1500
  %1615 = vst [vmem:[%s3 + $0x38] sm:$0xf] %v1501
  %1616 = vst [vmem:[%s3 + $0x3c] sm:$0xf] %v1502
  %1617 = vst [vmem:[%s3 + $0x40] sm:$0xf] %v1503
  %1618 = vst [vmem:[%s3 + $0x44] sm:$0xf] %v1504
  %1619 = vst [vmem:[%s3 + $0x48] sm:$0xf] %v1505
  %1620 = vst [vmem:[%s3 + $0x4c] sm:$0xf] %v1506
  %1621 = vst [vmem:[%s3 + $0x50] sm:$0xf] %v1507
  %1622 = vst [vmem:[%s3 + $0x54] sm:$0xf] %v1508
  %1623 = vst [vmem:[%s3 + $0x58] sm:$0xf] %v1509
  %1624 = vst [vmem:[%s3 + $0x5c] sm:$0xf] %v1510
  %1625 = vst [vmem:[%s3 + $0x60] sm:$0xf] %v1511
  %1626 = vst [vmem:[%s3 + $0x64] sm:$0xf] %v1512
  %1627 = vst [vmem:[%s3 + $0x68] sm:$0xf] %v1513
  %1628 = vst [vmem:[%s3 + $0x6c] sm:$0xf] %v1514
  %1629 = vst [vmem:[%s3 + $0x70] sm:$0xf] %v1515
  %1630 = vst [vmem:[%s3 + $0x74] sm:$0xf] %v1516
  %1631 = vst [vmem:[%s3 + $0x78] sm:$0xf] %v1517
  %1632 = vst [vmem:[%s3 + $0x7c] sm:$0xf] %v1518
  %1633 = vst [vmem:[%s3 + $0x80] sm:$0xf] %v1519
  %1634 = vst [vmem:[%s3 + $0x84] sm:$0xf] %v1520
  %1635 = vst [vmem:[%s3 + $0x88] sm:$0xf] %v1521
  %1636 = vst [vmem:[%s3 + $0x8c] sm:$0xf] %v1522
  %1637 = vst [vmem:[%s3 + $0x90] sm:$0xf] %v1523
  %1638 = vst [vmem:[%s3 + $0x94] sm:$0xf] %v1524
  %1639 = vst [vmem:[%s3 + $0x98] sm:$0xf] %v1525
  %1640 = vst [vmem:[%s3 + $0x9c] sm:$0xf] %v1526
  %1641 = vst [vmem:[%s3 + $0xa0] sm:$0xf] %v1527
  %1642 = vst [vmem:[%s3 + $0xa4] sm:$0xf] %v1528
  %1643 = vst [vmem:[%s3 + $0xa8] sm:$0xf] %v1529
  %1644 = vst [vmem:[%s3 + $0xac] sm:$0xf] %v1530
  %1645 = vst [vmem:[%s3 + $0xb0] sm:$0xf] %v1531
  %1646 = vst [vmem:[%s3 + $0xb4] sm:$0xf] %v1532
  %1647 = vst [vmem:[%s3 + $0xb8] sm:$0xf] %v1533
  %1648 = vst [vmem:[%s3 + $0xbc] sm:$0xf] %v1534
  %1649 = vst [vmem:[%s3 + $0xc0] sm:$0xf] %v1535
  %1650 = vst [vmem:[%s3 + $0xc4] sm:$0xf] %v1536
  %1651 = vst [vmem:[%s3 + $0xc8] sm:$0xf] %v1537
  %1652 = vst [vmem:[%s3 + $0xcc] sm:$0xf] %v1538
  %1653 = vst [vmem:[%s3 + $0xd0] sm:$0xf] %v1539
  %1654 = vst [vmem:[%s3 + $0xd4] sm:$0xf] %v1540
  %1655 = vst [vmem:[%s3 + $0xd8] sm:$0xf] %v1541
  %1656 = vst [vmem:[%s3 + $0xdc] sm:$0xf] %v1542
  %1657 = vst [vmem:[%s3 + $0xe0] sm:$0x1] %v1543
  // Predicated region
  $region14: #{modified_inception_forward.9} parent=0 // pred_check
    _
  $region15: #{modified_inception_forward.9} parent=0 // pred_check_branch
    %1659 = sbr.rel (0) target = $region17
  $region16: #{modified_inception_forward.9} parent=0 // pred_region
    _
  $region17: #{modified_inception_forward.9} parent=0 // pred_fallthru
    _
  // Predicated region
  $region18: #{modified_inception_forward.9} parent=0 // pred_check
    _
  $region19: #{modified_inception_forward.9} parent=0 // pred_check_branch
    %1661 = sbr.rel (0) target = $region21
  $region20: #{modified_inception_forward.9} parent=0 // pred_region
    _
  $region21: #{modified_inception_forward.9} parent=0 // pred_fallthru
    _

// kernel: modified_inception_forward.13
$region0: #{modified_inception_forward.13}
  #allocation0 [shape = 'u32[]', space=smem, size = 0x4, offset = 0x4, fixed_abs, tag = 'smem constant byte address 0x4 - core index']
  #allocation1 [shape = 'u32[144,128]{1,0:T(1,128)}', space=vmem, size = 0x12000, scoped, tag = 'internal scratch']
  %s0 = inlined_call_operand.vmem [shape: bf16[2,225,64], index: 0, kind: input, shape index: {}]
  %s1 = inlined_call_operand.vmem [shape: f32[64,8], index: 1, kind: input, shape index: {}]
  %s2 = inlined_call_operand.vmem [shape: f32[1,8], index: 2, kind: input, shape index: {}]
  %s3 = inlined_call_operand.hbm [shape: f32[2,8], index: 3, kind: output, shape index: {}]
  %s4 = sld [smem:[#allocation0]]
  $region22: #{modified_inception_forward.13} parent=0
    _
  %s6 = ssub.s32 1, %s4
  %s7 = scalar_select 0, %s6, %s4
  $region1: #{modified_inception_forward.13} parent=0
    #allocation2 [shape = 'u8[1024]{0}', space=vmem, size = 0x400, scoped, tag = 'output window, operand 0, single buffered']
    #allocation3 [shape = 's32[1]{0}', space=sflag, size = 0x4, scoped, tag = 'scoped memory for modified_inception_forward.13']
    %8 = vsyncpa [#allocation3], 0
    // Predicated region
    $region2: #{modified_inception_forward.13} parent=1 // pred_check
      _
    $region3: #{modified_inception_forward.13} parent=1 // pred_check_branch
      %10 = sbr.rel (0) target = $region5
    $region4: #{modified_inception_forward.13} parent=1 // pred_region
      _
    $region5: #{modified_inception_forward.13} parent=1 // pred_fallthru
      _
    // Predicated region
    $region6: #{modified_inception_forward.13} parent=1 // pred_check
      _
    $region7: #{modified_inception_forward.13} parent=1 // pred_check_branch
      %12 = sbr.rel (0) target = $region9
    $region8: #{modified_inception_forward.13} parent=1 // pred_region
      _
    $region9: #{modified_inception_forward.13} parent=1 // pred_fallthru
      _
    // Predicated region
    $region10: #{modified_inception_forward.13} parent=1 // pred_check
      _
    $region11: #{modified_inception_forward.13} parent=1 // pred_check_branch
      %14 = sbr.rel (0) target = $region13
    $region12: #{modified_inception_forward.13} parent=1 // pred_region
      _
    $region13: #{modified_inception_forward.13} parent=1 // pred_fallthru
      _
    %v15 = vld [vmem:[%s0] sm:$0xf]
    %v16 = vld [vmem:[%s0 + $0x4] sm:$0xf]
    %v17 = vld [vmem:[%s0 + $0x8] sm:$0xf]
    %v18 = vld [vmem:[%s0 + $0xc] sm:$0xf]
    %v19 = vld [vmem:[%s0 + $0x10] sm:$0xf]
    %v20 = vld [vmem:[%s0 + $0x14] sm:$0xf]
    %v21 = vld [vmem:[%s0 + $0x18] sm:$0xf]
    %v22 = vld [vmem:[%s0 + $0x1c] sm:$0xf]
    %v23 = vld [vmem:[%s0 + $0x20] sm:$0xf]
    %v24 = vld [vmem:[%s0 + $0x24] sm:$0xf]
    %v25 = vld [vmem:[%s0 + $0x28] sm:$0xf]
    %v26 = vld [vmem:[%s0 + $0x2c] sm:$0xf]
    %v27 = vld [vmem:[%s0 + $0x30] sm:$0xf]
    %v28 = vld [vmem:[%s0 + $0x34] sm:$0xf]
    %v29 = vld [vmem:[%s0 + $0x38] sm:$0xf]
    %v30 = vld [vmem:[%s0 + $0x3c] sm:$0xf]
    %v31 = vld [vmem:[%s0 + $0x40] sm:$0xf]
    %v32 = vld [vmem:[%s0 + $0x44] sm:$0xf]
    %v33 = vld [vmem:[%s0 + $0x48] sm:$0xf]
    %v34 = vld [vmem:[%s0 + $0x4c] sm:$0xf]
    %v35 = vld [vmem:[%s0 + $0x50] sm:$0xf]
    %v36 = vld [vmem:[%s0 + $0x54] sm:$0xf]
    %v37 = vld [vmem:[%s0 + $0x58] sm:$0xf]
    %v38 = vld [vmem:[%s0 + $0x5c] sm:$0xf]
    %v39 = vld [vmem:[%s0 + $0x60] sm:$0xf]
    %v40 = vld [vmem:[%s0 + $0x64] sm:$0xf]
    %v41 = vld [vmem:[%s0 + $0x68] sm:$0xf]
    %v42 = vld [vmem:[%s0 + $0x6c] sm:$0xf]
    %v43 = vld [vmem:[%s0 + $0x70] sm:$0x1]
    %v44 = vld [vmem:[%s0 + $0x74] sm:$0xf]
    %v45 = vld [vmem:[%s0 + $0x78] sm:$0xf]
    %v46 = vld [vmem:[%s0 + $0x7c] sm:$0xf]
    %v47 = vld [vmem:[%s0 + $0x80] sm:$0xf]
    %v48 = vld [vmem:[%s0 + $0x84] sm:$0xf]
    %v49 = vld [vmem:[%s0 + $0x88] sm:$0xf]
    %v50 = vld [vmem:[%s0 + $0x8c] sm:$0xf]
    %v51 = vld [vmem:[%s0 + $0x90] sm:$0xf]
    %v52 = vld [vmem:[%s0 + $0x94] sm:$0xf]
    %v53 = vld [vmem:[%s0 + $0x98] sm:$0xf]
    %v54 = vld [vmem:[%s0 + $0x9c] sm:$0xf]
    %v55 = vld [vmem:[%s0 + $0xa0] sm:$0xf]
    %v56 = vld [vmem:[%s0 + $0xa4] sm:$0xf]
    %v57 = vld [vmem:[%s0 + $0xa8] sm:$0xf]
    %v58 = vld [vmem:[%s0 + $0xac] sm:$0xf]
    %v59 = vld [vmem:[%s0 + $0xb0] sm:$0xf]
    %v60 = vld [vmem:[%s0 + $0xb4] sm:$0xf]
    %v61 = vld [vmem:[%s0 + $0xb8] sm:$0xf]
    %v62 = vld [vmem:[%s0 + $0xbc] sm:$0xf]
    %v63 = vld [vmem:[%s0 + $0xc0] sm:$0xf]
    %v64 = vld [vmem:[%s0 + $0xc4] sm:$0xf]
    %v65 = vld [vmem:[%s0 + $0xc8] sm:$0xf]
    %v66 = vld [vmem:[%s0 + $0xcc] sm:$0xf]
    %v67 = vld [vmem:[%s0 + $0xd0] sm:$0xf]
    %v68 = vld [vmem:[%s0 + $0xd4] sm:$0xf]
    %v69 = vld [vmem:[%s0 + $0xd8] sm:$0xf]
    %v70 = vld [vmem:[%s0 + $0xdc] sm:$0xf]
    %v71 = vld [vmem:[%s0 + $0xe0] sm:$0xf]
    %v72 = vld [vmem:[%s0 + $0xe4] sm:$0x1]
    %v73 = vunpack.c.l.bf16 %v15
    %v74 = vunpack.c.l.bf16 %v16
    %v75 = vunpack.c.l.bf16 %v17
    %v76 = vunpack.c.l.bf16 %v18
    %v77 = vunpack.c.l.bf16 %v19
    %v78 = vunpack.c.l.bf16 %v20
    %v79 = vunpack.c.l.bf16 %v21
    %v80 = vunpack.c.l.bf16 %v22
    %v81 = vunpack.c.l.bf16 %v23
    %v82 = vunpack.c.l.bf16 %v24
    %v83 = vunpack.c.l.bf16 %v25
    %v84 = vunpack.c.l.bf16 %v26
    %v85 = vunpack.c.l.bf16 %v27
    %v86 = vunpack.c.l.bf16 %v28
    %v87 = vunpack.c.l.bf16 %v29
    %v88 = vunpack.c.l.bf16 %v30
    %v89 = vunpack.c.l.bf16 %v31
    %v90 = vunpack.c.l.bf16 %v32
    %v91 = vunpack.c.l.bf16 %v33
    %v92 = vunpack.c.l.bf16 %v34
    %v93 = vunpack.c.l.bf16 %v35
    %v94 = vunpack.c.l.bf16 %v36
    %v95 = vunpack.c.l.bf16 %v37
    %v96 = vunpack.c.l.bf16 %v38
    %v97 = vunpack.c.l.bf16 %v39
    %v98 = vunpack.c.l.bf16 %v40
    %v99 = vunpack.c.l.bf16 %v41
    %v100 = vunpack.c.l.bf16 %v42
    %v101 = vunpack.c.l.bf16 %v43
    %v102 = vunpack.c.l.bf16 %v44
    %v103 = vunpack.c.l.bf16 %v45
    %v104 = vunpack.c.l.bf16 %v46
    %v105 = vunpack.c.l.bf16 %v47
    %v106 = vunpack.c.l.bf16 %v48
    %v107 = vunpack.c.l.bf16 %v49
    %v108 = vunpack.c.l.bf16 %v50
    %v109 = vunpack.c.l.bf16 %v51
    %v110 = vunpack.c.l.bf16 %v52
    %v111 = vunpack.c.l.bf16 %v53
    %v112 = vunpack.c.l.bf16 %v54
    %v113 = vunpack.c.l.bf16 %v55
    %v114 = vunpack.c.l.bf16 %v56
    %v115 = vunpack.c.l.bf16 %v57
    %v116 = vunpack.c.l.bf16 %v58
    %v117 = vunpack.c.l.bf16 %v59
    %v118 = vunpack.c.l.bf16 %v60
    %v119 = vunpack.c.l.bf16 %v61
    %v120 = vunpack.c.l.bf16 %v62
    %v121 = vunpack.c.l.bf16 %v63
    %v122 = vunpack.c.l.bf16 %v64
    %v123 = vunpack.c.l.bf16 %v65
    %v124 = vunpack.c.l.bf16 %v66
    %v125 = vunpack.c.l.bf16 %v67
    %v126 = vunpack.c.l.bf16 %v68
    %v127 = vunpack.c.l.bf16 %v69
    %v128 = vunpack.c.l.bf16 %v70
    %v129 = vunpack.c.l.bf16 %v71
    %v130 = vunpack.c.l.bf16 %v72
    %vm131 = vcmask 523264
    %v132 = vsel %vm131, %v73, 0.0
    %v133 = vsel %vm131, %v74, 0.0
    %v134 = vadd.f32 %v132, %v133
    %v135 = vsel %vm131, %v75, 0.0
    %v136 = vadd.f32 %v134, %v135
    %v137 = vsel %vm131, %v76, 0.0
    %v138 = vadd.f32 %v136, %v137
    %v139 = vsel %vm131, %v77, 0.0
    %v140 = vadd.f32 %v138, %v139
    %v141 = vsel %vm131, %v78, 0.0
    %v142 = vadd.f32 %v140, %v141
    %v143 = vsel %vm131, %v79, 0.0
    %v144 = vadd.f32 %v142, %v143
    %v145 = vsel %vm131, %v80, 0.0
    %v146 = vadd.f32 %v144, %v145
    %v147 = vsel %vm131, %v81, 0.0
    %v148 = vadd.f32 %v146, %v147
    %v149 = vsel %vm131, %v82, 0.0
    %v150 = vadd.f32 %v148, %v149
    %v151 = vsel %vm131, %v83, 0.0
    %v152 = vadd.f32 %v150, %v151
    %v153 = vsel %vm131, %v84, 0.0
    %v154 = vadd.f32 %v152, %v153
    %v155 = vsel %vm131, %v85, 0.0
    %v156 = vadd.f32 %v154, %v155
    %v157 = vsel %vm131, %v86, 0.0
    %v158 = vadd.f32 %v156, %v157
    %v159 = vsel %vm131, %v87, 0.0
    %v160 = vadd.f32 %v158, %v159
    %v161 = vsel %vm131, %v88, 0.0
    %v162 = vadd.f32 %v160, %v161
    %v163 = vsel %vm131, %v89, 0.0
    %v164 = vadd.f32 %v162, %v163
    %v165 = vsel %vm131, %v90, 0.0
    %v166 = vadd.f32 %v164, %v165
    %v167 = vsel %vm131, %v91, 0.0
    %v168 = vadd.f32 %v166, %v167
    %v169 = vsel %vm131, %v92, 0.0
    %v170 = vadd.f32 %v168, %v169
    %v171 = vsel %vm131, %v93, 0.0
    %v172 = vadd.f32 %v170, %v171
    %v173 = vsel %vm131, %v94, 0.0
    %v174 = vadd.f32 %v172, %v173
    %v175 = vsel %vm131, %v95, 0.0
    %v176 = vadd.f32 %v174, %v175
    %v177 = vsel %vm131, %v96, 0.0
    %v178 = vadd.f32 %v176, %v177
    %v179 = vsel %vm131, %v97, 0.0
    %v180 = vadd.f32 %v178, %v179
    %v181 = vsel %vm131, %v98, 0.0
    %v182 = vadd.f32 %v180, %v181
    %v183 = vsel %vm131, %v99, 0.0
    %v184 = vadd.f32 %v182, %v183
    %v185 = vsel %vm131, %v100, 0.0
    %v186 = vadd.f32 %v184, %v185
    %vm187 = vcmask 516096
    %v188 = vsel %vm187, %v101, 0.0
    %v189 = vadd.f32 %v186, %v188
    %v190 = vrot.slane %v189, 4
    %v191 = vadd.f32 %v189, %v190
    %v192 = vrot.slane %v191, 2
    %v193 = vadd.f32 %v191, %v192
    %v194 = vrot.slane %v193, 1
    %v195 = vadd.f32 %v193, %v194
    %v196 = vsel %vm131, %v102, 0.0
    %v197 = vsel %vm131, %v103, 0.0
    %v198 = vadd.f32 %v196, %v197
    %v199 = vsel %vm131, %v104, 0.0
    %v200 = vadd.f32 %v198, %v199
    %v201 = vsel %vm131, %v105, 0.0
    %v202 = vadd.f32 %v200, %v201
    %v203 = vsel %vm131, %v106, 0.0
    %v204 = vadd.f32 %v202, %v203
    %v205 = vsel %vm131, %v107, 0.0
    %v206 = vadd.f32 %v204, %v205
    %v207 = vsel %vm131, %v108, 0.0
    %v208 = vadd.f32 %v206, %v207
    %v209 = vsel %vm131, %v109, 0.0
    %v210 = vadd.f32 %v208, %v209
    %v211 = vsel %vm131, %v110, 0.0
    %v212 = vadd.f32 %v210, %v211
    %v213 = vsel %vm131, %v111, 0.0
    %v214 = vadd.f32 %v212, %v213
    %v215 = vsel %vm131, %v112, 0.0
    %v216 = vadd.f32 %v214, %v215
    %v217 = vsel %vm131, %v113, 0.0
    %v218 = vadd.f32 %v216, %v217
    %v219 = vsel %vm131, %v114, 0.0
    %v220 = vadd.f32 %v218, %v219
    %v221 = vsel %vm131, %v115, 0.0
    %v222 = vadd.f32 %v220, %v221
    %v223 = vsel %vm131, %v116, 0.0
    %v224 = vadd.f32 %v222, %v223
    %v225 = vsel %vm131, %v117, 0.0
    %v226 = vadd.f32 %v224, %v225
    %v227 = vsel %vm131, %v118, 0.0
    %v228 = vadd.f32 %v226, %v227
    %v229 = vsel %vm131, %v119, 0.0
    %v230 = vadd.f32 %v228, %v229
    %v231 = vsel %vm131, %v120, 0.0
    %v232 = vadd.f32 %v230, %v231
    %v233 = vsel %vm131, %v121, 0.0
    %v234 = vadd.f32 %v232, %v233
    %v235 = vsel %vm131, %v122, 0.0
    %v236 = vadd.f32 %v234, %v235
    %v237 = vsel %vm131, %v123, 0.0
    %v238 = vadd.f32 %v236, %v237
    %v239 = vsel %vm131, %v124, 0.0
    %v240 = vadd.f32 %v238, %v239
    %v241 = vsel %vm131, %v125, 0.0
    %v242 = vadd.f32 %v240, %v241
    %v243 = vsel %vm131, %v126, 0.0
    %v244 = vadd.f32 %v242, %v243
    %v245 = vsel %vm131, %v127, 0.0
    %v246 = vadd.f32 %v244, %v245
    %v247 = vsel %vm131, %v128, 0.0
    %v248 = vadd.f32 %v246, %v247
    %v249 = vsel %vm131, %v129, 0.0
    %v250 = vadd.f32 %v248, %v249
    %v251 = vsel %vm187, %v130, 0.0
    %v252 = vadd.f32 %v250, %v251
    %v253 = vrot.slane %v252, 4
    %v254 = vadd.f32 %v252, %v253
    %v255 = vrot.slane %v254, 2
    %v256 = vadd.f32 %v254, %v255
    %v257 = vrot.slane %v256, 1
    %v258 = vadd.f32 %v256, %v257
    %v259 = vmul.f32 %v195, 0.0044444446
    %v260 = vmul.f32 %v258, 0.0044444446
    %v261 = vld [vmem:[%s1] sm:$0xff]
    %v262 = vld [vmem:[%s1 + $0x8] sm:$0xff]
    %v263 = vld [vmem:[%s1 + $0x10] sm:$0xff]
    %v264 = vld [vmem:[%s1 + $0x18] sm:$0xff]
    %v265 = vld [vmem:[%s1 + $0x20] sm:$0xff]
    %v266 = vld [vmem:[%s1 + $0x28] sm:$0xff]
    %v267 = vld [vmem:[%s1 + $0x30] sm:$0xff]
    %v268 = vld [vmem:[%s1 + $0x38] sm:$0xff]
    %v269 = vld [vmem:[%s2] sm:$0x1]
    %v271 = vlaneseq
    %v272 = vshrl.u32 %v271, 7
    %v273 = vsub.s32 0, %v272
    %v274 = vrot.slane %v269, %v273
    %vm278 = vcmask 1041409
    %v279 = vsel %vm278, %v260, %v259
    %v280 = vsel %vm131, %v279, 0
    %282 = vmatprep.subr.mxu0 0.0
    %283 = vmatpush1.msra.mxu0 %v261
    %284 = vmatprep.subr.mxu0 0.0
    %285 = vmatpush1.msra.mxu0 %v262
    %286 = vmatprep.subr.mxu0 0.0
    %287 = vmatpush1.msra.mxu0 %v263
    %288 = vmatprep.subr.mxu0 0.0
    %289 = vmatpush1.msra.mxu0 %v264
    %290 = vmatprep.subr.mxu0 0.0
    %291 = vmatpush1.msra.mxu0 %v265
    %292 = vmatprep.subr.mxu0 0.0
    %293 = vmatpush1.msra.mxu0 %v266
    %294 = vmatprep.subr.mxu0 0.0
    %295 = vmatpush1.msra.mxu0 %v267
    %296 = vmatprep.subr.mxu0 0.0
    %297 = vmatpush1.msra.mxu0 %v268
    %298 = vmatprep.subr.mxu0 0.0
    %299 = vmatpush1.msra.mxu0 0.0
    %300 = vmatprep.subr.mxu0 0.0
    %301 = vmatpush1.msra.mxu0 0.0
    %302 = vmatprep.subr.mxu0 0.0
    %303 = vmatpush1.msra.mxu0 0.0
    %304 = vmatprep.subr.mxu0 0.0
    %305 = vmatpush1.msra.mxu0 0.0
    %306 = vmatprep.subr.mxu0 0.0
    %307 = vmatpush1.msra.mxu0 0.0
    %308 = vmatprep.subr.mxu0 0.0
    %309 = vmatpush1.msra.mxu0 0.0
    %310 = vmatprep.subr.mxu0 0.0
    %311 = vmatpush1.msra.mxu0 0.0
    %312 = vmatprep.subr.mxu0 0.0
    %313 = vmatpush1.msra.mxu0 0.0
    %314 = vmatprep.subr.mxu0 0.0
    %315 = vmatpush1.msra.mxu0 0.0
    %316 = vmatprep.subr.mxu0 0.0
    %317 = vmatpush1.msra.mxu0 0.0
    %318 = vmatprep.subr.mxu0 0.0
    %319 = vmatpush1.msra.mxu0 0.0
    %320 = vmatprep.subr.mxu0 0.0
    %321 = vmatpush1.msra.mxu0 0.0
    %322 = vmatprep.subr.mxu0 0.0
    %323 = vmatpush1.msra.mxu0 0.0
    %324 = vmatprep.subr.mxu0 0.0
    %325 = vmatpush1.msra.mxu0 0.0
    %326 = vmatprep.subr.mxu0 0.0
    %327 = vmatpush1.msra.mxu0 0.0
    %328 = vmatprep.subr.mxu0 0.0
    %329 = vmatpush1.msra.mxu0 0.0
    %330 = vmatprep.subr.mxu0 0.0
    %331 = vmatpush1.msra.mxu0 0.0
    %332 = vmatprep.subr.mxu0 0.0
    %333 = vmatpush1.msra.mxu0 0.0
    %334 = vmatprep.subr.mxu0 0.0
    %335 = vmatpush1.msra.mxu0 0.0
    %336 = vmatprep.subr.mxu0 0.0
    %337 = vmatpush1.msra.mxu0 0.0
    %338 = vmatprep.subr.mxu0 0.0
    %339 = vmatpush1.msra.mxu0 0.0
    %340 = vmatprep.subr.mxu0 0.0
    %341 = vmatpush1.msra.mxu0 0.0
    %342 = vmatprep.subr.mxu0 0.0
    %343 = vmatpush1.msra.mxu0 0.0
    %344 = vmatprep.subr.mxu0 0.0
    %345 = vmatpush1.msra.mxu0 0.0
    %346 = vmatprep.mubr.f32.mxu0 0.0
    %347 = vmatmul.mubr.f32.gmra.mrb[0].mxu0 %v280
    %v348 = vpop.f32.mrb[0].mxu0
    %v349 = vadd.f32 %v274, %v348
    %v350 = vpop.f32.mrb[0].mxu0
    %351 = vdwg.mxu0
    %vm352 = vcmask 58368
    %353 = vst.msk [vmem:[#allocation2] sm:$0x3] %vm352, %v349
    // Predicated region
    $region14: #{modified_inception_forward.13} parent=1 // pred_check
      _
    $region15: #{modified_inception_forward.13} parent=1 // pred_check_branch
      %355 = sbr.rel (0) target = $region17
    $region16: #{modified_inception_forward.13} parent=1 // pred_region
      %s357 = ssub.s32 32, 32
      %358 = vsyncadd [#allocation3], %s357
      %s360 = sshll.u32 [#allocation2], 4
      %s361 = int_to_ptr.vmem [resolvable:$true] %s360
      %363 = dma.vmem_to_hbm [thread:$0]  %s361, 32, %s3, [#allocation3]
    $region17: #{modified_inception_forward.13} parent=1 // pred_fallthru
      _
    // Predicated region
    $region18: #{modified_inception_forward.13} parent=1 // pred_check
      _
    $region19: #{modified_inception_forward.13} parent=1 // pred_check_branch
      %365 = sbr.rel (0) target = $region21
    $region20: #{modified_inception_forward.13} parent=1 // pred_region
      %366 = dma.done [#allocation3], 32
    $region21: #{modified_inception_forward.13} parent=1 // pred_fallthru
      _
    %367 = vsyncpa [#allocation3], 1

</llo_original>
